<compile_context>
chip_gen: v7x
topology: tpu7x:2x2x1
jax: 0.10.0
libtpu: 0.0.40
codegen_flags: <defaults>
</compile_context>

<pallas_src>
import functools
import math

import jax
import jax.numpy as jnp
from jax import lax
from jax.experimental import pallas as pl
from jax.experimental.pallas import tpu as pltpu

_VMEM_LIMIT = 32 * 1024 * 1024  # explicit scoped-VMEM limit, safe on v5e/v6e/v7x


# ----------------------------------------------------------------------------
# helpers
# ----------------------------------------------------------------------------

def _pick_tile(dim, target, mult):
    """Largest tile <= target that divides `dim` and is a multiple of `mult`
    (returns the full dim when it already fits or no aligned divisor exists)."""
    if dim <= target:
        return dim
    for t in range(target, 0, -1):
        if dim % t == 0 and t % mult == 0:
            return t
    return dim


def _row_tile(M, target):
    """Row tile that keeps >= 2 steps on the parallel M axis when possible (v7x 2 TCs)."""
    return _pick_tile(M, min(target, max(M // 2, 8)), 8)


# ----------------------------------------------------------------------------
# Pallas kernels
# ----------------------------------------------------------------------------

def _linear_kernel(x_ref, w_ref, b_ref, o_ref, acc_ref, *, activation):
    """Tiled o = act(x @ w + b): f32 accumulator over the K ("arbitrary") axis.
    Weights arrive as bf16; activations are cast once per tile."""
    @pl.when(pl.program_id(2) == 0)
    def _():
        acc_ref[...] = jnp.zeros_like(acc_ref)

    acc_ref[...] += jnp.dot(
        x_ref[...].astype(jnp.bfloat16), w_ref[...],
        preferred_element_type=jnp.float32)

    @pl.when(pl.program_id(2) == pl.num_programs(2) - 1)
    def _():
        y = acc_ref[...] + b_ref[...]
        if activation == "relu":
            y = jnp.maximum(y, 0.0)
        o_ref[...] = y.astype(o_ref.dtype)


def _attn_sublayer_kernel(xq_ref, xkv_ref, wq_ref, bq_ref, wk_ref, bk_ref,
                          wv_ref, bv_ref, wo_ref, bo_ref, g_ref, bt_ref,
                          y_ref, w_ref, *, num_heads, scale, causal, eps):
    """Fused MHA sub-layer for one batch element.

    q = (xq @ wq + bq) * scale ; k = xkv @ wk + bk ; v = xkv @ wv + bv
    per-head softmax(q k^T) v  ->  ctx [Sq, D]  ->  one ctx @ wo matmul
    y = LayerNorm(xq + attn_out + bo) * gamma + beta
    Attention probabilities are packed as [Sq, H*Sk] and stored once (lane-dense).
    """
    xq = xq_ref[0]                                   # [Sq, D] f32
    xkv = xkv_ref[0]                                 # [Sk, D] f32
    Sq, D = xq.shape
    Sk = xkv.shape[0]
    dh = D // num_heads

    xq_bf = xq.astype(jnp.bfloat16)
    xkv_bf = xkv.astype(jnp.bfloat16)

    # projections: bf16 x bf16 -> f32 accumulate, scale folded into q
    q = (jnp.dot(xq_bf, wq_ref[...], preferred_element_type=jnp.float32)
         + bq_ref[...]) * scale
    k = jnp.dot(xkv_bf, wk_ref[...], preferred_element_type=jnp.float32) + bk_ref[...]
    v = jnp.dot(xkv_bf, wv_ref[...], preferred_element_type=jnp.float32) + bv_ref[...]

    # single bf16 cast of q/k/v, hoisted out of the per-head loop
    q_bf = q.astype(jnp.bfloat16)
    k_bf = k.astype(jnp.bfloat16)
    v_bf = v.astype(jnp.bfloat16)

    if causal:  # mask built once (JAX does not CSE broadcast_in_dim)
        row = lax.broadcasted_iota(jnp.int32, (Sq, Sk), 0)
        col = lax.broadcasted_iota(jnp.int32, (Sq, Sk), 1)
        keep = col <= row
        neg = jnp.full((Sq, Sk), -1e9, jnp.float32)

    ctx_parts = []
    prob_parts = []
    for h in range(num_heads):
        qh = q_bf[:, h * dh:(h + 1) * dh]
        kh = k_bf[:, h * dh:(h + 1) * dh]
        vh = v_bf[:, h * dh:(h + 1) * dh]
        # contract the dh axis of both operands directly — no k transpose
        s = lax.dot_general(qh, kh, (((1,), (1,)), ((), ())),
                            preferred_element_type=jnp.float32)     # [Sq, Sk] f32
        if causal:
            s = jnp.where(keep, s, neg)
        m = jnp.max(s, axis=-1, keepdims=True)
        e = jnp.exp(s - m)
        p = e / jnp.sum(e, axis=-1, keepdims=True)   # exact softmax (probs are returned)
        prob_parts.append(p)
        ctx_parts.append(jnp.dot(p.astype(jnp.bfloat16), vh,
                                 preferred_element_type=jnp.float32))  # [Sq, dh]

    # one head-merge matmul: ctx [Sq, D] @ wo [D, D]
    ctx = jnp.concatenate(ctx_parts, axis=-1).astype(jnp.bfloat16)
    attn_out = jnp.dot(ctx, wo_ref[...], preferred_element_type=jnp.float32) + bo_ref[...]

    # lane-dense packed probability writeback: [Sq, H*Sk]
    w_ref[0] = jnp.concatenate(prob_parts, axis=-1).astype(w_ref.dtype)

    # residual + LayerNorm epilogue (f32 elementwise)
    xr = xq + attn_out
    mean = jnp.mean(xr, axis=-1, keepdims=True)
    diff = xr - mean
    var = jnp.mean(diff * diff, axis=-1, keepdims=True)
    xn = diff * lax.rsqrt(var + eps)
    y_ref[0] = (xn * g_ref[...] + bt_ref[...]).astype(y_ref.dtype)


def _ffn_sublayer_kernel(x_ref, w1_ref, b1_ref, w2_ref, b2_ref, g_ref, bt_ref,
                         y_ref, *, eps):
    """Fused FFN sub-layer on a row tile: LN(x + relu(x@w1+b1)@w2 + b2)."""
    x = x_ref[...]                                                  # [tm, D] f32
    h = jnp.dot(x.astype(jnp.bfloat16), w1_ref[...],
                preferred_element_type=jnp.float32) + b1_ref[...]
    h = jnp.maximum(h, 0.0)
    o = jnp.dot(h.astype(jnp.bfloat16), w2_ref[...],
                preferred_element_type=jnp.float32) + b2_ref[...]
    xr = x + o
    mean = jnp.mean(xr, axis=-1, keepdims=True)
    diff = xr - mean
    var = jnp.mean(diff * diff, axis=-1, keepdims=True)
    xn = diff * lax.rsqrt(var + eps)
    y_ref[...] = (xn * g_ref[...] + bt_ref[...]).astype(y_ref.dtype)


# ----------------------------------------------------------------------------
# Pallas wrappers
# ----------------------------------------------------------------------------

def linear(x2d, w, b, activation=None, *, tm_target=256, tn_target=256, tk_target=512):
    """x2d:[M,K] f32 @ w:[K,N] bf16 + b:[N] f32 -> [M,N] f32, tiled/pipelined."""
    M, K = x2d.shape
    N = w.shape[1]
    tm = _row_tile(M, tm_target)
    tn = _pick_tile(N, tn_target, 128)
    tk = _pick_tile(K, tk_target, 128)
    kernel = functools.partial(_linear_kernel, activation=activation)
    return pl.pallas_call(
        kernel,
        out_shape=jax.ShapeDtypeStruct((M, N), x2d.dtype),
        grid=(M // tm, N // tn, K // tk),
        in_specs=[pl.BlockSpec((tm, tk), lambda i, j, k: (i, k)),
                  pl.BlockSpec((tk, tn), lambda i, j, k: (k, j)),
                  pl.BlockSpec((1, tn), lambda i, j, k: (0, j))],
        out_specs=pl.BlockSpec((tm, tn), lambda i, j, k: (i, j)),
        scratch_shapes=[pltpu.VMEM((tm, tn), jnp.float32)],
        compiler_params=pltpu.CompilerParams(
            dimension_semantics=("parallel", "parallel", "arbitrary"),
            vmem_limit_bytes=_VMEM_LIMIT),
    )(x2d, w, b.reshape(1, N))


def attention_sublayer(x_q, x_kv, p, gamma, beta, num_heads, causal):
    """Fused MHA + residual + LayerNorm.  x_q:[B,Sq,D], x_kv:[B,Sk,D]."""
    B, Sq, D = x_q.shape
    Sk = x_kv.shape[1]
    dh = D // num_heads
    kernel = functools.partial(_attn_sublayer_kernel, num_heads=num_heads,
                               scale=1.0 / math.sqrt(dh), causal=causal, eps=1e-5)
    # TODO(synk): for large Sk / D this kernel should tile the KV axis with an
    # online softmax (v7x: 64 MiB VMEM); at these sizes full residency is fine.
    y, w_packed = pl.pallas_call(
        kernel,
        out_shape=(jax.ShapeDtypeStruct((B, Sq, D), x_q.dtype),
                   jax.ShapeDtypeStruct((B, Sq, num_heads * Sk), jnp.float32)),
        grid=(B,),
        in_specs=[
            pl.BlockSpec((1, Sq, D), lambda b: (b, 0, 0)),       # x_q
            pl.BlockSpec((1, Sk, D), lambda b: (b, 0, 0)),       # x_kv
            pl.BlockSpec((D, D), lambda b: (0, 0)),              # wq (bf16, VMEM-resident)
            pl.BlockSpec((1, D), lambda b: (0, 0)),              # bq
            pl.BlockSpec((D, D), lambda b: (0, 0)),              # wk
            pl.BlockSpec((1, D), lambda b: (0, 0)),              # bk
            pl.BlockSpec((D, D), lambda b: (0, 0)),              # wv
            pl.BlockSpec((1, D), lambda b: (0, 0)),              # bv
            pl.BlockSpec((D, D), lambda b: (0, 0)),              # wo
            pl.BlockSpec((1, D), lambda b: (0, 0)),              # bo
            pl.BlockSpec((1, D), lambda b: (0, 0)),              # gamma
            pl.BlockSpec((1, D), lambda b: (0, 0)),              # beta
        ],
        out_specs=(pl.BlockSpec((1, Sq, D), lambda b: (b, 0, 0)),
                   pl.BlockSpec((1, Sq, num_heads * Sk), lambda b: (b, 0, 0))),
        compiler_params=pltpu.CompilerParams(
            dimension_semantics=("parallel",), vmem_limit_bytes=_VMEM_LIMIT),
    )(x_q, x_kv, p["wq"], p["bq"].reshape(1, D),
      p["wk"], p["bk"].reshape(1, D),
      p["wv"], p["bv"].reshape(1, D),
      p["wo"], p["bo"].reshape(1, D),
      gamma.reshape(1, D), beta.reshape(1, D))
    # unpack lane-dense [B, Sq, H*Sk] -> [B, H, Sq, Sk] (cheap XLA reshape/transpose)
    w = w_packed.reshape(B, Sq, num_heads, Sk).transpose(0, 2, 1, 3)
    return y, w


def ffn_sublayer(x, p, gamma, beta, *, tm_target=512):
    """Fused FFN + residual + LayerNorm over row tiles of [B*S, D]."""
    B, S, D = x.shape
    M = B * S
    Dff = p["w1"].shape[1]
    tm = _row_tile(M, tm_target)
    kernel = functools.partial(_ffn_sublayer_kernel, eps=1e-5)
    y = pl.pallas_call(
        kernel,
        out_shape=jax.ShapeDtypeStruct((M, D), x.dtype),
        grid=(M // tm,),
        in_specs=[
            pl.BlockSpec((tm, D), lambda i: (i, 0)),
            pl.BlockSpec((D, Dff), lambda i: (0, 0)),            # w1 (bf16)
            pl.BlockSpec((1, Dff), lambda i: (0, 0)),
            pl.BlockSpec((Dff, D), lambda i: (0, 0)),            # w2 (bf16)
            pl.BlockSpec((1, D), lambda i: (0, 0)),
            pl.BlockSpec((1, D), lambda i: (0, 0)),
            pl.BlockSpec((1, D), lambda i: (0, 0)),
        ],
        out_specs=pl.BlockSpec((tm, D), lambda i: (i, 0)),
        compiler_params=pltpu.CompilerParams(
            dimension_semantics=("parallel",), vmem_limit_bytes=_VMEM_LIMIT),
    )(x.reshape(M, D), p["w1"], p["b1"].reshape(1, Dff),
      p["w2"], p["b2"].reshape(1, D), gamma.reshape(1, D), beta.reshape(1, D))
    return y.reshape(B, S, D)


# ----------------------------------------------------------------------------
# Model pieces (glue in plain JAX, compute in Pallas)
# ----------------------------------------------------------------------------

def encoder_layer(x, p, num_heads):
    x, attn_w = attention_sublayer(x, x, p["attn"], p["ln1_g"], p["ln1_b"],
                                   num_heads, causal=False)
    x = ffn_sublayer(x, p["ffn"], p["ln2_g"], p["ln2_b"])
    return x, attn_w


def decoder_layer(x, enc_out, p, num_heads):
    x, sa_w = attention_sublayer(x, x, p["self_attn"], p["ln1_g"], p["ln1_b"],
                                 num_heads, causal=True)
    x, ca_w = attention_sublayer(x, enc_out, p["cross_attn"], p["ln2_g"], p["ln2_b"],
                                 num_heads, causal=False)
    x = ffn_sublayer(x, p["ffn"], p["ln3_g"], p["ln3_b"])
    return x, (sa_w, ca_w)


def sinusoidal_pe(max_len, d_model):
    pos = jnp.arange(max_len, dtype=jnp.float32)[:, None]
    i = jnp.arange(0, d_model, 2, dtype=jnp.float32)
    div = jnp.exp(-jnp.log(10000.0) * i / d_model)
    pe = jnp.zeros((max_len, d_model), jnp.float32)
    pe = pe.at[:, 0::2].set(jnp.sin(pos * div))
    pe = pe.at[:, 1::2].set(jnp.cos(pos * div))
    return pe


def transformer_forward(params, src, tgt, num_heads, src_pad_id=0, tgt_pad_id=0):
    B, Ss = src.shape
    _, St = tgt.shape
    # TODO(synk): embedding gather (jnp.take) has no clean Pallas equivalent at this size.
    src_emb = jnp.take(params["src_emb"], src, axis=0)
    tgt_emb = jnp.take(params["tgt_emb"], tgt, axis=0)
    # Padding masks: created (as in the reference forward) but never consumed.
    _src_mask = (src != src_pad_id)[:, None, None, :]
    _tgt_mask = (tgt != tgt_pad_id)[:, None, None, :]

    pe = params["pos_enc"]
    x = src_emb + pe[None, :Ss, :]
    enc_attn_weights = []
    for lp in params["encoder"]:
        x, w = encoder_layer(x, lp, num_heads)
        enc_attn_weights.append(w)
    encoder_output = x

    y = tgt_emb + pe[None, :St, :]
    dec_attn_weights = []
    for lp in params["decoder"]:
        y, w = decoder_layer(y, encoder_output, lp, num_heads)
        dec_attn_weights.append(w)

    B_, S_, D_ = y.shape
    logits = linear(y.reshape(B_ * S_, D_), params["out_w"], params["out_b"])
    logits = logits.reshape(B_, S_, -1)
    return logits, (tuple(enc_attn_weights), tuple(dec_attn_weights))


# ----------------------------------------------------------------------------
# Deterministic parameter initialization (matmul weights stored in bf16)
# ----------------------------------------------------------------------------

def _dense_params(key, d_in, d_out, scale=0.02, dtype=jnp.bfloat16):
    kw, _ = jax.random.split(key)
    w = (jax.random.normal(kw, (d_in, d_out), jnp.float32) * scale).astype(dtype)
    return w, jnp.zeros((d_out,), jnp.float32)


def _mha_params(key, d_model):
    ks = jax.random.split(key, 4)
    wq, bq = _dense_params(ks[0], d_model, d_model)
    wk, bk = _dense_params(ks[1], d_model, d_model)
    wv, bv = _dense_params(ks[2], d_model, d_model)
    wo, bo = _dense_params(ks[3], d_model, d_model)
    return dict(wq=wq, bq=bq, wk=wk, bk=bk, wv=wv, bv=bv, wo=wo, bo=bo)


def _ffn_params(key, d_model, d_ff):
    k1, k2 = jax.random.split(key)
    w1, b1 = _dense_params(k1, d_model, d_ff)
    w2, b2 = _dense_params(k2, d_ff, d_model)
    return dict(w1=w1, b1=b1, w2=w2, b2=b2)


def init_params(key, src_vocab, tgt_vocab, d_model, d_ff, num_layers, max_seq_len):
    keys = jax.random.split(key, 6 + 4 * num_layers)
    params = {
        "src_emb": jax.random.normal(keys[0], (src_vocab, d_model), jnp.float32) * 0.02,
        "tgt_emb": jax.random.normal(keys[1], (tgt_vocab, d_model), jnp.float32) * 0.02,
        "pos_enc": sinusoidal_pe(max_seq_len, d_model),
        "encoder": [],
        "decoder": [],
    }
    ow, ob = _dense_params(keys[2], d_model, tgt_vocab)
    params["out_w"], params["out_b"] = ow, ob
    for l in range(num_layers):
        ka, kf = jax.random.split(keys[3 + l])
        params["encoder"].append(dict(
            attn=_mha_params(ka, d_model),
            ffn=_ffn_params(kf, d_model, d_ff),
            ln1_g=jnp.ones((d_model,), jnp.float32), ln1_b=jnp.zeros((d_model,), jnp.float32),
            ln2_g=jnp.ones((d_model,), jnp.float32), ln2_b=jnp.zeros((d_model,), jnp.float32),
        ))
    for l in range(num_layers):
        ks1, ks2, kf = jax.random.split(keys[3 + num_layers + l], 3)
        params["decoder"].append(dict(
            self_attn=_mha_params(ks1, d_model),
            cross_attn=_mha_params(ks2, d_model),
            ffn=_ffn_params(kf, d_model, d_ff),
            ln1_g=jnp.ones((d_model,), jnp.float32), ln1_b=jnp.zeros((d_model,), jnp.float32),
            ln2_g=jnp.ones((d_model,), jnp.float32), ln2_b=jnp.zeros((d_model,), jnp.float32),
            ln3_g=jnp.ones((d_model,), jnp.float32), ln3_b=jnp.zeros((d_model,), jnp.float32),
        ))
    return params


# ----------------------------------------------------------------------------
# Main
# ----------------------------------------------------------------------------

if __name__ == "__main__":
    SRC_VOCAB, TGT_VOCAB = 32, 32
    D_MODEL, NUM_HEADS, D_FF = 64, 4, 128
    NUM_LAYERS, MAX_SEQ_LEN = 2, 100
    BATCH, SEQ = 2, 8

    key = jax.random.PRNGKey(0)
    kp, ks, kt = jax.random.split(key, 3)
    params = init_params(kp, SRC_VOCAB, TGT_VOCAB, D_MODEL, D_FF, NUM_LAYERS, MAX_SEQ_LEN)

    src = jax.random.randint(ks, (BATCH, SEQ), 0, SRC_VOCAB, dtype=jnp.int32)
    tgt = jax.random.randint(kt, (BATCH, SEQ), 0, TGT_VOCAB, dtype=jnp.int32)

    fwd = jax.jit(functools.partial(transformer_forward, num_heads=NUM_HEADS))
    logits, (enc_w, dec_w) = fwd(params, src, tgt)
    jax.block_until_ready(logits)
    jax.block_until_ready(enc_w)
    jax.block_until_ready(dec_w)

    assert logits.shape == (BATCH, SEQ, TGT_VOCAB)
    assert len(enc_w) == NUM_LAYERS and enc_w[0].shape == (BATCH, NUM_HEADS, SEQ, SEQ)
    assert len(dec_w) == NUM_LAYERS and dec_w[0][0].shape == (BATCH, NUM_HEADS, SEQ, SEQ)
    assert bool(jnp.all(jnp.isfinite(logits)))
    print("KERNEL_OK")
</pallas_src>

<mosaic_0001>
module attributes {stable_mosaic.version = 11 : i64} {
  func.func @_attn_sublayer_kernel(%arg0: i32, %arg1: memref<1x8x64xf32, #tpu.memory_space<vmem>>, %arg2: memref<1x8x64xf32, #tpu.memory_space<vmem>>, %arg3: memref<64x64xbf16, #tpu.memory_space<vmem>>, %arg4: memref<1x64xf32, #tpu.memory_space<vmem>>, %arg5: memref<64x64xbf16, #tpu.memory_space<vmem>>, %arg6: memref<1x64xf32, #tpu.memory_space<vmem>>, %arg7: memref<64x64xbf16, #tpu.memory_space<vmem>>, %arg8: memref<1x64xf32, #tpu.memory_space<vmem>>, %arg9: memref<64x64xbf16, #tpu.memory_space<vmem>>, %arg10: memref<1x64xf32, #tpu.memory_space<vmem>>, %arg11: memref<1x64xf32, #tpu.memory_space<vmem>>, %arg12: memref<1x64xf32, #tpu.memory_space<vmem>>, %arg13: memref<1x8x64xf32, #tpu.memory_space<vmem>>, %arg14: memref<1x8x32xf32, #tpu.memory_space<vmem>>) attributes {dimension_semantics = [#tpu.dimension_semantics<parallel>], iteration_bounds = array<i64: 2>, scalar_prefetch = 0 : i64, scratch_operands = 0 : i64, tpu.core_type = #tpu.core_type<tc>, window_params = [{transform_indices = @transform_0, window_bounds = array<i64: 1, 8, 64>}, {transform_indices = @transform_1, window_bounds = array<i64: 1, 8, 64>}, {pipeline_mode = #tpu.pipeline_mode<synchronous>, transform_indices = @transform_2, window_bounds = array<i64: 64, 64>}, {pipeline_mode = #tpu.pipeline_mode<synchronous>, transform_indices = @transform_3, window_bounds = array<i64: 1, 64>}, {pipeline_mode = #tpu.pipeline_mode<synchronous>, transform_indices = @transform_4, window_bounds = array<i64: 64, 64>}, {pipeline_mode = #tpu.pipeline_mode<synchronous>, transform_indices = @transform_5, window_bounds = array<i64: 1, 64>}, {pipeline_mode = #tpu.pipeline_mode<synchronous>, transform_indices = @transform_6, window_bounds = array<i64: 64, 64>}, {pipeline_mode = #tpu.pipeline_mode<synchronous>, transform_indices = @transform_7, window_bounds = array<i64: 1, 64>}, {pipeline_mode = #tpu.pipeline_mode<synchronous>, transform_indices = @transform_8, window_bounds = array<i64: 64, 64>}, {pipeline_mode = #tpu.pipeline_mode<synchronous>, transform_indices = @transform_9, window_bounds = array<i64: 1, 64>}, {pipeline_mode = #tpu.pipeline_mode<synchronous>, transform_indices = @transform_10, window_bounds = array<i64: 1, 64>}, {pipeline_mode = #tpu.pipeline_mode<synchronous>, transform_indices = @transform_11, window_bounds = array<i64: 1, 64>}, {transform_indices = @transform_12, window_bounds = array<i64: 1, 8, 64>}, {transform_indices = @transform_13, window_bounds = array<i64: 1, 8, 32>}]} {
    %c0 = arith.constant 0 : index
    %c0_0 = arith.constant 0 : index
    %c0_1 = arith.constant 0 : index
    %0 = vector.load %arg1[%c0, %c0_0, %c0_1] : memref<1x8x64xf32, #tpu.memory_space<vmem>>, vector<1x8x64xf32>
    %1 = vector.shape_cast %0 : vector<1x8x64xf32> to vector<8x64xf32>
    %c0_2 = arith.constant 0 : index
    %c0_3 = arith.constant 0 : index
    %c0_4 = arith.constant 0 : index
    %2 = vector.load %arg2[%c0_2, %c0_3, %c0_4] : memref<1x8x64xf32, #tpu.memory_space<vmem>>, vector<1x8x64xf32>
    %3 = vector.shape_cast %2 : vector<1x8x64xf32> to vector<8x64xf32>
    %4 = arith.truncf %1 : vector<8x64xf32> to vector<8x64xbf16>
    %5 = arith.truncf %3 : vector<8x64xf32> to vector<8x64xbf16>
    %c0_5 = arith.constant 0 : index
    %c0_6 = arith.constant 0 : index
    %6 = vector.load %arg3[%c0_5, %c0_6] : memref<64x64xbf16, #tpu.memory_space<vmem>>, vector<64x64xbf16>
    %cst = arith.constant dense<0.000000e+00> : vector<8x64xf32>
    %7 = tpu.matmul %4, %6, %cst {dimension_numbers = #tpu.dot_dimension_numbers<[1], [0], [0], [1], [0, 0, 1, 1], [], []>} : vector<8x64xbf16>, vector<64x64xbf16>, vector<8x64xf32> -> vector<8x64xf32>
    %c0_7 = arith.constant 0 : index
    %c0_8 = arith.constant 0 : index
    %8 = vector.load %arg4[%c0_7, %c0_8] : memref<1x64xf32, #tpu.memory_space<vmem>>, vector<1x64xf32>
    %9 = vector.broadcast %8 : vector<1x64xf32> to vector<8x64xf32>
    %10 = arith.addf %7, %9 : vector<8x64xf32>
    %cst_9 = arith.constant 2.500000e-01 : f32
    %11 = vector.broadcast %cst_9 : f32 to vector<8x64xf32>
    %12 = arith.mulf %10, %11 : vector<8x64xf32>
    %c0_10 = arith.constant 0 : index
    %c0_11 = arith.constant 0 : index
    %13 = vector.load %arg5[%c0_10, %c0_11] : memref<64x64xbf16, #tpu.memory_space<vmem>>, vector<64x64xbf16>
    %cst_12 = arith.constant dense<0.000000e+00> : vector<8x64xf32>
    %14 = tpu.matmul %5, %13, %cst_12 {dimension_numbers = #tpu.dot_dimension_numbers<[1], [0], [0], [1], [0, 0, 1, 1], [], []>} : vector<8x64xbf16>, vector<64x64xbf16>, vector<8x64xf32> -> vector<8x64xf32>
    %c0_13 = arith.constant 0 : index
    %c0_14 = arith.constant 0 : index
    %15 = vector.load %arg6[%c0_13, %c0_14] : memref<1x64xf32, #tpu.memory_space<vmem>>, vector<1x64xf32>
    %16 = vector.broadcast %15 : vector<1x64xf32> to vector<8x64xf32>
    %17 = arith.addf %14, %16 : vector<8x64xf32>
    %c0_15 = arith.constant 0 : index
    %c0_16 = arith.constant 0 : index
    %18 = vector.load %arg7[%c0_15, %c0_16] : memref<64x64xbf16, #tpu.memory_space<vmem>>, vector<64x64xbf16>
    %cst_17 = arith.constant dense<0.000000e+00> : vector<8x64xf32>
    %19 = tpu.matmul %5, %18, %cst_17 {dimension_numbers = #tpu.dot_dimension_numbers<[1], [0], [0], [1], [0, 0, 1, 1], [], []>} : vector<8x64xbf16>, vector<64x64xbf16>, vector<8x64xf32> -> vector<8x64xf32>
    %c0_18 = arith.constant 0 : index
    %c0_19 = arith.constant 0 : index
    %20 = vector.load %arg8[%c0_18, %c0_19] : memref<1x64xf32, #tpu.memory_space<vmem>>, vector<1x64xf32>
    %21 = vector.broadcast %20 : vector<1x64xf32> to vector<8x64xf32>
    %22 = arith.addf %19, %21 : vector<8x64xf32>
    %23 = arith.truncf %12 : vector<8x64xf32> to vector<8x64xbf16>
    %24 = arith.truncf %17 : vector<8x64xf32> to vector<8x64xbf16>
    %25 = arith.truncf %22 : vector<8x64xf32> to vector<8x64xbf16>
    %26 = vector.extract_strided_slice %23 {offsets = [0, 0], sizes = [8, 16], strides = [1, 1]} : vector<8x64xbf16> to vector<8x16xbf16>
    %27 = vector.extract_strided_slice %24 {offsets = [0, 0], sizes = [8, 16], strides = [1, 1]} : vector<8x64xbf16> to vector<8x16xbf16>
    %28 = vector.extract_strided_slice %25 {offsets = [0, 0], sizes = [8, 16], strides = [1, 1]} : vector<8x64xbf16> to vector<8x16xbf16>
    %cst_20 = arith.constant dense<0.000000e+00> : vector<8x8xf32>
    %29 = tpu.matmul %26, %27, %cst_20 {dimension_numbers = #tpu.dot_dimension_numbers<[1], [1], [0], [0], [0, 0, 1, 0], [], []>} : vector<8x16xbf16>, vector<8x16xbf16>, vector<8x8xf32> -> vector<8x8xf32>
    %cst_21 = arith.constant dense<0xFF800000> : vector<8xf32>
    %30 = vector.multi_reduction <maximumf>, %29, %cst_21 [1] : vector<8x8xf32> to vector<8xf32>
    %31 = vector.shape_cast %30 : vector<8xf32> to vector<8x1xf32>
    %32 = vector.broadcast %31 : vector<8x1xf32> to vector<8x8xf32>
    %33 = arith.subf %29, %32 : vector<8x8xf32>
    %34 = math.exp %33 : vector<8x8xf32>
    %cst_22 = arith.constant dense<0.000000e+00> : vector<8xf32>
    %35 = vector.multi_reduction <add>, %34, %cst_22 [1] : vector<8x8xf32> to vector<8xf32>
    %36 = vector.shape_cast %35 : vector<8xf32> to vector<8x1xf32>
    %37 = vector.broadcast %36 : vector<8x1xf32> to vector<8x8xf32>
    %38 = arith.divf %34, %37 : vector<8x8xf32>
    %39 = arith.truncf %38 : vector<8x8xf32> to vector<8x8xbf16>
    %cst_23 = arith.constant dense<0.000000e+00> : vector<8x16xf32>
    %40 = tpu.matmul %39, %28, %cst_23 {dimension_numbers = #tpu.dot_dimension_numbers<[1], [0], [0], [1], [0, 0, 1, 1], [], []>} : vector<8x8xbf16>, vector<8x16xbf16>, vector<8x16xf32> -> vector<8x16xf32>
    %41 = vector.extract_strided_slice %23 {offsets = [0, 16], sizes = [8, 16], strides = [1, 1]} : vector<8x64xbf16> to vector<8x16xbf16>
    %42 = vector.extract_strided_slice %24 {offsets = [0, 16], sizes = [8, 16], strides = [1, 1]} : vector<8x64xbf16> to vector<8x16xbf16>
    %43 = vector.extract_strided_slice %25 {offsets = [0, 16], sizes = [8, 16], strides = [1, 1]} : vector<8x64xbf16> to vector<8x16xbf16>
    %cst_24 = arith.constant dense<0.000000e+00> : vector<8x8xf32>
    %44 = tpu.matmul %41, %42, %cst_24 {dimension_numbers = #tpu.dot_dimension_numbers<[1], [1], [0], [0], [0, 0, 1, 0], [], []>} : vector<8x16xbf16>, vector<8x16xbf16>, vector<8x8xf32> -> vector<8x8xf32>
    %cst_25 = arith.constant dense<0xFF800000> : vector<8xf32>
    %45 = vector.multi_reduction <maximumf>, %44, %cst_25 [1] : vector<8x8xf32> to vector<8xf32>
    %46 = vector.shape_cast %45 : vector<8xf32> to vector<8x1xf32>
    %47 = vector.broadcast %46 : vector<8x1xf32> to vector<8x8xf32>
    %48 = arith.subf %44, %47 : vector<8x8xf32>
    %49 = math.exp %48 : vector<8x8xf32>
    %cst_26 = arith.constant dense<0.000000e+00> : vector<8xf32>
    %50 = vector.multi_reduction <add>, %49, %cst_26 [1] : vector<8x8xf32> to vector<8xf32>
    %51 = vector.shape_cast %50 : vector<8xf32> to vector<8x1xf32>
    %52 = vector.broadcast %51 : vector<8x1xf32> to vector<8x8xf32>
    %53 = arith.divf %49, %52 : vector<8x8xf32>
    %54 = arith.truncf %53 : vector<8x8xf32> to vector<8x8xbf16>
    %cst_27 = arith.constant dense<0.000000e+00> : vector<8x16xf32>
    %55 = tpu.matmul %54, %43, %cst_27 {dimension_numbers = #tpu.dot_dimension_numbers<[1], [0], [0], [1], [0, 0, 1, 1], [], []>} : vector<8x8xbf16>, vector<8x16xbf16>, vector<8x16xf32> -> vector<8x16xf32>
    %56 = vector.extract_strided_slice %23 {offsets = [0, 32], sizes = [8, 16], strides = [1, 1]} : vector<8x64xbf16> to vector<8x16xbf16>
    %57 = vector.extract_strided_slice %24 {offsets = [0, 32], sizes = [8, 16], strides = [1, 1]} : vector<8x64xbf16> to vector<8x16xbf16>
    %58 = vector.extract_strided_slice %25 {offsets = [0, 32], sizes = [8, 16], strides = [1, 1]} : vector<8x64xbf16> to vector<8x16xbf16>
    %cst_28 = arith.constant dense<0.000000e+00> : vector<8x8xf32>
    %59 = tpu.matmul %56, %57, %cst_28 {dimension_numbers = #tpu.dot_dimension_numbers<[1], [1], [0], [0], [0, 0, 1, 0], [], []>} : vector<8x16xbf16>, vector<8x16xbf16>, vector<8x8xf32> -> vector<8x8xf32>
    %cst_29 = arith.constant dense<0xFF800000> : vector<8xf32>
    %60 = vector.multi_reduction <maximumf>, %59, %cst_29 [1] : vector<8x8xf32> to vector<8xf32>
    %61 = vector.shape_cast %60 : vector<8xf32> to vector<8x1xf32>
    %62 = vector.broadcast %61 : vector<8x1xf32> to vector<8x8xf32>
    %63 = arith.subf %59, %62 : vector<8x8xf32>
    %64 = math.exp %63 : vector<8x8xf32>
    %cst_30 = arith.constant dense<0.000000e+00> : vector<8xf32>
    %65 = vector.multi_reduction <add>, %64, %cst_30 [1] : vector<8x8xf32> to vector<8xf32>
    %66 = vector.shape_cast %65 : vector<8xf32> to vector<8x1xf32>
    %67 = vector.broadcast %66 : vector<8x1xf32> to vector<8x8xf32>
    %68 = arith.divf %64, %67 : vector<8x8xf32>
    %69 = arith.truncf %68 : vector<8x8xf32> to vector<8x8xbf16>
    %cst_31 = arith.constant dense<0.000000e+00> : vector<8x16xf32>
    %70 = tpu.matmul %69, %58, %cst_31 {dimension_numbers = #tpu.dot_dimension_numbers<[1], [0], [0], [1], [0, 0, 1, 1], [], []>} : vector<8x8xbf16>, vector<8x16xbf16>, vector<8x16xf32> -> vector<8x16xf32>
    %71 = vector.extract_strided_slice %23 {offsets = [0, 48], sizes = [8, 16], strides = [1, 1]} : vector<8x64xbf16> to vector<8x16xbf16>
    %72 = vector.extract_strided_slice %24 {offsets = [0, 48], sizes = [8, 16], strides = [1, 1]} : vector<8x64xbf16> to vector<8x16xbf16>
    %73 = vector.extract_strided_slice %25 {offsets = [0, 48], sizes = [8, 16], strides = [1, 1]} : vector<8x64xbf16> to vector<8x16xbf16>
    %cst_32 = arith.constant dense<0.000000e+00> : vector<8x8xf32>
    %74 = tpu.matmul %71, %72, %cst_32 {dimension_numbers = #tpu.dot_dimension_numbers<[1], [1], [0], [0], [0, 0, 1, 0], [], []>} : vector<8x16xbf16>, vector<8x16xbf16>, vector<8x8xf32> -> vector<8x8xf32>
    %cst_33 = arith.constant dense<0xFF800000> : vector<8xf32>
    %75 = vector.multi_reduction <maximumf>, %74, %cst_33 [1] : vector<8x8xf32> to vector<8xf32>
    %76 = vector.shape_cast %75 : vector<8xf32> to vector<8x1xf32>
    %77 = vector.broadcast %76 : vector<8x1xf32> to vector<8x8xf32>
    %78 = arith.subf %74, %77 : vector<8x8xf32>
    %79 = math.exp %78 : vector<8x8xf32>
    %cst_34 = arith.constant dense<0.000000e+00> : vector<8xf32>
    %80 = vector.multi_reduction <add>, %79, %cst_34 [1] : vector<8x8xf32> to vector<8xf32>
    %81 = vector.shape_cast %80 : vector<8xf32> to vector<8x1xf32>
    %82 = vector.broadcast %81 : vector<8x1xf32> to vector<8x8xf32>
    %83 = arith.divf %79, %82 : vector<8x8xf32>
    %84 = arith.truncf %83 : vector<8x8xf32> to vector<8x8xbf16>
    %cst_35 = arith.constant dense<0.000000e+00> : vector<8x16xf32>
    %85 = tpu.matmul %84, %73, %cst_35 {dimension_numbers = #tpu.dot_dimension_numbers<[1], [0], [0], [1], [0, 0, 1, 1], [], []>} : vector<8x8xbf16>, vector<8x16xbf16>, vector<8x16xf32> -> vector<8x16xf32>
    %86 = tpu.concatenate %40, %55, %70, %85 in 1 : vector<8x16xf32>, vector<8x16xf32>, vector<8x16xf32>, vector<8x16xf32> -> vector<8x64xf32>
    %87 = arith.truncf %86 : vector<8x64xf32> to vector<8x64xbf16>
    %c0_36 = arith.constant 0 : index
    %c0_37 = arith.constant 0 : index
    %88 = vector.load %arg9[%c0_36, %c0_37] : memref<64x64xbf16, #tpu.memory_space<vmem>>, vector<64x64xbf16>
    %cst_38 = arith.constant dense<0.000000e+00> : vector<8x64xf32>
    %89 = tpu.matmul %87, %88, %cst_38 {dimension_numbers = #tpu.dot_dimension_numbers<[1], [0], [0], [1], [0, 0, 1, 1], [], []>} : vector<8x64xbf16>, vector<64x64xbf16>, vector<8x64xf32> -> vector<8x64xf32>
    %c0_39 = arith.constant 0 : index
    %c0_40 = arith.constant 0 : index
    %90 = vector.load %arg10[%c0_39, %c0_40] : memref<1x64xf32, #tpu.memory_space<vmem>>, vector<1x64xf32>
    %91 = vector.broadcast %90 : vector<1x64xf32> to vector<8x64xf32>
    %92 = arith.addf %89, %91 : vector<8x64xf32>
    %93 = tpu.concatenate %38, %53, %68, %83 in 1 : vector<8x8xf32>, vector<8x8xf32>, vector<8x8xf32>, vector<8x8xf32> -> vector<8x32xf32>
    %c0_41 = arith.constant 0 : index
    %c0_42 = arith.constant 0 : index
    %c0_43 = arith.constant 0 : index
    %94 = vector.load %arg14[%c0_41, %c0_42, %c0_43] : memref<1x8x32xf32, #tpu.memory_space<vmem>>, vector<1x8x32xf32>
    %95 = vector.shape_cast %94 : vector<1x8x32xf32> to vector<8x32xf32>
    %96 = vector.shape_cast %93 : vector<8x32xf32> to vector<1x8x32xf32>
    tpu.vector_store %arg14[%c0_41, %c0_42, %c0_43], %96 {strides = array<i32>} : memref<1x8x32xf32, #tpu.memory_space<vmem>>, vector<1x8x32xf32>,
    %97 = arith.addf %1, %92 : vector<8x64xf32>
    %cst_44 = arith.constant dense<0.000000e+00> : vector<8xf32>
    %98 = vector.multi_reduction <add>, %97, %cst_44 [1] : vector<8x64xf32> to vector<8xf32>
    %99 = vector.shape_cast %98 : vector<8xf32> to vector<8x1xf32>
    %cst_45 = arith.constant 6.400000e+01 : f32
    %100 = vector.broadcast %cst_45 : f32 to vector<8x1xf32>
    %101 = arith.divf %99, %100 : vector<8x1xf32>
    %102 = vector.broadcast %101 : vector<8x1xf32> to vector<8x64xf32>
    %103 = arith.subf %97, %102 : vector<8x64xf32>
    %104 = arith.mulf %103, %103 : vector<8x64xf32>
    %cst_46 = arith.constant dense<0.000000e+00> : vector<8xf32>
    %105 = vector.multi_reduction <add>, %104, %cst_46 [1] : vector<8x64xf32> to vector<8xf32>
    %106 = vector.shape_cast %105 : vector<8xf32> to vector<8x1xf32>
    %cst_47 = arith.constant 6.400000e+01 : f32
    %107 = vector.broadcast %cst_47 : f32 to vector<8x1xf32>
    %108 = arith.divf %106, %107 : vector<8x1xf32>
    %cst_48 = arith.constant 9.99999974E-6 : f32
    %109 = vector.broadcast %cst_48 : f32 to vector<8x1xf32>
    %110 = arith.addf %108, %109 : vector<8x1xf32>
    %111 = math.rsqrt %110 : vector<8x1xf32>
    %112 = vector.broadcast %111 : vector<8x1xf32> to vector<8x64xf32>
    %113 = arith.mulf %103, %112 : vector<8x64xf32>
    %c0_49 = arith.constant 0 : index
    %c0_50 = arith.constant 0 : index
    %114 = vector.load %arg11[%c0_49, %c0_50] : memref<1x64xf32, #tpu.memory_space<vmem>>, vector<1x64xf32>
    %115 = vector.broadcast %114 : vector<1x64xf32> to vector<8x64xf32>
    %116 = arith.mulf %113, %115 : vector<8x64xf32>
    %c0_51 = arith.constant 0 : index
    %c0_52 = arith.constant 0 : index
    %117 = vector.load %arg12[%c0_51, %c0_52] : memref<1x64xf32, #tpu.memory_space<vmem>>, vector<1x64xf32>
    %118 = vector.broadcast %117 : vector<1x64xf32> to vector<8x64xf32>
    %119 = arith.addf %116, %118 : vector<8x64xf32>
    %c0_53 = arith.constant 0 : index
    %c0_54 = arith.constant 0 : index
    %c0_55 = arith.constant 0 : index
    %120 = vector.load %arg13[%c0_53, %c0_54, %c0_55] : memref<1x8x64xf32, #tpu.memory_space<vmem>>, vector<1x8x64xf32>
    %121 = vector.shape_cast %120 : vector<1x8x64xf32> to vector<8x64xf32>
    %122 = vector.shape_cast %119 : vector<8x64xf32> to vector<1x8x64xf32>
    tpu.vector_store %arg13[%c0_53, %c0_54, %c0_55], %122 {strides = array<i32>} : memref<1x8x64xf32, #tpu.memory_space<vmem>>, vector<1x8x64xf32>,
    return
  }
  func.func @transform_0(%arg0: i32) -> (i32, i32, i32) {
    %c0_i32 = arith.constant 0 : i32
    %c0_i32_0 = arith.constant 0 : i32
    %c0_i32_1 = arith.constant 0 : i32
    return %arg0, %c0_i32, %c0_i32_0 : i32, i32, i32
  }
  func.func @transform_1(%arg0: i32) -> (i32, i32, i32) {
    %c0_i32 = arith.constant 0 : i32
    %c0_i32_0 = arith.constant 0 : i32
    %c0_i32_1 = arith.constant 0 : i32
    return %arg0, %c0_i32, %c0_i32_0 : i32, i32, i32
  }
  func.func @transform_2(%arg0: i32) -> (i32, i32) {
    %c0_i32 = arith.constant 0 : i32
    %c0_i32_0 = arith.constant 0 : i32
    %c0_i32_1 = arith.constant 0 : i32
    return %c0_i32, %c0_i32_0 : i32, i32
  }
  func.func @transform_3(%arg0: i32) -> (i32, i32) {
    %c0_i32 = arith.constant 0 : i32
    %c0_i32_0 = arith.constant 0 : i32
    %c0_i32_1 = arith.constant 0 : i32
    return %c0_i32, %c0_i32_0 : i32, i32
  }
  func.func @transform_4(%arg0: i32) -> (i32, i32) {
    %c0_i32 = arith.constant 0 : i32
    %c0_i32_0 = arith.constant 0 : i32
    %c0_i32_1 = arith.constant 0 : i32
    return %c0_i32, %c0_i32_0 : i32, i32
  }
  func.func @transform_5(%arg0: i32) -> (i32, i32) {
    %c0_i32 = arith.constant 0 : i32
    %c0_i32_0 = arith.constant 0 : i32
    %c0_i32_1 = arith.constant 0 : i32
    return %c0_i32, %c0_i32_0 : i32, i32
  }
  func.func @transform_6(%arg0: i32) -> (i32, i32) {
    %c0_i32 = arith.constant 0 : i32
    %c0_i32_0 = arith.constant 0 : i32
    %c0_i32_1 = arith.constant 0 : i32
    return %c0_i32, %c0_i32_0 : i32, i32
  }
  func.func @transform_7(%arg0: i32) -> (i32, i32) {
    %c0_i32 = arith.constant 0 : i32
    %c0_i32_0 = arith.constant 0 : i32
    %c0_i32_1 = arith.constant 0 : i32
    return %c0_i32, %c0_i32_0 : i32, i32
  }
  func.func @transform_8(%arg0: i32) -> (i32, i32) {
    %c0_i32 = arith.constant 0 : i32
    %c0_i32_0 = arith.constant 0 : i32
    %c0_i32_1 = arith.constant 0 : i32
    return %c0_i32, %c0_i32_0 : i32, i32
  }
  func.func @transform_9(%arg0: i32) -> (i32, i32) {
    %c0_i32 = arith.constant 0 : i32
    %c0_i32_0 = arith.constant 0 : i32
    %c0_i32_1 = arith.constant 0 : i32
    return %c0_i32, %c0_i32_0 : i32, i32
  }
  func.func @transform_10(%arg0: i32) -> (i32, i32) {
    %c0_i32 = arith.constant 0 : i32
    %c0_i32_0 = arith.constant 0 : i32
    %c0_i32_1 = arith.constant 0 : i32
    return %c0_i32, %c0_i32_0 : i32, i32
  }
  func.func @transform_11(%arg0: i32) -> (i32, i32) {
    %c0_i32 = arith.constant 0 : i32
    %c0_i32_0 = arith.constant 0 : i32
    %c0_i32_1 = arith.constant 0 : i32
    return %c0_i32, %c0_i32_0 : i32, i32
  }
  func.func @transform_12(%arg0: i32) -> (i32, i32, i32) {
    %c0_i32 = arith.constant 0 : i32
    %c0_i32_0 = arith.constant 0 : i32
    %c0_i32_1 = arith.constant 0 : i32
    return %arg0, %c0_i32, %c0_i32_0 : i32, i32, i32
  }
  func.func @transform_13(%arg0: i32) -> (i32, i32, i32) {
    %c0_i32 = arith.constant 0 : i32
    %c0_i32_0 = arith.constant 0 : i32
    %c0_i32_1 = arith.constant 0 : i32
    return %arg0, %c0_i32, %c0_i32_0 : i32, i32, i32
  }
}

module attributes {stable_mosaic.version = 11 : i64} {
  func.func @_attn_sublayer_kernel(%arg0: i32, %arg1: memref<1x8x64xf32, #tpu.memory_space<vmem>>, %arg2: memref<1x8x64xf32, #tpu.memory_space<vmem>>, %arg3: memref<64x64xbf16, #tpu.memory_space<vmem>>, %arg4: memref<1x64xf32, #tpu.memory_space<vmem>>, %arg5: memref<64x64xbf16, #tpu.memory_space<vmem>>, %arg6: memref<1x64xf32, #tpu.memory_space<vmem>>, %arg7: memref<64x64xbf16, #tpu.memory_space<vmem>>, %arg8: memref<1x64xf32, #tpu.memory_space<vmem>>, %arg9: memref<64x64xbf16, #tpu.memory_space<vmem>>, %arg10: memref<1x64xf32, #tpu.memory_space<vmem>>, %arg11: memref<1x64xf32, #tpu.memory_space<vmem>>, %arg12: memref<1x64xf32, #tpu.memory_space<vmem>>, %arg13: memref<1x8x64xf32, #tpu.memory_space<vmem>>, %arg14: memref<1x8x32xf32, #tpu.memory_space<vmem>>) attributes {dimension_semantics = [#tpu.dimension_semantics<parallel>], iteration_bounds = array<i64: 2>, scalar_prefetch = 0 : i64, scratch_operands = 0 : i64, tpu.core_type = #tpu.core_type<tc>, window_params = [{transform_indices = @transform_0, window_bounds = array<i64: 1, 8, 64>}, {transform_indices = @transform_1, window_bounds = array<i64: 1, 8, 64>}, {pipeline_mode = #tpu.pipeline_mode<synchronous>, transform_indices = @transform_2, window_bounds = array<i64: 64, 64>}, {pipeline_mode = #tpu.pipeline_mode<synchronous>, transform_indices = @transform_3, window_bounds = array<i64: 1, 64>}, {pipeline_mode = #tpu.pipeline_mode<synchronous>, transform_indices = @transform_4, window_bounds = array<i64: 64, 64>}, {pipeline_mode = #tpu.pipeline_mode<synchronous>, transform_indices = @transform_5, window_bounds = array<i64: 1, 64>}, {pipeline_mode = #tpu.pipeline_mode<synchronous>, transform_indices = @transform_6, window_bounds = array<i64: 64, 64>}, {pipeline_mode = #tpu.pipeline_mode<synchronous>, transform_indices = @transform_7, window_bounds = array<i64: 1, 64>}, {pipeline_mode = #tpu.pipeline_mode<synchronous>, transform_indices = @transform_8, window_bounds = array<i64: 64, 64>}, {pipeline_mode = #tpu.pipeline_mode<synchronous>, transform_indices = @transform_9, window_bounds = array<i64: 1, 64>}, {pipeline_mode = #tpu.pipeline_mode<synchronous>, transform_indices = @transform_10, window_bounds = array<i64: 1, 64>}, {pipeline_mode = #tpu.pipeline_mode<synchronous>, transform_indices = @transform_11, window_bounds = array<i64: 1, 64>}, {transform_indices = @transform_12, window_bounds = array<i64: 1, 8, 64>}, {transform_indices = @transform_13, window_bounds = array<i64: 1, 8, 32>}]} {
    %c0 = arith.constant 0 : index
    %c0_0 = arith.constant 0 : index
    %c0_1 = arith.constant 0 : index
    %0 = vector.load %arg1[%c0, %c0_0, %c0_1] : memref<1x8x64xf32, #tpu.memory_space<vmem>>, vector<1x8x64xf32>
    %1 = vector.shape_cast %0 : vector<1x8x64xf32> to vector<8x64xf32>
    %c0_2 = arith.constant 0 : index
    %c0_3 = arith.constant 0 : index
    %c0_4 = arith.constant 0 : index
    %2 = vector.load %arg2[%c0_2, %c0_3, %c0_4] : memref<1x8x64xf32, #tpu.memory_space<vmem>>, vector<1x8x64xf32>
    %3 = vector.shape_cast %2 : vector<1x8x64xf32> to vector<8x64xf32>
    %4 = arith.truncf %1 : vector<8x64xf32> to vector<8x64xbf16>
    %5 = arith.truncf %3 : vector<8x64xf32> to vector<8x64xbf16>
    %c0_5 = arith.constant 0 : index
    %c0_6 = arith.constant 0 : index
    %6 = vector.load %arg3[%c0_5, %c0_6] : memref<64x64xbf16, #tpu.memory_space<vmem>>, vector<64x64xbf16>
    %cst = arith.constant dense<0.000000e+00> : vector<8x64xf32>
    %7 = tpu.matmul %4, %6, %cst {dimension_numbers = #tpu.dot_dimension_numbers<[1], [0], [0], [1], [0, 0, 1, 1], [], []>} : vector<8x64xbf16>, vector<64x64xbf16>, vector<8x64xf32> -> vector<8x64xf32>
    %c0_7 = arith.constant 0 : index
    %c0_8 = arith.constant 0 : index
    %8 = vector.load %arg4[%c0_7, %c0_8] : memref<1x64xf32, #tpu.memory_space<vmem>>, vector<1x64xf32>
    %9 = vector.broadcast %8 : vector<1x64xf32> to vector<8x64xf32>
    %10 = arith.addf %7, %9 : vector<8x64xf32>
    %cst_9 = arith.constant 2.500000e-01 : f32
    %11 = vector.broadcast %cst_9 : f32 to vector<8x64xf32>
    %12 = arith.mulf %10, %11 : vector<8x64xf32>
    %c0_10 = arith.constant 0 : index
    %c0_11 = arith.constant 0 : index
    %13 = vector.load %arg5[%c0_10, %c0_11] : memref<64x64xbf16, #tpu.memory_space<vmem>>, vector<64x64xbf16>
    %cst_12 = arith.constant dense<0.000000e+00> : vector<8x64xf32>
    %14 = tpu.matmul %5, %13, %cst_12 {dimension_numbers = #tpu.dot_dimension_numbers<[1], [0], [0], [1], [0, 0, 1, 1], [], []>} : vector<8x64xbf16>, vector<64x64xbf16>, vector<8x64xf32> -> vector<8x64xf32>
    %c0_13 = arith.constant 0 : index
    %c0_14 = arith.constant 0 : index
    %15 = vector.load %arg6[%c0_13, %c0_14] : memref<1x64xf32, #tpu.memory_space<vmem>>, vector<1x64xf32>
    %16 = vector.broadcast %15 : vector<1x64xf32> to vector<8x64xf32>
    %17 = arith.addf %14, %16 : vector<8x64xf32>
    %c0_15 = arith.constant 0 : index
    %c0_16 = arith.constant 0 : index
    %18 = vector.load %arg7[%c0_15, %c0_16] : memref<64x64xbf16, #tpu.memory_space<vmem>>, vector<64x64xbf16>
    %cst_17 = arith.constant dense<0.000000e+00> : vector<8x64xf32>
    %19 = tpu.matmul %5, %18, %cst_17 {dimension_numbers = #tpu.dot_dimension_numbers<[1], [0], [0], [1], [0, 0, 1, 1], [], []>} : vector<8x64xbf16>, vector<64x64xbf16>, vector<8x64xf32> -> vector<8x64xf32>
    %c0_18 = arith.constant 0 : index
    %c0_19 = arith.constant 0 : index
    %20 = vector.load %arg8[%c0_18, %c0_19] : memref<1x64xf32, #tpu.memory_space<vmem>>, vector<1x64xf32>
    %21 = vector.broadcast %20 : vector<1x64xf32> to vector<8x64xf32>
    %22 = arith.addf %19, %21 : vector<8x64xf32>
    %23 = arith.truncf %12 : vector<8x64xf32> to vector<8x64xbf16>
    %24 = arith.truncf %17 : vector<8x64xf32> to vector<8x64xbf16>
    %25 = arith.truncf %22 : vector<8x64xf32> to vector<8x64xbf16>
    %26 = tpu.iota {dimensions = array<i32: 0>} : vector<8x8xi32>
    %27 = tpu.iota {dimensions = array<i32: 1>} : vector<8x8xi32>
    %28 = arith.cmpi sle, %27, %26 : vector<8x8xi32>
    %cst_20 = arith.constant -1.000000e+09 : f32
    %29 = vector.broadcast %cst_20 : f32 to vector<8x8xf32>
    %30 = vector.extract_strided_slice %23 {offsets = [0, 0], sizes = [8, 16], strides = [1, 1]} : vector<8x64xbf16> to vector<8x16xbf16>
    %31 = vector.extract_strided_slice %24 {offsets = [0, 0], sizes = [8, 16], strides = [1, 1]} : vector<8x64xbf16> to vector<8x16xbf16>
    %32 = vector.extract_strided_slice %25 {offsets = [0, 0], sizes = [8, 16], strides = [1, 1]} : vector<8x64xbf16> to vector<8x16xbf16>
    %cst_21 = arith.constant dense<0.000000e+00> : vector<8x8xf32>
    %33 = tpu.matmul %30, %31, %cst_21 {dimension_numbers = #tpu.dot_dimension_numbers<[1], [1], [0], [0], [0, 0, 1, 0], [], []>} : vector<8x16xbf16>, vector<8x16xbf16>, vector<8x8xf32> -> vector<8x8xf32>
    %34 = arith.select %28, %33, %29 : vector<8x8xi1>, vector<8x8xf32>
    %cst_22 = arith.constant dense<0xFF800000> : vector<8xf32>
    %35 = vector.multi_reduction <maximumf>, %34, %cst_22 [1] : vector<8x8xf32> to vector<8xf32>
    %36 = vector.shape_cast %35 : vector<8xf32> to vector<8x1xf32>
    %37 = vector.broadcast %36 : vector<8x1xf32> to vector<8x8xf32>
    %38 = arith.subf %34, %37 : vector<8x8xf32>
    %39 = math.exp %38 : vector<8x8xf32>
    %cst_23 = arith.constant dense<0.000000e+00> : vector<8xf32>
    %40 = vector.multi_reduction <add>, %39, %cst_23 [1] : vector<8x8xf32> to vector<8xf32>
    %41 = vector.shape_cast %40 : vector<8xf32> to vector<8x1xf32>
    %42 = vector.broadcast %41 : vector<8x1xf32> to vector<8x8xf32>
    %43 = arith.divf %39, %42 : vector<8x8xf32>
    %44 = arith.truncf %43 : vector<8x8xf32> to vector<8x8xbf16>
    %cst_24 = arith.constant dense<0.000000e+00> : vector<8x16xf32>
    %45 = tpu.matmul %44, %32, %cst_24 {dimension_numbers = #tpu.dot_dimension_numbers<[1], [0], [0], [1], [0, 0, 1, 1], [], []>} : vector<8x8xbf16>, vector<8x16xbf16>, vector<8x16xf32> -> vector<8x16xf32>
    %46 = vector.extract_strided_slice %23 {offsets = [0, 16], sizes = [8, 16], strides = [1, 1]} : vector<8x64xbf16> to vector<8x16xbf16>
    %47 = vector.extract_strided_slice %24 {offsets = [0, 16], sizes = [8, 16], strides = [1, 1]} : vector<8x64xbf16> to vector<8x16xbf16>
    %48 = vector.extract_strided_slice %25 {offsets = [0, 16], sizes = [8, 16], strides = [1, 1]} : vector<8x64xbf16> to vector<8x16xbf16>
    %cst_25 = arith.constant dense<0.000000e+00> : vector<8x8xf32>
    %49 = tpu.matmul %46, %47, %cst_25 {dimension_numbers = #tpu.dot_dimension_numbers<[1], [1], [0], [0], [0, 0, 1, 0], [], []>} : vector<8x16xbf16>, vector<8x16xbf16>, vector<8x8xf32> -> vector<8x8xf32>
    %50 = arith.select %28, %49, %29 : vector<8x8xi1>, vector<8x8xf32>
    %cst_26 = arith.constant dense<0xFF800000> : vector<8xf32>
    %51 = vector.multi_reduction <maximumf>, %50, %cst_26 [1] : vector<8x8xf32> to vector<8xf32>
    %52 = vector.shape_cast %51 : vector<8xf32> to vector<8x1xf32>
    %53 = vector.broadcast %52 : vector<8x1xf32> to vector<8x8xf32>
    %54 = arith.subf %50, %53 : vector<8x8xf32>
    %55 = math.exp %54 : vector<8x8xf32>
    %cst_27 = arith.constant dense<0.000000e+00> : vector<8xf32>
    %56 = vector.multi_reduction <add>, %55, %cst_27 [1] : vector<8x8xf32> to vector<8xf32>
    %57 = vector.shape_cast %56 : vector<8xf32> to vector<8x1xf32>
    %58 = vector.broadcast %57 : vector<8x1xf32> to vector<8x8xf32>
    %59 = arith.divf %55, %58 : vector<8x8xf32>
    %60 = arith.truncf %59 : vector<8x8xf32> to vector<8x8xbf16>
    %cst_28 = arith.constant dense<0.000000e+00> : vector<8x16xf32>
    %61 = tpu.matmul %60, %48, %cst_28 {dimension_numbers = #tpu.dot_dimension_numbers<[1], [0], [0], [1], [0, 0, 1, 1], [], []>} : vector<8x8xbf16>, vector<8x16xbf16>, vector<8x16xf32> -> vector<8x16xf32>
    %62 = vector.extract_strided_slice %23 {offsets = [0, 32], sizes = [8, 16], strides = [1, 1]} : vector<8x64xbf16> to vector<8x16xbf16>
    %63 = vector.extract_strided_slice %24 {offsets = [0, 32], sizes = [8, 16], strides = [1, 1]} : vector<8x64xbf16> to vector<8x16xbf16>
    %64 = vector.extract_strided_slice %25 {offsets = [0, 32], sizes = [8, 16], strides = [1, 1]} : vector<8x64xbf16> to vector<8x16xbf16>
    %cst_29 = arith.constant dense<0.000000e+00> : vector<8x8xf32>
    %65 = tpu.matmul %62, %63, %cst_29 {dimension_numbers = #tpu.dot_dimension_numbers<[1], [1], [0], [0], [0, 0, 1, 0], [], []>} : vector<8x16xbf16>, vector<8x16xbf16>, vector<8x8xf32> -> vector<8x8xf32>
    %66 = arith.select %28, %65, %29 : vector<8x8xi1>, vector<8x8xf32>
    %cst_30 = arith.constant dense<0xFF800000> : vector<8xf32>
    %67 = vector.multi_reduction <maximumf>, %66, %cst_30 [1] : vector<8x8xf32> to vector<8xf32>
    %68 = vector.shape_cast %67 : vector<8xf32> to vector<8x1xf32>
    %69 = vector.broadcast %68 : vector<8x1xf32> to vector<8x8xf32>
    %70 = arith.subf %66, %69 : vector<8x8xf32>
    %71 = math.exp %70 : vector<8x8xf32>
    %cst_31 = arith.constant dense<0.000000e+00> : vector<8xf32>
    %72 = vector.multi_reduction <add>, %71, %cst_31 [1] : vector<8x8xf32> to vector<8xf32>
    %73 = vector.shape_cast %72 : vector<8xf32> to vector<8x1xf32>
    %74 = vector.broadcast %73 : vector<8x1xf32> to vector<8x8xf32>
    %75 = arith.divf %71, %74 : vector<8x8xf32>
    %76 = arith.truncf %75 : vector<8x8xf32> to vector<8x8xbf16>
    %cst_32 = arith.constant dense<0.000000e+00> : vector<8x16xf32>
    %77 = tpu.matmul %76, %64, %cst_32 {dimension_numbers = #tpu.dot_dimension_numbers<[1], [0], [0], [1], [0, 0, 1, 1], [], []>} : vector<8x8xbf16>, vector<8x16xbf16>, vector<8x16xf32> -> vector<8x16xf32>
    %78 = vector.extract_strided_slice %23 {offsets = [0, 48], sizes = [8, 16], strides = [1, 1]} : vector<8x64xbf16> to vector<8x16xbf16>
    %79 = vector.extract_strided_slice %24 {offsets = [0, 48], sizes = [8, 16], strides = [1, 1]} : vector<8x64xbf16> to vector<8x16xbf16>
    %80 = vector.extract_strided_slice %25 {offsets = [0, 48], sizes = [8, 16], strides = [1, 1]} : vector<8x64xbf16> to vector<8x16xbf16>
    %cst_33 = arith.constant dense<0.000000e+00> : vector<8x8xf32>
    %81 = tpu.matmul %78, %79, %cst_33 {dimension_numbers = #tpu.dot_dimension_numbers<[1], [1], [0], [0], [0, 0, 1, 0], [], []>} : vector<8x16xbf16>, vector<8x16xbf16>, vector<8x8xf32> -> vector<8x8xf32>
    %82 = arith.select %28, %81, %29 : vector<8x8xi1>, vector<8x8xf32>
    %cst_34 = arith.constant dense<0xFF800000> : vector<8xf32>
    %83 = vector.multi_reduction <maximumf>, %82, %cst_34 [1] : vector<8x8xf32> to vector<8xf32>
    %84 = vector.shape_cast %83 : vector<8xf32> to vector<8x1xf32>
    %85 = vector.broadcast %84 : vector<8x1xf32> to vector<8x8xf32>
    %86 = arith.subf %82, %85 : vector<8x8xf32>
    %87 = math.exp %86 : vector<8x8xf32>
    %cst_35 = arith.constant dense<0.000000e+00> : vector<8xf32>
    %88 = vector.multi_reduction <add>, %87, %cst_35 [1] : vector<8x8xf32> to vector<8xf32>
    %89 = vector.shape_cast %88 : vector<8xf32> to vector<8x1xf32>
    %90 = vector.broadcast %89 : vector<8x1xf32> to vector<8x8xf32>
    %91 = arith.divf %87, %90 : vector<8x8xf32>
    %92 = arith.truncf %91 : vector<8x8xf32> to vector<8x8xbf16>
    %cst_36 = arith.constant dense<0.000000e+00> : vector<8x16xf32>
    %93 = tpu.matmul %92, %80, %cst_36 {dimension_numbers = #tpu.dot_dimension_numbers<[1], [0], [0], [1], [0, 0, 1, 1], [], []>} : vector<8x8xbf16>, vector<8x16xbf16>, vector<8x16xf32> -> vector<8x16xf32>
    %94 = tpu.concatenate %45, %61, %77, %93 in 1 : vector<8x16xf32>, vector<8x16xf32>, vector<8x16xf32>, vector<8x16xf32> -> vector<8x64xf32>
    %95 = arith.truncf %94 : vector<8x64xf32> to vector<8x64xbf16>
    %c0_37 = arith.constant 0 : index
    %c0_38 = arith.constant 0 : index
    %96 = vector.load %arg9[%c0_37, %c0_38] : memref<64x64xbf16, #tpu.memory_space<vmem>>, vector<64x64xbf16>
    %cst_39 = arith.constant dense<0.000000e+00> : vector<8x64xf32>
    %97 = tpu.matmul %95, %96, %cst_39 {dimension_numbers = #tpu.dot_dimension_numbers<[1], [0], [0], [1], [0, 0, 1, 1], [], []>} : vector<8x64xbf16>, vector<64x64xbf16>, vector<8x64xf32> -> vector<8x64xf32>
    %c0_40 = arith.constant 0 : index
    %c0_41 = arith.constant 0 : index
    %98 = vector.load %arg10[%c0_40, %c0_41] : memref<1x64xf32, #tpu.memory_space<vmem>>, vector<1x64xf32>
    %99 = vector.broadcast %98 : vector<1x64xf32> to vector<8x64xf32>
    %100 = arith.addf %97, %99 : vector<8x64xf32>
    %101 = tpu.concatenate %43, %59, %75, %91 in 1 : vector<8x8xf32>, vector<8x8xf32>, vector<8x8xf32>, vector<8x8xf32> -> vector<8x32xf32>
    %c0_42 = arith.constant 0 : index
    %c0_43 = arith.constant 0 : index
    %c0_44 = arith.constant 0 : index
    %102 = vector.load %arg14[%c0_42, %c0_43, %c0_44] : memref<1x8x32xf32, #tpu.memory_space<vmem>>, vector<1x8x32xf32>
    %103 = vector.shape_cast %102 : vector<1x8x32xf32> to vector<8x32xf32>
    %104 = vector.shape_cast %101 : vector<8x32xf32> to vector<1x8x32xf32>
    tpu.vector_store %arg14[%c0_42, %c0_43, %c0_44], %104 {strides = array<i32>} : memref<1x8x32xf32, #tpu.memory_space<vmem>>, vector<1x8x32xf32>,
    %105 = arith.addf %1, %100 : vector<8x64xf32>
    %cst_45 = arith.constant dense<0.000000e+00> : vector<8xf32>
    %106 = vector.multi_reduction <add>, %105, %cst_45 [1] : vector<8x64xf32> to vector<8xf32>
    %107 = vector.shape_cast %106 : vector<8xf32> to vector<8x1xf32>
    %cst_46 = arith.constant 6.400000e+01 : f32
    %108 = vector.broadcast %cst_46 : f32 to vector<8x1xf32>
    %109 = arith.divf %107, %108 : vector<8x1xf32>
    %110 = vector.broadcast %109 : vector<8x1xf32> to vector<8x64xf32>
    %111 = arith.subf %105, %110 : vector<8x64xf32>
    %112 = arith.mulf %111, %111 : vector<8x64xf32>
    %cst_47 = arith.constant dense<0.000000e+00> : vector<8xf32>
    %113 = vector.multi_reduction <add>, %112, %cst_47 [1] : vector<8x64xf32> to vector<8xf32>
    %114 = vector.shape_cast %113 : vector<8xf32> to vector<8x1xf32>
    %cst_48 = arith.constant 6.400000e+01 : f32
    %115 = vector.broadcast %cst_48 : f32 to vector<8x1xf32>
    %116 = arith.divf %114, %115 : vector<8x1xf32>
    %cst_49 = arith.constant 9.99999974E-6 : f32
    %117 = vector.broadcast %cst_49 : f32 to vector<8x1xf32>
    %118 = arith.addf %116, %117 : vector<8x1xf32>
    %119 = math.rsqrt %118 : vector<8x1xf32>
    %120 = vector.broadcast %119 : vector<8x1xf32> to vector<8x64xf32>
    %121 = arith.mulf %111, %120 : vector<8x64xf32>
    %c0_50 = arith.constant 0 : index
    %c0_51 = arith.constant 0 : index
    %122 = vector.load %arg11[%c0_50, %c0_51] : memref<1x64xf32, #tpu.memory_space<vmem>>, vector<1x64xf32>
    %123 = vector.broadcast %122 : vector<1x64xf32> to vector<8x64xf32>
    %124 = arith.mulf %121, %123 : vector<8x64xf32>
    %c0_52 = arith.constant 0 : index
    %c0_53 = arith.constant 0 : index
    %125 = vector.load %arg12[%c0_52, %c0_53] : memref<1x64xf32, #tpu.memory_space<vmem>>, vector<1x64xf32>
    %126 = vector.broadcast %125 : vector<1x64xf32> to vector<8x64xf32>
    %127 = arith.addf %124, %126 : vector<8x64xf32>
    %c0_54 = arith.constant 0 : index
    %c0_55 = arith.constant 0 : index
    %c0_56 = arith.constant 0 : index
    %128 = vector.load %arg13[%c0_54, %c0_55, %c0_56] : memref<1x8x64xf32, #tpu.memory_space<vmem>>, vector<1x8x64xf32>
    %129 = vector.shape_cast %128 : vector<1x8x64xf32> to vector<8x64xf32>
    %130 = vector.shape_cast %127 : vector<8x64xf32> to vector<1x8x64xf32>
    tpu.vector_store %arg13[%c0_54, %c0_55, %c0_56], %130 {strides = array<i32>} : memref<1x8x64xf32, #tpu.memory_space<vmem>>, vector<1x8x64xf32>,
    return
  }
  func.func @transform_0(%arg0: i32) -> (i32, i32, i32) {
    %c0_i32 = arith.constant 0 : i32
    %c0_i32_0 = arith.constant 0 : i32
    %c0_i32_1 = arith.constant 0 : i32
    return %arg0, %c0_i32, %c0_i32_0 : i32, i32, i32
  }
  func.func @transform_1(%arg0: i32) -> (i32, i32, i32) {
    %c0_i32 = arith.constant 0 : i32
    %c0_i32_0 = arith.constant 0 : i32
    %c0_i32_1 = arith.constant 0 : i32
    return %arg0, %c0_i32, %c0_i32_0 : i32, i32, i32
  }
  func.func @transform_2(%arg0: i32) -> (i32, i32) {
    %c0_i32 = arith.constant 0 : i32
    %c0_i32_0 = arith.constant 0 : i32
    %c0_i32_1 = arith.constant 0 : i32
    return %c0_i32, %c0_i32_0 : i32, i32
  }
  func.func @transform_3(%arg0: i32) -> (i32, i32) {
    %c0_i32 = arith.constant 0 : i32
    %c0_i32_0 = arith.constant 0 : i32
    %c0_i32_1 = arith.constant 0 : i32
    return %c0_i32, %c0_i32_0 : i32, i32
  }
  func.func @transform_4(%arg0: i32) -> (i32, i32) {
    %c0_i32 = arith.constant 0 : i32
    %c0_i32_0 = arith.constant 0 : i32
    %c0_i32_1 = arith.constant 0 : i32
    return %c0_i32, %c0_i32_0 : i32, i32
  }
  func.func @transform_5(%arg0: i32) -> (i32, i32) {
    %c0_i32 = arith.constant 0 : i32
    %c0_i32_0 = arith.constant 0 : i32
    %c0_i32_1 = arith.constant 0 : i32
    return %c0_i32, %c0_i32_0 : i32, i32
  }
  func.func @transform_6(%arg0: i32) -> (i32, i32) {
    %c0_i32 = arith.constant 0 : i32
    %c0_i32_0 = arith.constant 0 : i32
    %c0_i32_1 = arith.constant 0 : i32
    return %c0_i32, %c0_i32_0 : i32, i32
  }
  func.func @transform_7(%arg0: i32) -> (i32, i32) {
    %c0_i32 = arith.constant 0 : i32
    %c0_i32_0 = arith.constant 0 : i32
    %c0_i32_1 = arith.constant 0 : i32
    return %c0_i32, %c0_i32_0 : i32, i32
  }
  func.func @transform_8(%arg0: i32) -> (i32, i32) {
    %c0_i32 = arith.constant 0 : i32
    %c0_i32_0 = arith.constant 0 : i32
    %c0_i32_1 = arith.constant 0 : i32
    return %c0_i32, %c0_i32_0 : i32, i32
  }
  func.func @transform_9(%arg0: i32) -> (i32, i32) {
    %c0_i32 = arith.constant 0 : i32
    %c0_i32_0 = arith.constant 0 : i32
    %c0_i32_1 = arith.constant 0 : i32
    return %c0_i32, %c0_i32_0 : i32, i32
  }
  func.func @transform_10(%arg0: i32) -> (i32, i32) {
    %c0_i32 = arith.constant 0 : i32
    %c0_i32_0 = arith.constant 0 : i32
    %c0_i32_1 = arith.constant 0 : i32
    return %c0_i32, %c0_i32_0 : i32, i32
  }
  func.func @transform_11(%arg0: i32) -> (i32, i32) {
    %c0_i32 = arith.constant 0 : i32
    %c0_i32_0 = arith.constant 0 : i32
    %c0_i32_1 = arith.constant 0 : i32
    return %c0_i32, %c0_i32_0 : i32, i32
  }
  func.func @transform_12(%arg0: i32) -> (i32, i32, i32) {
    %c0_i32 = arith.constant 0 : i32
    %c0_i32_0 = arith.constant 0 : i32
    %c0_i32_1 = arith.constant 0 : i32
    return %arg0, %c0_i32, %c0_i32_0 : i32, i32, i32
  }
  func.func @transform_13(%arg0: i32) -> (i32, i32, i32) {
    %c0_i32 = arith.constant 0 : i32
    %c0_i32_0 = arith.constant 0 : i32
    %c0_i32_1 = arith.constant 0 : i32
    return %arg0, %c0_i32, %c0_i32_0 : i32, i32, i32
  }
}

module attributes {stable_mosaic.version = 11 : i64} {
  func.func @_ffn_sublayer_kernel(%arg0: i32, %arg1: memref<8x64xf32, #tpu.memory_space<vmem>>, %arg2: memref<64x128xbf16, #tpu.memory_space<vmem>>, %arg3: memref<1x128xf32, #tpu.memory_space<vmem>>, %arg4: memref<128x64xbf16, #tpu.memory_space<vmem>>, %arg5: memref<1x64xf32, #tpu.memory_space<vmem>>, %arg6: memref<1x64xf32, #tpu.memory_space<vmem>>, %arg7: memref<1x64xf32, #tpu.memory_space<vmem>>, %arg8: memref<8x64xf32, #tpu.memory_space<vmem>>) attributes {dimension_semantics = [#tpu.dimension_semantics<parallel>], iteration_bounds = array<i64: 2>, scalar_prefetch = 0 : i64, scratch_operands = 0 : i64, tpu.core_type = #tpu.core_type<tc>, window_params = [{transform_indices = @transform_0, window_bounds = array<i64: 8, 64>}, {pipeline_mode = #tpu.pipeline_mode<synchronous>, transform_indices = @transform_1, window_bounds = array<i64: 64, 128>}, {pipeline_mode = #tpu.pipeline_mode<synchronous>, transform_indices = @transform_2, window_bounds = array<i64: 1, 128>}, {pipeline_mode = #tpu.pipeline_mode<synchronous>, transform_indices = @transform_3, window_bounds = array<i64: 128, 64>}, {pipeline_mode = #tpu.pipeline_mode<synchronous>, transform_indices = @transform_4, window_bounds = array<i64: 1, 64>}, {pipeline_mode = #tpu.pipeline_mode<synchronous>, transform_indices = @transform_5, window_bounds = array<i64: 1, 64>}, {pipeline_mode = #tpu.pipeline_mode<synchronous>, transform_indices = @transform_6, window_bounds = array<i64: 1, 64>}, {transform_indices = @transform_7, window_bounds = array<i64: 8, 64>}]} {
    %c0 = arith.constant 0 : index
    %c0_0 = arith.constant 0 : index
    %0 = vector.load %arg1[%c0, %c0_0] : memref<8x64xf32, #tpu.memory_space<vmem>>, vector<8x64xf32>
    %1 = arith.truncf %0 : vector<8x64xf32> to vector<8x64xbf16>
    %c0_1 = arith.constant 0 : index
    %c0_2 = arith.constant 0 : index
    %2 = vector.load %arg2[%c0_1, %c0_2] : memref<64x128xbf16, #tpu.memory_space<vmem>>, vector<64x128xbf16>
    %cst = arith.constant dense<0.000000e+00> : vector<8x128xf32>
    %3 = tpu.matmul %1, %2, %cst {dimension_numbers = #tpu.dot_dimension_numbers<[1], [0], [0], [1], [0, 0, 1, 1], [], []>} : vector<8x64xbf16>, vector<64x128xbf16>, vector<8x128xf32> -> vector<8x128xf32>
    %c0_3 = arith.constant 0 : index
    %c0_4 = arith.constant 0 : index
    %4 = vector.load %arg3[%c0_3, %c0_4] : memref<1x128xf32, #tpu.memory_space<vmem>>, vector<1x128xf32>
    %5 = vector.broadcast %4 : vector<1x128xf32> to vector<8x128xf32>
    %6 = arith.addf %3, %5 : vector<8x128xf32>
    %cst_5 = arith.constant 0.000000e+00 : f32
    %7 = vector.broadcast %cst_5 : f32 to vector<8x128xf32>
    %8 = arith.maximumf %6, %7 : vector<8x128xf32>
    %9 = arith.truncf %8 : vector<8x128xf32> to vector<8x128xbf16>
    %c0_6 = arith.constant 0 : index
    %c0_7 = arith.constant 0 : index
    %10 = vector.load %arg4[%c0_6, %c0_7] : memref<128x64xbf16, #tpu.memory_space<vmem>>, vector<128x64xbf16>
    %cst_8 = arith.constant dense<0.000000e+00> : vector<8x64xf32>
    %11 = tpu.matmul %9, %10, %cst_8 {dimension_numbers = #tpu.dot_dimension_numbers<[1], [0], [0], [1], [0, 0, 1, 1], [], []>} : vector<8x128xbf16>, vector<128x64xbf16>, vector<8x64xf32> -> vector<8x64xf32>
    %c0_9 = arith.constant 0 : index
    %c0_10 = arith.constant 0 : index
    %12 = vector.load %arg5[%c0_9, %c0_10] : memref<1x64xf32, #tpu.memory_space<vmem>>, vector<1x64xf32>
    %13 = vector.broadcast %12 : vector<1x64xf32> to vector<8x64xf32>
    %14 = arith.addf %11, %13 : vector<8x64xf32>
    %15 = arith.addf %0, %14 : vector<8x64xf32>
    %cst_11 = arith.constant dense<0.000000e+00> : vector<8xf32>
    %16 = vector.multi_reduction <add>, %15, %cst_11 [1] : vector<8x64xf32> to vector<8xf32>
    %17 = vector.shape_cast %16 : vector<8xf32> to vector<8x1xf32>
    %cst_12 = arith.constant 6.400000e+01 : f32
    %18 = vector.broadcast %cst_12 : f32 to vector<8x1xf32>
    %19 = arith.divf %17, %18 : vector<8x1xf32>
    %20 = vector.broadcast %19 : vector<8x1xf32> to vector<8x64xf32>
    %21 = arith.subf %15, %20 : vector<8x64xf32>
    %22 = arith.mulf %21, %21 : vector<8x64xf32>
    %cst_13 = arith.constant dense<0.000000e+00> : vector<8xf32>
    %23 = vector.multi_reduction <add>, %22, %cst_13 [1] : vector<8x64xf32> to vector<8xf32>
    %24 = vector.shape_cast %23 : vector<8xf32> to vector<8x1xf32>
    %cst_14 = arith.constant 6.400000e+01 : f32
    %25 = vector.broadcast %cst_14 : f32 to vector<8x1xf32>
    %26 = arith.divf %24, %25 : vector<8x1xf32>
    %cst_15 = arith.constant 9.99999974E-6 : f32
    %27 = vector.broadcast %cst_15 : f32 to vector<8x1xf32>
    %28 = arith.addf %26, %27 : vector<8x1xf32>
    %29 = math.rsqrt %28 : vector<8x1xf32>
    %30 = vector.broadcast %29 : vector<8x1xf32> to vector<8x64xf32>
    %31 = arith.mulf %21, %30 : vector<8x64xf32>
    %c0_16 = arith.constant 0 : index
    %c0_17 = arith.constant 0 : index
    %32 = vector.load %arg6[%c0_16, %c0_17] : memref<1x64xf32, #tpu.memory_space<vmem>>, vector<1x64xf32>
    %33 = vector.broadcast %32 : vector<1x64xf32> to vector<8x64xf32>
    %34 = arith.mulf %31, %33 : vector<8x64xf32>
    %c0_18 = arith.constant 0 : index
    %c0_19 = arith.constant 0 : index
    %35 = vector.load %arg7[%c0_18, %c0_19] : memref<1x64xf32, #tpu.memory_space<vmem>>, vector<1x64xf32>
    %36 = vector.broadcast %35 : vector<1x64xf32> to vector<8x64xf32>
    %37 = arith.addf %34, %36 : vector<8x64xf32>
    %c0_20 = arith.constant 0 : index
    %c0_21 = arith.constant 0 : index
    %38 = vector.load %arg8[%c0_20, %c0_21] : memref<8x64xf32, #tpu.memory_space<vmem>>, vector<8x64xf32>
    tpu.vector_store %arg8[%c0_20, %c0_21], %37 {strides = array<i32>} : memref<8x64xf32, #tpu.memory_space<vmem>>, vector<8x64xf32>,
    return
  }
  func.func @transform_0(%arg0: i32) -> (i32, i32) {
    %c0_i32 = arith.constant 0 : i32
    %c0_i32_0 = arith.constant 0 : i32
    return %arg0, %c0_i32 : i32, i32
  }
  func.func @transform_1(%arg0: i32) -> (i32, i32) {
    %c0_i32 = arith.constant 0 : i32
    %c0_i32_0 = arith.constant 0 : i32
    %c0_i32_1 = arith.constant 0 : i32
    return %c0_i32, %c0_i32_0 : i32, i32
  }
  func.func @transform_2(%arg0: i32) -> (i32, i32) {
    %c0_i32 = arith.constant 0 : i32
    %c0_i32_0 = arith.constant 0 : i32
    %c0_i32_1 = arith.constant 0 : i32
    return %c0_i32, %c0_i32_0 : i32, i32
  }
  func.func @transform_3(%arg0: i32) -> (i32, i32) {
    %c0_i32 = arith.constant 0 : i32
    %c0_i32_0 = arith.constant 0 : i32
    %c0_i32_1 = arith.constant 0 : i32
    return %c0_i32, %c0_i32_0 : i32, i32
  }
  func.func @transform_4(%arg0: i32) -> (i32, i32) {
    %c0_i32 = arith.constant 0 : i32
    %c0_i32_0 = arith.constant 0 : i32
    %c0_i32_1 = arith.constant 0 : i32
    return %c0_i32, %c0_i32_0 : i32, i32
  }
  func.func @transform_5(%arg0: i32) -> (i32, i32) {
    %c0_i32 = arith.constant 0 : i32
    %c0_i32_0 = arith.constant 0 : i32
    %c0_i32_1 = arith.constant 0 : i32
    return %c0_i32, %c0_i32_0 : i32, i32
  }
  func.func @transform_6(%arg0: i32) -> (i32, i32) {
    %c0_i32 = arith.constant 0 : i32
    %c0_i32_0 = arith.constant 0 : i32
    %c0_i32_1 = arith.constant 0 : i32
    return %c0_i32, %c0_i32_0 : i32, i32
  }
  func.func @transform_7(%arg0: i32) -> (i32, i32) {
    %c0_i32 = arith.constant 0 : i32
    %c0_i32_0 = arith.constant 0 : i32
    return %arg0, %c0_i32 : i32, i32
  }
}

module attributes {stable_mosaic.version = 11 : i64} {
  func.func @_linear_kernel(%arg0: i32, %arg1: i32, %arg2: i32, %arg3: memref<8x64xf32, #tpu.memory_space<vmem>>, %arg4: memref<64x32xbf16, #tpu.memory_space<vmem>>, %arg5: memref<1x32xf32, #tpu.memory_space<vmem>>, %arg6: memref<8x32xf32, #tpu.memory_space<vmem>>, %arg7: memref<8x32xf32, #tpu.memory_space<vmem>>) attributes {dimension_semantics = [#tpu.dimension_semantics<parallel>, #tpu.dimension_semantics<parallel>, #tpu.dimension_semantics<arbitrary>], iteration_bounds = array<i64: 2, 1, 1>, scalar_prefetch = 0 : i64, scratch_operands = 1 : i64, tpu.core_type = #tpu.core_type<tc>, window_params = [{transform_indices = @transform_0, window_bounds = array<i64: 8, 64>}, {transform_indices = @transform_1, window_bounds = array<i64: 64, 32>}, {transform_indices = @transform_2, window_bounds = array<i64: 1, 32>}, {transform_indices = @transform_3, window_bounds = array<i64: 8, 32>}]} {
    %c0_i32 = arith.constant 0 : i32
    %0 = arith.cmpi eq, %arg2, %c0_i32 : i32
    %1 = arith.extui %0 : i1 to i32
    %c0_i32_0 = arith.constant 0 : i32
    %2 = arith.cmpi ne, %1, %c0_i32_0 : i32
    scf.if %2 {
      %cst_10 = arith.constant 0.000000e+00 : f32
      %13 = vector.broadcast %cst_10 : f32 to vector<8x32xf32>
      %c0_11 = arith.constant 0 : index
      %c0_12 = arith.constant 0 : index
      %14 = vector.load %arg7[%c0_11, %c0_12] : memref<8x32xf32, #tpu.memory_space<vmem>>, vector<8x32xf32>
      tpu.vector_store %arg7[%c0_11, %c0_12], %13 {strides = array<i32>} : memref<8x32xf32, #tpu.memory_space<vmem>>, vector<8x32xf32>,
    } else {
    }
    %c0 = arith.constant 0 : index
    %c0_1 = arith.constant 0 : index
    %3 = vector.load %arg7[%c0, %c0_1] : memref<8x32xf32, #tpu.memory_space<vmem>>, vector<8x32xf32>
    %c0_2 = arith.constant 0 : index
    %c0_3 = arith.constant 0 : index
    %4 = vector.load %arg3[%c0_2, %c0_3] : memref<8x64xf32, #tpu.memory_space<vmem>>, vector<8x64xf32>
    %5 = arith.truncf %4 : vector<8x64xf32> to vector<8x64xbf16>
    %c0_4 = arith.constant 0 : index
    %c0_5 = arith.constant 0 : index
    %6 = vector.load %arg4[%c0_4, %c0_5] : memref<64x32xbf16, #tpu.memory_space<vmem>>, vector<64x32xbf16>
    %cst = arith.constant dense<0.000000e+00> : vector<8x32xf32>
    %7 = tpu.matmul %5, %6, %cst {dimension_numbers = #tpu.dot_dimension_numbers<[1], [0], [0], [1], [0, 0, 1, 1], [], []>} : vector<8x64xbf16>, vector<64x32xbf16>, vector<8x32xf32> -> vector<8x32xf32>
    %8 = arith.addf %3, %7 : vector<8x32xf32>
    %c0_6 = arith.constant 0 : index
    %c0_7 = arith.constant 0 : index
    %9 = vector.load %arg7[%c0_6, %c0_7] : memref<8x32xf32, #tpu.memory_space<vmem>>, vector<8x32xf32>
    tpu.vector_store %arg7[%c0_6, %c0_7], %8 {strides = array<i32>} : memref<8x32xf32, #tpu.memory_space<vmem>>, vector<8x32xf32>,
    %c0_i32_8 = arith.constant 0 : i32
    %10 = arith.cmpi eq, %arg2, %c0_i32_8 : i32
    %11 = arith.extui %10 : i1 to i32
    %c0_i32_9 = arith.constant 0 : i32
    %12 = arith.cmpi ne, %11, %c0_i32_9 : i32
    scf.if %12 {
      %c0_10 = arith.constant 0 : index
      %c0_11 = arith.constant 0 : index
      %13 = vector.load %arg7[%c0_10, %c0_11] : memref<8x32xf32, #tpu.memory_space<vmem>>, vector<8x32xf32>
      %c0_12 = arith.constant 0 : index
      %c0_13 = arith.constant 0 : index
      %14 = vector.load %arg5[%c0_12, %c0_13] : memref<1x32xf32, #tpu.memory_space<vmem>>, vector<1x32xf32>
      %15 = vector.broadcast %14 : vector<1x32xf32> to vector<8x32xf32>
      %16 = arith.addf %13, %15 : vector<8x32xf32>
      %c0_14 = arith.constant 0 : index
      %c0_15 = arith.constant 0 : index
      %17 = vector.load %arg6[%c0_14, %c0_15] : memref<8x32xf32, #tpu.memory_space<vmem>>, vector<8x32xf32>
      tpu.vector_store %arg6[%c0_14, %c0_15], %16 {strides = array<i32>} : memref<8x32xf32, #tpu.memory_space<vmem>>, vector<8x32xf32>,
    } else {
    }
    return
  }
  func.func @transform_0(%arg0: i32, %arg1: i32, %arg2: i32) -> (i32, i32) {
    %c0_i32 = arith.constant 0 : i32
    return %arg0, %arg2 : i32, i32
  }
  func.func @transform_1(%arg0: i32, %arg1: i32, %arg2: i32) -> (i32, i32) {
    %c0_i32 = arith.constant 0 : i32
    return %arg2, %arg1 : i32, i32
  }
  func.func @transform_2(%arg0: i32, %arg1: i32, %arg2: i32) -> (i32, i32) {
    %c0_i32 = arith.constant 0 : i32
    %c0_i32_0 = arith.constant 0 : i32
    return %c0_i32, %arg1 : i32, i32
  }
  func.func @transform_3(%arg0: i32, %arg1: i32, %arg2: i32) -> (i32, i32) {
    %c0_i32 = arith.constant 0 : i32
    return %arg0, %arg1 : i32, i32
  }
}

</mosaic_0001>

<llo_original>
// kernel: transformer_forward.21
$region0: #{transformer_forward.21}
  #allocation0 [shape = 'u32[]', space=smem, size = 0x4, offset = 0x4, fixed_abs, tag = 'smem constant byte address 0x4 - core index']
  #allocation1 [shape = 'u32[144,128]{1,0:T(1,128)}', space=vmem, size = 0x12000, scoped, tag = 'internal scratch']
  #allocation2 [shape = 'f32[8,32]{1,0:T(8,128)}', space=vmem, size = 0x1000, scoped, tag = 'scratch operand']
  %s0 = inlined_call_operand.vmem [shape: f32[16,64], index: 0, kind: input, shape index: {}]
  %s1 = inlined_call_operand.vmem [shape: bf16[64,32], index: 1, kind: input, shape index: {}]
  %s2 = inlined_call_operand.vmem [shape: f32[1,32], index: 2, kind: input, shape index: {}]
  %s3 = inlined_call_operand.hbm [shape: f32[16,32], index: 3, kind: output, shape index: {}]
  %s4 = sld [smem:[#allocation0]]
  $region53: #{transformer_forward.21} parent=0
    _
  %s6 = ssub.s32 1, %s4
  %s7 = scalar_select 0, %s6, %s4
  $region1: #{transformer_forward.21} parent=0
    #allocation3 [shape = 'u8[8192]{0}', space=vmem, size = 0x2000, scoped, tag = 'output window, operand 0']
    #allocation4 [shape = 's32[2]{0}', space=sflag, size = 0x8, scoped, tag = 'scoped memory for transformer_forward.21']
    %8 = vsyncpa [#allocation4], 0
    %s9 = scalar_lea.sflag [#allocation4], 1
    %10 = vsyncpa %s9, 0
    loop: start=0, step=1, limit=4
    $region2: #{transformer_forward.21} parent=1 // loop_pre_header
      _
    $region3: #{transformer_forward.21} parent=1 // loop_header
      %s12 = sphi 0, %s16
      %p13 = scmp.ge.s32.totalorder %s12, 4
      %s19 = sphi 0, %s38
      %s20 = sphi 0, %s34
      %s21 = sphi 0, %s30
      %s22 = sphi 0, %s19
      %s23 = sphi 0, %s20
      %s24 = sphi 0, %s21
      %s25 = sphi 0, %s22
      %s26 = sphi 0, %s23
      %s27 = sphi 0, %s24
      %s43 = sphi 0, %s45
      %s46 = sphi 0, %s43
      %s47 = sphi 0, %s46
      %s63 = sphi 0, %s47
      %s71 = sphi 0, %s73
      %s74 = sphi 0, %s71
      %s75 = sphi 0, %s74
      %s91 = sphi 0, %s75
      %s97 = sphi 0, %s99
      %s100 = sphi 0, %s97
      %s101 = sphi 0, %s100
      %s117 = sphi 0, %s101
      %s125 = sphi 0, %s127
      %s128 = sphi 0, %s125
      %s129 = sphi 0, %s128
      %s145 = sphi 0, %s129
    $region4: #{transformer_forward.21} parent=1 // loop_header_branch
      %15 = sbr.rel (%p13) target = $region8
    $region5: #{transformer_forward.21} parent=1 // loop_body
      %s17 = ssub.s32 %s12, 1
      %s18 = ssub.s32 %s12, 2
      %s28 = sadd.s32 1, %s21
      %p29 = scmp.ge.s32.totalorder %s28, 1
      %s30 = scalar_select %p29, 0, %s28
      %s31 = sadd.s32 1, %s20
      %s32 = scalar_select %p29, %s31, %s20
      %p33 = scmp.ge.s32.totalorder %s32, 1
      %s34 = scalar_select %p33, 0, %s32
      %s35 = sadd.s32 1, %s19
      %s36 = scalar_select %p33, %s35, %s19
      %p37 = scmp.ge.s32.totalorder %s36, 2
      %s38 = scalar_select %p37, 0, %s36
      %s39 = ssub.s32 %s19, %s38
      %s40 = ssub.s32 %s21, %s30
      %s41 = sor.u32 %s39, %s40
      %p42 = scmp.eq.s32.totalorder %s41, 0
      %s44 = sadd.s32 %s43, 1
      %s45 = scalar_select %p42, %s43, %s44
      %p48 = pneg %p42
      %p49 = scmp.eq.s32.totalorder %s12, 1
      %p50 = por %p48, %p49
      %p51 = scmp.ne.s32.totalorder %s43, %s46
      %p52 = scmp.eq.s32.totalorder %s12, 0
      %p53 = por %p51, %p52
      %p54 = scmp.ne.s32.totalorder %s43, %s46
      %p55 = scmp.eq.s32.totalorder %s17, 1
      %p56 = por %p54, %p55
      %p57 = scmp.ne.s32.totalorder %s46, %s47
      %p58 = scmp.eq.s32.totalorder %s17, 0
      %p59 = por %p57, %p58
      %p60 = scmp.ne.s32.totalorder %s46, %s47
      %p61 = scmp.eq.s32.totalorder %s18, 1
      %p62 = por %p60, %p61
      %p64 = scmp.ne.s32.totalorder %s47, %s63
      %p65 = scmp.eq.s32.totalorder %s18, 0
      %p66 = por %p64, %p65
      %s67 = ssub.s32 %s21, %s30
      %s68 = ssub.s32 %s20, %s34
      %s69 = sor.u32 %s67, %s68
      %p70 = scmp.eq.s32.totalorder %s69, 0
      %s72 = sadd.s32 %s71, 1
      %s73 = scalar_select %p70, %s71, %s72
      %p76 = pneg %p70
      %p77 = scmp.eq.s32.totalorder %s12, 1
      %p78 = por %p76, %p77
      %p79 = scmp.ne.s32.totalorder %s71, %s74
      %p80 = scmp.eq.s32.totalorder %s12, 0
      %p81 = por %p79, %p80
      %p82 = scmp.ne.s32.totalorder %s71, %s74
      %p83 = scmp.eq.s32.totalorder %s17, 1
      %p84 = por %p82, %p83
      %p85 = scmp.ne.s32.totalorder %s74, %s75
      %p86 = scmp.eq.s32.totalorder %s17, 0
      %p87 = por %p85, %p86
      %p88 = scmp.ne.s32.totalorder %s74, %s75
      %p89 = scmp.eq.s32.totalorder %s18, 1
      %p90 = por %p88, %p89
      %p92 = scmp.ne.s32.totalorder %s75, %s91
      %p93 = scmp.eq.s32.totalorder %s18, 0
      %p94 = por %p92, %p93
      %s95 = ssub.s32 %s20, %s34
      %p96 = scmp.eq.s32.totalorder %s95, 0
      %s98 = sadd.s32 %s97, 1
      %s99 = scalar_select %p96, %s97, %s98
      %p102 = pneg %p96
      %p103 = scmp.eq.s32.totalorder %s12, 1
      %p104 = por %p102, %p103
      %p105 = scmp.ne.s32.totalorder %s97, %s100
      %p106 = scmp.eq.s32.totalorder %s12, 0
      %p107 = por %p105, %p106
      %p108 = scmp.ne.s32.totalorder %s97, %s100
      %p109 = scmp.eq.s32.totalorder %s17, 1
      %p110 = por %p108, %p109
      %p111 = scmp.ne.s32.totalorder %s100, %s101
      %p112 = scmp.eq.s32.totalorder %s17, 0
      %p113 = por %p111, %p112
      %p114 = scmp.ne.s32.totalorder %s100, %s101
      %p115 = scmp.eq.s32.totalorder %s18, 1
      %p116 = por %p114, %p115
      %p118 = scmp.ne.s32.totalorder %s101, %s117
      %p119 = scmp.eq.s32.totalorder %s18, 0
      %p120 = por %p118, %p119
      %s121 = ssub.s32 %s19, %s38
      %s122 = ssub.s32 %s20, %s34
      %s123 = sor.u32 %s121, %s122
      %p124 = scmp.eq.s32.totalorder %s123, 0
      %s126 = sadd.s32 %s125, 1
      %s127 = scalar_select %p124, %s125, %s126
      %p130 = pneg %p124
      %p131 = scmp.eq.s32.totalorder %s12, 1
      %p132 = por %p130, %p131
      %p133 = scmp.ne.s32.totalorder %s125, %s128
      %p134 = scmp.eq.s32.totalorder %s12, 0
      %p135 = por %p133, %p134
      %p136 = scmp.ne.s32.totalorder %s125, %s128
      %p137 = scmp.eq.s32.totalorder %s17, 1
      %p138 = por %p136, %p137
      %p139 = scmp.ne.s32.totalorder %s128, %s129
      %p140 = scmp.eq.s32.totalorder %s17, 0
      %p141 = por %p139, %p140
      %p142 = scmp.ne.s32.totalorder %s128, %s129
      %p143 = scmp.eq.s32.totalorder %s18, 1
      %p144 = por %p142, %p143
      %p146 = scmp.ne.s32.totalorder %s129, %s145
      %p147 = scmp.eq.s32.totalorder %s18, 0
      %p148 = por %p146, %p147
      %p149 = scmp.le.s32.totalorder 1, %s12
      %p150 = scmp.lt.s32.totalorder %s12, 3
      %p151 = pnand %p149, %p150
      %p152 = pneg %p151
      // Predicated region
      $region9: #{transformer_forward.21} parent=5 // pred_check
        _
      $region10: #{transformer_forward.21} parent=5 // pred_check_branch
        %154 = sbr.rel (%p151) target = $region12
      $region11: #{transformer_forward.21} parent=5 // pred_region
        %s155 = ssub.s32 %s12, 1
        // Predicated region
        $region13: #{transformer_forward.21} parent=11 // pred_check
          %p156 = pneg %p87
        $region14: #{transformer_forward.21} parent=11 // pred_check_branch
          %158 = sbr.rel (%p156) target = $region16
        $region15: #{transformer_forward.21} parent=11 // pred_region
          %s159 = smul.u32 8, %s24
          %p160 = scmp.lt.s32.totalorder %s159, 7
          %s161 = scalar_select %p160, %s159, 7
          %p162 = scmp.lt.s32.totalorder %s23, 0
          %s163 = scalar_select %p162, %s23, 0
          %s164 = sadd.s32 %s163, %s161
          %s165 = smul.addr %s164, 4
          %s166 = scalar_lea.vmem %s1, %s165
          %s167 = smul.u32 8, %s24
        $region16: #{transformer_forward.21} parent=11 // pred_fallthru
          _
        // Predicated region
        $region17: #{transformer_forward.21} parent=11 // pred_check
          %p168 = pneg %p113
        $region18: #{transformer_forward.21} parent=11 // pred_check_branch
          %170 = sbr.rel (%p168) target = $region20
        $region19: #{transformer_forward.21} parent=11 // pred_region
          %p171 = scmp.lt.s32.totalorder %s23, 0
          %s172 = scalar_select %p171, %s23, 0
          %s173 = scalar_lea.vmem %s2, %s172
        $region20: #{transformer_forward.21} parent=11 // pred_fallthru
          _
      $region12: #{transformer_forward.21} parent=5 // pred_fallthru
        _
      %p174 = scmp.lt.s32.totalorder %s12, 2
      // Predicated region
      $region21: #{transformer_forward.21} parent=5 // pred_check
        %p175 = pneg %p174
      $region22: #{transformer_forward.21} parent=5 // pred_check_branch
        %177 = sbr.rel (%p175) target = $region24
      $region23: #{transformer_forward.21} parent=5 // pred_region
        // Predicated region
        $region25: #{transformer_forward.21} parent=23 // pred_check
          %p178 = pneg %p53
        $region26: #{transformer_forward.21} parent=23 // pred_check_branch
          %180 = sbr.rel (%p178) target = $region28
        $region27: #{transformer_forward.21} parent=23 // pred_region
          %p181 = scmp.lt.s32.totalorder %s19, 1
          %s182 = scalar_select %p181, %s19, 1
          %p183 = scmp.lt.s32.totalorder %s21, 0
          %s184 = scalar_select %p183, %s21, 0
          %s185 = sadd.s32 %s184, %s182
          %s186 = smul.addr %s185, 8
          %s187 = scalar_lea.vmem %s0, %s186
        $region28: #{transformer_forward.21} parent=23 // pred_fallthru
          _
      $region24: #{transformer_forward.21} parent=5 // pred_fallthru
        _
      %p188 = scmp.le.s32.totalorder 1, %s12
      %p189 = scmp.lt.s32.totalorder %s12, 3
      %p190 = pnand %p188, %p189
      %p191 = pneg %p190
      // Predicated region
      $region29: #{transformer_forward.21} parent=5 // pred_check
        _
      $region30: #{transformer_forward.21} parent=5 // pred_check_branch
        %193 = sbr.rel (%p190) target = $region32
      $region31: #{transformer_forward.21} parent=5 // pred_region
        %s194 = ssub.s32 %s12, 1
        %p195 = scmp.lt.s32.totalorder %s22, 1
        %s196 = scalar_select %p195, %s22, 1
        %p197 = scmp.lt.s32.totalorder %s24, 0
        %s198 = scalar_select %p197, %s24, 0
        %s199 = sadd.s32 %s198, %s196
        %s200 = smul.addr %s199, 8
        %s201 = scalar_lea.vmem %s0, %s200
        %p202 = pneg %p59
        %p203 = pneg %p56
        %s204 = smul.u32 8, %s24
        %p205 = scmp.lt.s32.totalorder %s204, 7
        %s206 = scalar_select %p205, %s204, 7
        %p207 = scmp.lt.s32.totalorder %s23, 0
        %s208 = scalar_select %p207, %s23, 0
        %s209 = sadd.s32 %s208, %s206
        %s210 = smul.addr %s209, 4
        %s211 = scalar_lea.vmem %s1, %s210
        %p212 = pneg %p87
        %p213 = pneg %p84
        %p214 = scmp.lt.s32.totalorder %s23, 0
        %s215 = scalar_select %p214, %s23, 0
        %s216 = scalar_lea.vmem %s2, %s215
        %p217 = pneg %p113
        %p218 = pneg %p110
        %p219 = pneg %p141
        %p220 = pneg %p138
        %s221 = sand.u32 %s128, 1
        %s222 = scalar_lea.sflag [#allocation4], %s221
        %s223 = sand.u32 %s128, 1
        %s224 = smul.addr %s223, 8
        %s225 = scalar_lea.vmem [#allocation3], %s224
        %p226 = scmp.lt.s32.totalorder %s22, 1
        %s227 = scalar_select %p226, %s22, 1
        %p228 = scmp.lt.s32.totalorder %s24, 0
        %s229 = scalar_select %p228, %s24, 0
        %s230 = sadd.s32 %s229, %s227
        %s231 = smul.addr %s230, 8
        %s232 = scalar_lea.vmem %s0, %s231
        %s233 = smul.u32 8, %s24
        %p234 = scmp.lt.s32.totalorder %s233, 7
        %s235 = scalar_select %p234, %s233, 7
        %p236 = scmp.lt.s32.totalorder %s23, 0
        %s237 = scalar_select %p236, %s23, 0
        %s238 = sadd.s32 %s237, %s235
        %s239 = smul.addr %s238, 4
        %s240 = scalar_lea.vmem %s1, %s239
        %s241 = smul.u32 8, %s24
        %p242 = scmp.lt.s32.totalorder %s23, 0
        %s243 = scalar_select %p242, %s23, 0
        %s244 = scalar_lea.vmem %s2, %s243
        %p246 = scmp.eq.s32.totalorder %s24, 0
        // Predicated region
        $region33: #{transformer_forward.21} parent=31 // pred_check
          %p247 = pneg %p246
        $region34: #{transformer_forward.21} parent=31 // pred_check_branch
          %249 = sbr.rel (%p247) target = $region36
        $region35: #{transformer_forward.21} parent=31 // pred_region
          %vm250 = vcmask 261120
          %251 = vst.msk [vmem:[#allocation2] sm:$0xff] %vm250, 0.0
        $region36: #{transformer_forward.21} parent=31 // pred_fallthru
          _
        %v252 = vld [vmem:[#allocation2] sm:$0xff]
        %v253 = vld [vmem:[%s232] sm:$0xff]
        %v254 = vpack.c.bf16 %v253, %v253
        %v255 = vld [vmem:[%s240] sm:$0xf]
        %v256 = vld [vmem:[%s240 + $0x4] sm:$0xf]
        %v257 = vld [vmem:[%s240 + $0x8] sm:$0xf]
        %v258 = vld [vmem:[%s240 + $0xc] sm:$0xf]
        %v259 = vld [vmem:[%s240 + $0x10] sm:$0xf]
        %v260 = vld [vmem:[%s240 + $0x14] sm:$0xf]
        %v261 = vld [vmem:[%s240 + $0x18] sm:$0xf]
        %v262 = vld [vmem:[%s240 + $0x1c] sm:$0xf]
        %v271 = vunpack.c.l.b16 %v255
        %v272 = vunpack.c.l.b16 %v256
        %v273 = vunpack.c.l.b16 %v257
        %v274 = vunpack.c.l.b16 %v258
        %v275 = vunpack.c.l.b16 %v259
        %v276 = vunpack.c.l.b16 %v260
        %v277 = vunpack.c.l.b16 %v261
        %v278 = vunpack.c.l.b16 %v262
        %v279 = vpack.c.b16 %v272, %v271
        %v280 = vpack.c.b16 %v274, %v273
        %v281 = vpack.c.b16 %v276, %v275
        %v282 = vpack.c.b16 %v278, %v277
        %vm287 = vcmask 523264
        %v289 = vsel %vm287, %v254, 0
        %291 = vmatprep.subr.bf16.mxu0 0
        %292 = vmatpush1.bf16.msra.mxu0 %v279
        %293 = vmatprep.subr.bf16.mxu0 0
        %294 = vmatpush1.bf16.msra.mxu0 %v280
        %295 = vmatprep.subr.bf16.mxu0 0
        %296 = vmatpush1.bf16.msra.mxu0 %v281
        %297 = vmatprep.subr.bf16.mxu0 0
        %298 = vmatpush1.bf16.msra.mxu0 %v282
        %299 = vmatprep.subr.bf16.mxu0 0
        %300 = vmatpush1.bf16.msra.mxu0 0
        %301 = vmatprep.subr.bf16.mxu0 0
        %302 = vmatpush1.bf16.msra.mxu0 0
        %303 = vmatprep.subr.bf16.mxu0 0
        %304 = vmatpush1.bf16.msra.mxu0 0
        %305 = vmatprep.subr.bf16.mxu0 0
        %306 = vmatpush1.bf16.msra.mxu0 0
        %307 = vmatprep.subr.bf16.mxu0 0
        %308 = vmatpush1.bf16.msra.mxu0 0
        %309 = vmatprep.subr.bf16.mxu0 0
        %310 = vmatpush1.bf16.msra.mxu0 0
        %311 = vmatprep.subr.bf16.mxu0 0
        %312 = vmatpush1.bf16.msra.mxu0 0
        %313 = vmatprep.subr.bf16.mxu0 0
        %314 = vmatpush1.bf16.msra.mxu0 0
        %315 = vmatprep.subr.bf16.mxu0 0
        %316 = vmatpush1.bf16.msra.mxu0 0
        %317 = vmatprep.subr.bf16.mxu0 0
        %318 = vmatpush1.bf16.msra.mxu0 0
        %319 = vmatprep.subr.bf16.mxu0 0
        %320 = vmatpush1.bf16.msra.mxu0 0
        %321 = vmatprep.subr.bf16.mxu0 0
        %322 = vmatpush1.bf16.msra.mxu0 0
        %323 = vmatprep.mubr.bf16.mxu0 0
        %324 = vmatmul.mubr.bf16.gmra.mrb[0].mxu0 %v289
        %v325 = vpop.f32.mrb[0].mxu0
        %v326 = vadd.f32 0.0, %v325
        %v327 = vpop.f32.mrb[0].mxu0
        %v328 = vpop.f32.mrb[0].mxu0
        %v329 = vpop.f32.mrb[0].mxu0
        %330 = vdwg.mxu0
        %v331 = vadd.f32 %v252, %v326
        %vm332 = vcmask 261120
        %333 = vst.msk [vmem:[#allocation2] sm:$0xff] %vm332, %v331
        // Predicated region
        $region37: #{transformer_forward.21} parent=31 // pred_check
          %p334 = pneg %p246
        $region38: #{transformer_forward.21} parent=31 // pred_check_branch
          %336 = sbr.rel (%p334) target = $region40
        $region39: #{transformer_forward.21} parent=31 // pred_region
          %v337 = vld [vmem:[#allocation2] sm:$0xff]
          %v338 = vld [vmem:[%s244] sm:$0x1]
          %v340 = vlaneseq
          %v341 = vshrl.u32 %v340, 7
          %v342 = vsub.s32 0, %v341
          %v343 = vrot.slane %v338, %v342
          %v345 = vadd.f32 %v337, %v343
          %346 = vst.msk [vmem:[%s225] sm:$0xff] %vm332, %v345
        $region40: #{transformer_forward.21} parent=31 // pred_fallthru
          _
        %s347 = sand.u32 %s128, 1
        %s348 = scalar_lea.sflag [#allocation4], %s347
        %s349 = sand.u32 %s128, 1
        %s350 = smul.addr %s349, 8
        %s351 = scalar_lea.vmem [#allocation3], %s350
        // Predicated region
        $region41: #{transformer_forward.21} parent=31 // pred_check
          %p352 = pneg %p138
        $region42: #{transformer_forward.21} parent=31 // pred_check_branch
          %354 = sbr.rel (%p352) target = $region44
        $region43: #{transformer_forward.21} parent=31 // pred_region
          %s356 = ssub.s32 128, 128
          %357 = vsyncadd %s348, %s356
          %s358 = sadd.s32 %s23, %s22
          %s359 = smul.addr %s358, 128
          %s360 = scalar_lea.hbm %s3, %s359
          %s362 = sshll.u32 %s351, 4
          %s363 = int_to_ptr.vmem [resolvable:$true] %s362
          %365 = dma.vmem_to_hbm [thread:$0]  %s363, 128, %s360, %s348
        $region44: #{transformer_forward.21} parent=31 // pred_fallthru
          _
      $region32: #{transformer_forward.21} parent=5 // pred_fallthru
        _
      %p366 = scmp.le.s32.totalorder 2, %s12
      // Predicated region
      $region45: #{transformer_forward.21} parent=5 // pred_check
        %p367 = pneg %p366
      $region46: #{transformer_forward.21} parent=5 // pred_check_branch
        %369 = sbr.rel (%p367) target = $region48
      $region47: #{transformer_forward.21} parent=5 // pred_region
        %s370 = ssub.s32 %s12, 2
        // Predicated region
        $region49: #{transformer_forward.21} parent=47 // pred_check
          %p371 = pneg %p144
        $region50: #{transformer_forward.21} parent=47 // pred_check_branch
          %373 = sbr.rel (%p371) target = $region52
        $region51: #{transformer_forward.21} parent=47 // pred_region
          %s374 = sand.u32 %s129, 1
          %s375 = scalar_lea.sflag [#allocation4], %s374
          %s376 = sand.u32 %s129, 1
          %s377 = smul.addr %s376, 8
          %s378 = scalar_lea.vmem [#allocation3], %s377
          %379 = dma.done %s375, 128
        $region52: #{transformer_forward.21} parent=47 // pred_fallthru
          _
      $region48: #{transformer_forward.21} parent=5 // pred_fallthru
        _
    $region6: #{transformer_forward.21} parent=1 // loop_footer
      %s16 = sadd.s32 1, %s12
    $region7: #{transformer_forward.21} parent=1 // loop_footer_branch
      %11 = sbr.rel target = $region3
    $region8: #{transformer_forward.21} parent=1 // loop_exit
      _
    %380 = vsyncpa [#allocation4], 1
    %s381 = scalar_lea.sflag [#allocation4], 1
    %382 = vsyncpa %s381, 1

// kernel: transformer_forward.12
$region0: #{transformer_forward.12}
  #allocation0 [shape = 'u32[]', space=smem, size = 0x4, offset = 0x4, fixed_abs, tag = 'smem constant byte address 0x4 - core index']
  #allocation1 [shape = 'u32[144,128]{1,0:T(1,128)}', space=vmem, size = 0x12000, scoped, tag = 'internal scratch']
  %s0 = inlined_call_operand.vmem [shape: f32[16,64], index: 0, kind: input, shape index: {}]
  %s1 = inlined_call_operand.vmem [shape: bf16[64,128], index: 1, kind: input, shape index: {}]
  %s2 = inlined_call_operand.vmem [shape: f32[1,128], index: 2, kind: input, shape index: {}]
  %s3 = inlined_call_operand.vmem [shape: bf16[128,64], index: 3, kind: input, shape index: {}]
  %s4 = inlined_call_operand.vmem [shape: f32[1,64], index: 4, kind: input, shape index: {}]
  %s5 = inlined_call_operand.vmem [shape: f32[1,64], index: 5, kind: input, shape index: {}]
  %s6 = inlined_call_operand.vmem [shape: f32[1,64], index: 6, kind: input, shape index: {}]
  %s7 = inlined_call_operand.vmem [shape: f32[16,64], index: 7, kind: output, shape index: {}]
  %s8 = sld [smem:[#allocation0]]
  $region61: #{transformer_forward.12} parent=0
    _
  %s10 = ssub.s32 1, %s8
  %s11 = scalar_select 0, %s10, %s8
  loop: start=0, step=1, limit=4
  $region2: #{transformer_forward.12} parent=0 // loop_pre_header
    _
  $region3: #{transformer_forward.12} parent=0 // loop_header
    %s13 = sphi 0, %s17
    %p14 = scmp.ge.s32.totalorder %s13, 4
    %s23 = sphi 0, %s25
    %s26 = sphi 0, %s23
    %s27 = sphi 0, %s26
    %s43 = sphi 0, %s27
    %s47 = sphi 0, %s47
    %s49 = sphi 0, %s47
    %s50 = sphi 0, %s49
    %s64 = sphi 0, %s50
    %s68 = sphi 0, %s68
    %s70 = sphi 0, %s68
    %s71 = sphi 0, %s70
    %s85 = sphi 0, %s71
    %s89 = sphi 0, %s89
    %s91 = sphi 0, %s89
    %s92 = sphi 0, %s91
    %s106 = sphi 0, %s92
    %s110 = sphi 0, %s110
    %s112 = sphi 0, %s110
    %s113 = sphi 0, %s112
    %s127 = sphi 0, %s113
    %s131 = sphi 0, %s131
    %s133 = sphi 0, %s131
    %s134 = sphi 0, %s133
    %s148 = sphi 0, %s134
    %s152 = sphi 0, %s152
    %s154 = sphi 0, %s152
    %s155 = sphi 0, %s154
    %s169 = sphi 0, %s155
    %s175 = sphi 0, %s177
    %s178 = sphi 0, %s175
    %s179 = sphi 0, %s178
    %s195 = sphi 0, %s179
  $region4: #{transformer_forward.12} parent=0 // loop_header_branch
    %16 = sbr.rel (%p14) target = $region8
  $region5: #{transformer_forward.12} parent=0 // loop_body
    %s18 = ssub.s32 %s13, 1
    %s19 = ssub.s32 %s13, 2
    %s20 = sadd.s32 %s13, 1
    %s21 = ssub.s32 %s13, %s20
    %p22 = scmp.eq.s32.totalorder %s21, 0
    %s24 = sadd.s32 %s23, 1
    %s25 = scalar_select %p22, %s23, %s24
    %p28 = pneg %p22
    %p29 = scmp.eq.s32.totalorder %s13, 1
    %p30 = por %p28, %p29
    %p31 = scmp.ne.s32.totalorder %s23, %s26
    %p32 = scmp.eq.s32.totalorder %s13, 0
    %p33 = por %p31, %p32
    %p34 = scmp.ne.s32.totalorder %s23, %s26
    %p35 = scmp.eq.s32.totalorder %s18, 1
    %p36 = por %p34, %p35
    %p37 = scmp.ne.s32.totalorder %s26, %s27
    %p38 = scmp.eq.s32.totalorder %s18, 0
    %p39 = por %p37, %p38
    %p40 = scmp.ne.s32.totalorder %s26, %s27
    %p41 = scmp.eq.s32.totalorder %s19, 1
    %p42 = por %p40, %p41
    %p44 = scmp.ne.s32.totalorder %s27, %s43
    %p45 = scmp.eq.s32.totalorder %s19, 0
    %p46 = por %p44, %p45
    %s48 = sadd.s32 %s47, 1
    %p51 = scmp.eq.s32.totalorder %s13, 1
    %p52 = scmp.ne.s32.totalorder %s47, %s49
    %p53 = scmp.eq.s32.totalorder %s13, 0
    %p54 = por %p52, %p53
    %p55 = scmp.ne.s32.totalorder %s47, %s49
    %p56 = scmp.eq.s32.totalorder %s18, 1
    %p57 = por %p55, %p56
    %p58 = scmp.ne.s32.totalorder %s49, %s50
    %p59 = scmp.eq.s32.totalorder %s18, 0
    %p60 = por %p58, %p59
    %p61 = scmp.ne.s32.totalorder %s49, %s50
    %p62 = scmp.eq.s32.totalorder %s19, 1
    %p63 = por %p61, %p62
    %p65 = scmp.ne.s32.totalorder %s50, %s64
    %p66 = scmp.eq.s32.totalorder %s19, 0
    %p67 = por %p65, %p66
    %s69 = sadd.s32 %s68, 1
    %p72 = scmp.eq.s32.totalorder %s13, 1
    %p73 = scmp.ne.s32.totalorder %s68, %s70
    %p74 = scmp.eq.s32.totalorder %s13, 0
    %p75 = por %p73, %p74
    %p76 = scmp.ne.s32.totalorder %s68, %s70
    %p77 = scmp.eq.s32.totalorder %s18, 1
    %p78 = por %p76, %p77
    %p79 = scmp.ne.s32.totalorder %s70, %s71
    %p80 = scmp.eq.s32.totalorder %s18, 0
    %p81 = por %p79, %p80
    %p82 = scmp.ne.s32.totalorder %s70, %s71
    %p83 = scmp.eq.s32.totalorder %s19, 1
    %p84 = por %p82, %p83
    %p86 = scmp.ne.s32.totalorder %s71, %s85
    %p87 = scmp.eq.s32.totalorder %s19, 0
    %p88 = por %p86, %p87
    %s90 = sadd.s32 %s89, 1
    %p93 = scmp.eq.s32.totalorder %s13, 1
    %p94 = scmp.ne.s32.totalorder %s89, %s91
    %p95 = scmp.eq.s32.totalorder %s13, 0
    %p96 = por %p94, %p95
    %p97 = scmp.ne.s32.totalorder %s89, %s91
    %p98 = scmp.eq.s32.totalorder %s18, 1
    %p99 = por %p97, %p98
    %p100 = scmp.ne.s32.totalorder %s91, %s92
    %p101 = scmp.eq.s32.totalorder %s18, 0
    %p102 = por %p100, %p101
    %p103 = scmp.ne.s32.totalorder %s91, %s92
    %p104 = scmp.eq.s32.totalorder %s19, 1
    %p105 = por %p103, %p104
    %p107 = scmp.ne.s32.totalorder %s92, %s106
    %p108 = scmp.eq.s32.totalorder %s19, 0
    %p109 = por %p107, %p108
    %s111 = sadd.s32 %s110, 1
    %p114 = scmp.eq.s32.totalorder %s13, 1
    %p115 = scmp.ne.s32.totalorder %s110, %s112
    %p116 = scmp.eq.s32.totalorder %s13, 0
    %p117 = por %p115, %p116
    %p118 = scmp.ne.s32.totalorder %s110, %s112
    %p119 = scmp.eq.s32.totalorder %s18, 1
    %p120 = por %p118, %p119
    %p121 = scmp.ne.s32.totalorder %s112, %s113
    %p122 = scmp.eq.s32.totalorder %s18, 0
    %p123 = por %p121, %p122
    %p124 = scmp.ne.s32.totalorder %s112, %s113
    %p125 = scmp.eq.s32.totalorder %s19, 1
    %p126 = por %p124, %p125
    %p128 = scmp.ne.s32.totalorder %s113, %s127
    %p129 = scmp.eq.s32.totalorder %s19, 0
    %p130 = por %p128, %p129
    %s132 = sadd.s32 %s131, 1
    %p135 = scmp.eq.s32.totalorder %s13, 1
    %p136 = scmp.ne.s32.totalorder %s131, %s133
    %p137 = scmp.eq.s32.totalorder %s13, 0
    %p138 = por %p136, %p137
    %p139 = scmp.ne.s32.totalorder %s131, %s133
    %p140 = scmp.eq.s32.totalorder %s18, 1
    %p141 = por %p139, %p140
    %p142 = scmp.ne.s32.totalorder %s133, %s134
    %p143 = scmp.eq.s32.totalorder %s18, 0
    %p144 = por %p142, %p143
    %p145 = scmp.ne.s32.totalorder %s133, %s134
    %p146 = scmp.eq.s32.totalorder %s19, 1
    %p147 = por %p145, %p146
    %p149 = scmp.ne.s32.totalorder %s134, %s148
    %p150 = scmp.eq.s32.totalorder %s19, 0
    %p151 = por %p149, %p150
    %s153 = sadd.s32 %s152, 1
    %p156 = scmp.eq.s32.totalorder %s13, 1
    %p157 = scmp.ne.s32.totalorder %s152, %s154
    %p158 = scmp.eq.s32.totalorder %s13, 0
    %p159 = por %p157, %p158
    %p160 = scmp.ne.s32.totalorder %s152, %s154
    %p161 = scmp.eq.s32.totalorder %s18, 1
    %p162 = por %p160, %p161
    %p163 = scmp.ne.s32.totalorder %s154, %s155
    %p164 = scmp.eq.s32.totalorder %s18, 0
    %p165 = por %p163, %p164
    %p166 = scmp.ne.s32.totalorder %s154, %s155
    %p167 = scmp.eq.s32.totalorder %s19, 1
    %p168 = por %p166, %p167
    %p170 = scmp.ne.s32.totalorder %s155, %s169
    %p171 = scmp.eq.s32.totalorder %s19, 0
    %p172 = por %p170, %p171
    %s173 = ssub.s32 %s13, %s20
    %p174 = scmp.eq.s32.totalorder %s173, 0
    %s176 = sadd.s32 %s175, 1
    %s177 = scalar_select %p174, %s175, %s176
    %p180 = pneg %p174
    %p181 = scmp.eq.s32.totalorder %s13, 1
    %p182 = por %p180, %p181
    %p183 = scmp.ne.s32.totalorder %s175, %s178
    %p184 = scmp.eq.s32.totalorder %s13, 0
    %p185 = por %p183, %p184
    %p186 = scmp.ne.s32.totalorder %s175, %s178
    %p187 = scmp.eq.s32.totalorder %s18, 1
    %p188 = por %p186, %p187
    %p189 = scmp.ne.s32.totalorder %s178, %s179
    %p190 = scmp.eq.s32.totalorder %s18, 0
    %p191 = por %p189, %p190
    %p192 = scmp.ne.s32.totalorder %s178, %s179
    %p193 = scmp.eq.s32.totalorder %s19, 1
    %p194 = por %p192, %p193
    %p196 = scmp.ne.s32.totalorder %s179, %s195
    %p197 = scmp.eq.s32.totalorder %s19, 0
    %p198 = por %p196, %p197
    %p199 = scmp.le.s32.totalorder 1, %s13
    %p200 = scmp.lt.s32.totalorder %s13, 3
    %p201 = pnand %p199, %p200
    %p202 = pneg %p201
    // Predicated region
    $region9: #{transformer_forward.12} parent=5 // pred_check
      _
    $region10: #{transformer_forward.12} parent=5 // pred_check_branch
      %204 = sbr.rel (%p201) target = $region12
    $region11: #{transformer_forward.12} parent=5 // pred_region
      %s205 = ssub.s32 %s13, 1
      // Predicated region
      $region13: #{transformer_forward.12} parent=11 // pred_check
        %p206 = pneg %p60
      $region14: #{transformer_forward.12} parent=11 // pred_check_branch
        %208 = sbr.rel (%p206) target = $region16
      $region15: #{transformer_forward.12} parent=11 // pred_region
        _
      $region16: #{transformer_forward.12} parent=11 // pred_fallthru
        _
      // Predicated region
      $region17: #{transformer_forward.12} parent=11 // pred_check
        %p209 = pneg %p81
      $region18: #{transformer_forward.12} parent=11 // pred_check_branch
        %211 = sbr.rel (%p209) target = $region20
      $region19: #{transformer_forward.12} parent=11 // pred_region
        _
      $region20: #{transformer_forward.12} parent=11 // pred_fallthru
        _
      // Predicated region
      $region21: #{transformer_forward.12} parent=11 // pred_check
        %p212 = pneg %p102
      $region22: #{transformer_forward.12} parent=11 // pred_check_branch
        %214 = sbr.rel (%p212) target = $region24
      $region23: #{transformer_forward.12} parent=11 // pred_region
        _
      $region24: #{transformer_forward.12} parent=11 // pred_fallthru
        _
      // Predicated region
      $region25: #{transformer_forward.12} parent=11 // pred_check
        %p215 = pneg %p123
      $region26: #{transformer_forward.12} parent=11 // pred_check_branch
        %217 = sbr.rel (%p215) target = $region28
      $region27: #{transformer_forward.12} parent=11 // pred_region
        _
      $region28: #{transformer_forward.12} parent=11 // pred_fallthru
        _
      // Predicated region
      $region29: #{transformer_forward.12} parent=11 // pred_check
        %p218 = pneg %p144
      $region30: #{transformer_forward.12} parent=11 // pred_check_branch
        %220 = sbr.rel (%p218) target = $region32
      $region31: #{transformer_forward.12} parent=11 // pred_region
        _
      $region32: #{transformer_forward.12} parent=11 // pred_fallthru
        _
      // Predicated region
      $region33: #{transformer_forward.12} parent=11 // pred_check
        %p221 = pneg %p165
      $region34: #{transformer_forward.12} parent=11 // pred_check_branch
        %223 = sbr.rel (%p221) target = $region36
      $region35: #{transformer_forward.12} parent=11 // pred_region
        _
      $region36: #{transformer_forward.12} parent=11 // pred_fallthru
        _
    $region12: #{transformer_forward.12} parent=5 // pred_fallthru
      _
    %p224 = scmp.lt.s32.totalorder %s13, 2
    // Predicated region
    $region37: #{transformer_forward.12} parent=5 // pred_check
      %p225 = pneg %p224
    $region38: #{transformer_forward.12} parent=5 // pred_check_branch
      %227 = sbr.rel (%p225) target = $region40
    $region39: #{transformer_forward.12} parent=5 // pred_region
      // Predicated region
      $region41: #{transformer_forward.12} parent=39 // pred_check
        %p228 = pneg %p33
      $region42: #{transformer_forward.12} parent=39 // pred_check_branch
        %230 = sbr.rel (%p228) target = $region44
      $region43: #{transformer_forward.12} parent=39 // pred_region
        %p231 = scmp.lt.s32.totalorder %s13, 1
        %s232 = scalar_select %p231, %s13, 1
        %s233 = smul.addr %s232, 8
        %s234 = scalar_lea.vmem %s0, %s233
      $region44: #{transformer_forward.12} parent=39 // pred_fallthru
        _
    $region40: #{transformer_forward.12} parent=5 // pred_fallthru
      _
    %p235 = scmp.le.s32.totalorder 1, %s13
    %p236 = scmp.lt.s32.totalorder %s13, 3
    %p237 = pnand %p235, %p236
    %p238 = pneg %p237
    // Predicated region
    $region45: #{transformer_forward.12} parent=5 // pred_check
      _
    $region46: #{transformer_forward.12} parent=5 // pred_check_branch
      %240 = sbr.rel (%p237) target = $region48
    $region47: #{transformer_forward.12} parent=5 // pred_region
      %s241 = ssub.s32 %s13, 1
      %p242 = scmp.lt.s32.totalorder %s18, 1
      %s243 = scalar_select %p242, %s18, 1
      %s244 = smul.addr %s243, 8
      %s245 = scalar_lea.vmem %s0, %s244
      %p246 = pneg %p39
      %p247 = pneg %p36
      %p248 = pneg %p60
      %p249 = pneg %p57
      %p250 = pneg %p81
      %p251 = pneg %p78
      %p252 = pneg %p102
      %p253 = pneg %p99
      %p254 = pneg %p123
      %p255 = pneg %p120
      %p256 = pneg %p144
      %p257 = pneg %p141
      %p258 = pneg %p165
      %p259 = pneg %p162
      %p260 = pneg %p191
      %p261 = pneg %p188
      %p262 = scmp.lt.s32.totalorder %s18, 1
      %s263 = scalar_select %p262, %s18, 1
      %s264 = smul.addr %s263, 8
      %s265 = scalar_lea.vmem %s7, %s264
      %p266 = scmp.lt.s32.totalorder %s18, 1
      %s267 = scalar_select %p266, %s18, 1
      %s268 = smul.addr %s267, 8
      %s269 = scalar_lea.vmem %s0, %s268
      %p270 = scmp.lt.s32.totalorder %s18, 1
      %s271 = scalar_select %p270, %s18, 1
      %s272 = smul.addr %s271, 8
      %s273 = scalar_lea.vmem %s7, %s272
      %v275 = vld [vmem:[%s269] sm:$0xff]
      %v276 = vpack.c.bf16 %v275, %v275
      %v277 = vld [vmem:[%s1] sm:$0xf]
      %v278 = vld [vmem:[%s1 + $0x4] sm:$0xf]
      %v279 = vld [vmem:[%s1 + $0x8] sm:$0xf]
      %v280 = vld [vmem:[%s1 + $0xc] sm:$0xf]
      %v281 = vld [vmem:[%s1 + $0x10] sm:$0xf]
      %v282 = vld [vmem:[%s1 + $0x14] sm:$0xf]
      %v283 = vld [vmem:[%s1 + $0x18] sm:$0xf]
      %v284 = vld [vmem:[%s1 + $0x1c] sm:$0xf]
      %v285 = vld [vmem:[%s2] sm:$0x1]
      %v287 = vlaneseq
      %v288 = vshrl.u32 %v287, 7
      %v289 = vsub.s32 0, %v288
      %v290 = vrot.slane %v285, %v289
      %v300 = vunpack.c.l.b16 %v277
      %v301 = vunpack.c.l.b16 %v278
      %v302 = vunpack.c.l.b16 %v279
      %v303 = vunpack.c.l.b16 %v280
      %v304 = vunpack.c.l.b16 %v281
      %v305 = vunpack.c.l.b16 %v282
      %v306 = vunpack.c.l.b16 %v283
      %v307 = vunpack.c.l.b16 %v284
      %v308 = vpack.c.b16 %v301, %v300
      %v309 = vpack.c.b16 %v303, %v302
      %v310 = vpack.c.b16 %v305, %v304
      %v311 = vpack.c.b16 %v307, %v306
      %vm316 = vcmask 523264
      %v318 = vsel %vm316, %v276, 0
      %320 = vmatprep.subr.bf16.mxu0 0
      %321 = vmatpush1.bf16.msra.mxu0 %v308
      %322 = vmatprep.subr.bf16.mxu0 0
      %323 = vmatpush1.bf16.msra.mxu0 %v309
      %324 = vmatprep.subr.bf16.mxu0 0
      %325 = vmatpush1.bf16.msra.mxu0 %v310
      %326 = vmatprep.subr.bf16.mxu0 0
      %327 = vmatpush1.bf16.msra.mxu0 %v311
      %328 = vmatprep.subr.bf16.mxu0 0
      %329 = vmatpush1.bf16.msra.mxu0 0
      %330 = vmatprep.subr.bf16.mxu0 0
      %331 = vmatpush1.bf16.msra.mxu0 0
      %332 = vmatprep.subr.bf16.mxu0 0
      %333 = vmatpush1.bf16.msra.mxu0 0
      %334 = vmatprep.subr.bf16.mxu0 0
      %335 = vmatpush1.bf16.msra.mxu0 0
      %336 = vmatprep.subr.bf16.mxu0 0
      %337 = vmatpush1.bf16.msra.mxu0 0
      %338 = vmatprep.subr.bf16.mxu0 0
      %339 = vmatpush1.bf16.msra.mxu0 0
      %340 = vmatprep.subr.bf16.mxu0 0
      %341 = vmatpush1.bf16.msra.mxu0 0
      %342 = vmatprep.subr.bf16.mxu0 0
      %343 = vmatpush1.bf16.msra.mxu0 0
      %344 = vmatprep.subr.bf16.mxu0 0
      %345 = vmatpush1.bf16.msra.mxu0 0
      %346 = vmatprep.subr.bf16.mxu0 0
      %347 = vmatpush1.bf16.msra.mxu0 0
      %348 = vmatprep.subr.bf16.mxu0 0
      %349 = vmatpush1.bf16.msra.mxu0 0
      %350 = vmatprep.subr.bf16.mxu0 0
      %351 = vmatpush1.bf16.msra.mxu0 0
      %352 = vmatprep.mubr.bf16.mxu0 0
      %353 = vmatmul.mubr.bf16.gmra.mrb[0].mxu0 %v318
      %v354 = vpop.f32.mrb[0].mxu0
      %v355 = vadd.f32 %v290, %v354
      %v356 = vpop.f32.mrb[0].mxu0
      %v357 = vpop.f32.mrb[0].mxu0
      %v358 = vpop.f32.mrb[0].mxu0
      %359 = vdwg.mxu0
      %v360 = vmax.f32 %v355, 0.0
      %v361 = vpack.c.bf16 %v360, %v360
      %v362 = vld [vmem:[%s3] sm:$0xf]
      %v363 = vld [vmem:[%s3 + $0x4] sm:$0xf]
      %v364 = vld [vmem:[%s3 + $0x8] sm:$0xf]
      %v365 = vld [vmem:[%s3 + $0xc] sm:$0xf]
      %v366 = vld [vmem:[%s3 + $0x10] sm:$0xf]
      %v367 = vld [vmem:[%s3 + $0x14] sm:$0xf]
      %v368 = vld [vmem:[%s3 + $0x18] sm:$0xf]
      %v369 = vld [vmem:[%s3 + $0x1c] sm:$0xf]
      %v370 = vld [vmem:[%s3 + $0x20] sm:$0xf]
      %v371 = vld [vmem:[%s3 + $0x24] sm:$0xf]
      %v372 = vld [vmem:[%s3 + $0x28] sm:$0xf]
      %v373 = vld [vmem:[%s3 + $0x2c] sm:$0xf]
      %v374 = vld [vmem:[%s3 + $0x30] sm:$0xf]
      %v375 = vld [vmem:[%s3 + $0x34] sm:$0xf]
      %v376 = vld [vmem:[%s3 + $0x38] sm:$0xf]
      %v377 = vld [vmem:[%s3 + $0x3c] sm:$0xf]
      %v378 = vld [vmem:[%s4] sm:$0x1]
      %v380 = vlaneseq
      %v381 = vshrl.u32 %v380, 7
      %v382 = vsub.s32 0, %v381
      %v383 = vrot.slane %v378, %v382
      %v401 = vunpack.c.l.b16 %v362
      %v402 = vunpack.c.l.b16 %v363
      %v403 = vunpack.c.l.b16 %v364
      %v404 = vunpack.c.l.b16 %v365
      %v405 = vunpack.c.l.b16 %v366
      %v406 = vunpack.c.l.b16 %v367
      %v407 = vunpack.c.l.b16 %v368
      %v408 = vunpack.c.l.b16 %v369
      %v409 = vunpack.c.l.b16 %v370
      %v410 = vunpack.c.l.b16 %v371
      %v411 = vunpack.c.l.b16 %v372
      %v412 = vunpack.c.l.b16 %v373
      %v413 = vunpack.c.l.b16 %v374
      %v414 = vunpack.c.l.b16 %v375
      %v415 = vunpack.c.l.b16 %v376
      %v416 = vunpack.c.l.b16 %v377
      %v417 = vpack.c.b16 %v402, %v401
      %v418 = vpack.c.b16 %v404, %v403
      %v419 = vpack.c.b16 %v406, %v405
      %v420 = vpack.c.b16 %v408, %v407
      %v421 = vpack.c.b16 %v410, %v409
      %v422 = vpack.c.b16 %v412, %v411
      %v423 = vpack.c.b16 %v414, %v413
      %v424 = vpack.c.b16 %v416, %v415
      %433 = vmatprep.subr.bf16.mxu0 0
      %434 = vmatpush1.bf16.msra.mxu0 %v417
      %435 = vmatprep.subr.bf16.mxu0 0
      %436 = vmatpush1.bf16.msra.mxu0 %v418
      %437 = vmatprep.subr.bf16.mxu0 0
      %438 = vmatpush1.bf16.msra.mxu0 %v419
      %439 = vmatprep.subr.bf16.mxu0 0
      %440 = vmatpush1.bf16.msra.mxu0 %v420
      %441 = vmatprep.subr.bf16.mxu0 0
      %442 = vmatpush1.bf16.msra.mxu0 %v421
      %443 = vmatprep.subr.bf16.mxu0 0
      %444 = vmatpush1.bf16.msra.mxu0 %v422
      %445 = vmatprep.subr.bf16.mxu0 0
      %446 = vmatpush1.bf16.msra.mxu0 %v423
      %447 = vmatprep.subr.bf16.mxu0 0
      %448 = vmatpush1.bf16.msra.mxu0 %v424
      %449 = vmatprep.subr.bf16.mxu0 0
      %450 = vmatpush1.bf16.msra.mxu0 0
      %451 = vmatprep.subr.bf16.mxu0 0
      %452 = vmatpush1.bf16.msra.mxu0 0
      %453 = vmatprep.subr.bf16.mxu0 0
      %454 = vmatpush1.bf16.msra.mxu0 0
      %455 = vmatprep.subr.bf16.mxu0 0
      %456 = vmatpush1.bf16.msra.mxu0 0
      %457 = vmatprep.subr.bf16.mxu0 0
      %458 = vmatpush1.bf16.msra.mxu0 0
      %459 = vmatprep.subr.bf16.mxu0 0
      %460 = vmatpush1.bf16.msra.mxu0 0
      %461 = vmatprep.subr.bf16.mxu0 0
      %462 = vmatpush1.bf16.msra.mxu0 0
      %463 = vmatprep.subr.bf16.mxu0 0
      %464 = vmatpush1.bf16.msra.mxu0 0
      %465 = vmatprep.mubr.bf16.mxu0 0
      %466 = vmatmul.mubr.bf16.gmra.mrb[0].mxu0 %v361
      %v467 = vpop.f32.mrb[0].mxu0
      %v468 = vadd.f32 %v383, %v467
      %v469 = vpop.f32.mrb[0].mxu0
      %v470 = vpop.f32.mrb[0].mxu0
      %v471 = vpop.f32.mrb[0].mxu0
      %472 = vdwg.mxu0
      %v473 = vadd.f32 %v275, %v468
      %v474 = vsel %vm316, %v473, 0.0
      %475 = vadd.xlane.f32.xlu0 %v474
      %v476 = vpop.xlane.xlu0 %475
      %v477 = vrcp.pop 64.0
      %v478 = vmul.f32 %v476, %v477
      %v479 = vsub.f32 %v473, %v478
      %v480 = vmul.f32 %v479, %v479
      %v481 = vsel %vm316, %v480, 0.0
      %482 = vadd.xlane.f32.xlu0 %v481
      %v483 = vpop.xlane.xlu0 %482
      %v484 = vmul.f32 %v483, %v477
      %v485 = vadd.f32 %v484, 1e-05
      %v486 = vrsqrt.pop %v485
      %v487 = vmul.f32 %v479, %v486
      %v488 = vld [vmem:[%s5] sm:$0x1]
      %v490 = vlaneseq
      %v491 = vshrl.u32 %v490, 7
      %v492 = vsub.s32 0, %v491
      %v493 = vrot.slane %v488, %v492
      %v495 = vmul.f32 %v487, %v493
      %v496 = vld [vmem:[%s6] sm:$0x1]
      %v498 = vlaneseq
      %v499 = vshrl.u32 %v498, 7
      %v500 = vsub.s32 0, %v499
      %v501 = vrot.slane %v496, %v500
      %v503 = vadd.f32 %v495, %v501
      %504 = vst.msk [vmem:[%s273] sm:$0xff] %vm316, %v503
      %p505 = scmp.lt.s32.totalorder %s18, 1
      %s506 = scalar_select %p505, %s18, 1
      %s507 = smul.addr %s506, 8
      %s508 = scalar_lea.vmem %s7, %s507
      // Predicated region
      $region49: #{transformer_forward.12} parent=47 // pred_check
        %p509 = pneg %p188
      $region50: #{transformer_forward.12} parent=47 // pred_check_branch
        %511 = sbr.rel (%p509) target = $region52
      $region51: #{transformer_forward.12} parent=47 // pred_region
        _
      $region52: #{transformer_forward.12} parent=47 // pred_fallthru
        _
    $region48: #{transformer_forward.12} parent=5 // pred_fallthru
      _
    %p512 = scmp.le.s32.totalorder 2, %s13
    // Predicated region
    $region53: #{transformer_forward.12} parent=5 // pred_check
      %p513 = pneg %p512
    $region54: #{transformer_forward.12} parent=5 // pred_check_branch
      %515 = sbr.rel (%p513) target = $region56
    $region55: #{transformer_forward.12} parent=5 // pred_region
      %s516 = ssub.s32 %s13, 2
      // Predicated region
      $region57: #{transformer_forward.12} parent=55 // pred_check
        %p517 = pneg %p194
      $region58: #{transformer_forward.12} parent=55 // pred_check_branch
        %519 = sbr.rel (%p517) target = $region60
      $region59: #{transformer_forward.12} parent=55 // pred_region
        %p520 = scmp.lt.s32.totalorder %s19, 1
        %s521 = scalar_select %p520, %s19, 1
        %s522 = smul.addr %s521, 8
        %s523 = scalar_lea.vmem %s7, %s522
      $region60: #{transformer_forward.12} parent=55 // pred_fallthru
        _
    $region56: #{transformer_forward.12} parent=5 // pred_fallthru
      _
  $region6: #{transformer_forward.12} parent=0 // loop_footer
    %s17 = sadd.s32 1, %s13
  $region7: #{transformer_forward.12} parent=0 // loop_footer_branch
    %12 = sbr.rel target = $region3
  $region8: #{transformer_forward.12} parent=0 // loop_exit
    _

// kernel: transformer_forward.11
$region0: #{transformer_forward.11}
  #allocation0 [shape = 'u32[]', space=smem, size = 0x4, offset = 0x4, fixed_abs, tag = 'smem constant byte address 0x4 - core index']
  #allocation1 [shape = 'u32[144,128]{1,0:T(1,128)}', space=vmem, size = 0x12000, scoped, tag = 'internal scratch']
  %s0 = inlined_call_operand.vmem [shape: f32[2,8,64], index: 0, kind: input, shape index: {}, may-alias: {0,1}]
  %s1 = inlined_call_operand.vmem [shape: f32[2,8,64], index: 1, kind: input, shape index: {}, may-alias: {0,1}]
  %s2 = inlined_call_operand.vmem [shape: bf16[64,64], index: 2, kind: input, shape index: {}]
  %s3 = inlined_call_operand.vmem [shape: f32[1,64], index: 3, kind: input, shape index: {}]
  %s4 = inlined_call_operand.vmem [shape: bf16[64,64], index: 4, kind: input, shape index: {}]
  %s5 = inlined_call_operand.vmem [shape: f32[1,64], index: 5, kind: input, shape index: {}]
  %s6 = inlined_call_operand.vmem [shape: bf16[64,64], index: 6, kind: input, shape index: {}]
  %s7 = inlined_call_operand.vmem [shape: f32[1,64], index: 7, kind: input, shape index: {}]
  %s8 = inlined_call_operand.vmem [shape: bf16[64,64], index: 8, kind: input, shape index: {}]
  %s9 = inlined_call_operand.vmem [shape: f32[1,64], index: 9, kind: input, shape index: {}]
  %s10 = inlined_call_operand.vmem [shape: f32[1,64], index: 10, kind: input, shape index: {}]
  %s11 = inlined_call_operand.vmem [shape: f32[1,64], index: 11, kind: input, shape index: {}]
  %s12 = inlined_call_operand.vmem [shape: f32[2,8,64], index: 12, kind: output, shape index: {0}]
  %s13 = inlined_call_operand.vmem [shape: f32[2,8,32], index: 13, kind: output, shape index: {1}]
  %14 = xla_tuple %s12, %s13
  %s15 = sld [smem:[#allocation0]]
  $region89: #{transformer_forward.11} parent=0
    _
  %s17 = ssub.s32 1, %s15
  %s18 = scalar_select 0, %s17, %s15
  loop: start=0, step=1, limit=4
  $region2: #{transformer_forward.11} parent=0 // loop_pre_header
    _
  $region3: #{transformer_forward.11} parent=0 // loop_header
    %s20 = sphi 0, %s24
    %p21 = scmp.ge.s32.totalorder %s20, 4
    %s30 = sphi 0, %s32
    %s33 = sphi 0, %s30
    %s34 = sphi 0, %s33
    %s50 = sphi 0, %s34
    %s56 = sphi 0, %s58
    %s59 = sphi 0, %s56
    %s60 = sphi 0, %s59
    %s76 = sphi 0, %s60
    %s80 = sphi 0, %s80
    %s82 = sphi 0, %s80
    %s83 = sphi 0, %s82
    %s97 = sphi 0, %s83
    %s101 = sphi 0, %s101
    %s103 = sphi 0, %s101
    %s104 = sphi 0, %s103
    %s118 = sphi 0, %s104
    %s122 = sphi 0, %s122
    %s124 = sphi 0, %s122
    %s125 = sphi 0, %s124
    %s139 = sphi 0, %s125
    %s143 = sphi 0, %s143
    %s145 = sphi 0, %s143
    %s146 = sphi 0, %s145
    %s160 = sphi 0, %s146
    %s164 = sphi 0, %s164
    %s166 = sphi 0, %s164
    %s167 = sphi 0, %s166
    %s181 = sphi 0, %s167
    %s185 = sphi 0, %s185
    %s187 = sphi 0, %s185
    %s188 = sphi 0, %s187
    %s202 = sphi 0, %s188
    %s206 = sphi 0, %s206
    %s208 = sphi 0, %s206
    %s209 = sphi 0, %s208
    %s223 = sphi 0, %s209
    %s227 = sphi 0, %s227
    %s229 = sphi 0, %s227
    %s230 = sphi 0, %s229
    %s244 = sphi 0, %s230
    %s248 = sphi 0, %s248
    %s250 = sphi 0, %s248
    %s251 = sphi 0, %s250
    %s265 = sphi 0, %s251
    %s269 = sphi 0, %s269
    %s271 = sphi 0, %s269
    %s272 = sphi 0, %s271
    %s286 = sphi 0, %s272
    %s292 = sphi 0, %s294
    %s295 = sphi 0, %s292
    %s296 = sphi 0, %s295
    %s312 = sphi 0, %s296
    %s318 = sphi 0, %s320
    %s321 = sphi 0, %s318
    %s322 = sphi 0, %s321
    %s338 = sphi 0, %s322
  $region4: #{transformer_forward.11} parent=0 // loop_header_branch
    %23 = sbr.rel (%p21) target = $region8
  $region5: #{transformer_forward.11} parent=0 // loop_body
    %s25 = ssub.s32 %s20, 1
    %s26 = ssub.s32 %s20, 2
    %s27 = sadd.s32 %s20, 1
    %s28 = ssub.s32 %s20, %s27
    %p29 = scmp.eq.s32.totalorder %s28, 0
    %s31 = sadd.s32 %s30, 1
    %s32 = scalar_select %p29, %s30, %s31
    %p35 = pneg %p29
    %p36 = scmp.eq.s32.totalorder %s20, 1
    %p37 = por %p35, %p36
    %p38 = scmp.ne.s32.totalorder %s30, %s33
    %p39 = scmp.eq.s32.totalorder %s20, 0
    %p40 = por %p38, %p39
    %p41 = scmp.ne.s32.totalorder %s30, %s33
    %p42 = scmp.eq.s32.totalorder %s25, 1
    %p43 = por %p41, %p42
    %p44 = scmp.ne.s32.totalorder %s33, %s34
    %p45 = scmp.eq.s32.totalorder %s25, 0
    %p46 = por %p44, %p45
    %p47 = scmp.ne.s32.totalorder %s33, %s34
    %p48 = scmp.eq.s32.totalorder %s26, 1
    %p49 = por %p47, %p48
    %p51 = scmp.ne.s32.totalorder %s34, %s50
    %p52 = scmp.eq.s32.totalorder %s26, 0
    %p53 = por %p51, %p52
    %s54 = ssub.s32 %s20, %s27
    %p55 = scmp.eq.s32.totalorder %s54, 0
    %s57 = sadd.s32 %s56, 1
    %s58 = scalar_select %p55, %s56, %s57
    %p61 = pneg %p55
    %p62 = scmp.eq.s32.totalorder %s20, 1
    %p63 = por %p61, %p62
    %p64 = scmp.ne.s32.totalorder %s56, %s59
    %p65 = scmp.eq.s32.totalorder %s20, 0
    %p66 = por %p64, %p65
    %p67 = scmp.ne.s32.totalorder %s56, %s59
    %p68 = scmp.eq.s32.totalorder %s25, 1
    %p69 = por %p67, %p68
    %p70 = scmp.ne.s32.totalorder %s59, %s60
    %p71 = scmp.eq.s32.totalorder %s25, 0
    %p72 = por %p70, %p71
    %p73 = scmp.ne.s32.totalorder %s59, %s60
    %p74 = scmp.eq.s32.totalorder %s26, 1
    %p75 = por %p73, %p74
    %p77 = scmp.ne.s32.totalorder %s60, %s76
    %p78 = scmp.eq.s32.totalorder %s26, 0
    %p79 = por %p77, %p78
    %s81 = sadd.s32 %s80, 1
    %p84 = scmp.eq.s32.totalorder %s20, 1
    %p85 = scmp.ne.s32.totalorder %s80, %s82
    %p86 = scmp.eq.s32.totalorder %s20, 0
    %p87 = por %p85, %p86
    %p88 = scmp.ne.s32.totalorder %s80, %s82
    %p89 = scmp.eq.s32.totalorder %s25, 1
    %p90 = por %p88, %p89
    %p91 = scmp.ne.s32.totalorder %s82, %s83
    %p92 = scmp.eq.s32.totalorder %s25, 0
    %p93 = por %p91, %p92
    %p94 = scmp.ne.s32.totalorder %s82, %s83
    %p95 = scmp.eq.s32.totalorder %s26, 1
    %p96 = por %p94, %p95
    %p98 = scmp.ne.s32.totalorder %s83, %s97
    %p99 = scmp.eq.s32.totalorder %s26, 0
    %p100 = por %p98, %p99
    %s102 = sadd.s32 %s101, 1
    %p105 = scmp.eq.s32.totalorder %s20, 1
    %p106 = scmp.ne.s32.totalorder %s101, %s103
    %p107 = scmp.eq.s32.totalorder %s20, 0
    %p108 = por %p106, %p107
    %p109 = scmp.ne.s32.totalorder %s101, %s103
    %p110 = scmp.eq.s32.totalorder %s25, 1
    %p111 = por %p109, %p110
    %p112 = scmp.ne.s32.totalorder %s103, %s104
    %p113 = scmp.eq.s32.totalorder %s25, 0
    %p114 = por %p112, %p113
    %p115 = scmp.ne.s32.totalorder %s103, %s104
    %p116 = scmp.eq.s32.totalorder %s26, 1
    %p117 = por %p115, %p116
    %p119 = scmp.ne.s32.totalorder %s104, %s118
    %p120 = scmp.eq.s32.totalorder %s26, 0
    %p121 = por %p119, %p120
    %s123 = sadd.s32 %s122, 1
    %p126 = scmp.eq.s32.totalorder %s20, 1
    %p127 = scmp.ne.s32.totalorder %s122, %s124
    %p128 = scmp.eq.s32.totalorder %s20, 0
    %p129 = por %p127, %p128
    %p130 = scmp.ne.s32.totalorder %s122, %s124
    %p131 = scmp.eq.s32.totalorder %s25, 1
    %p132 = por %p130, %p131
    %p133 = scmp.ne.s32.totalorder %s124, %s125
    %p134 = scmp.eq.s32.totalorder %s25, 0
    %p135 = por %p133, %p134
    %p136 = scmp.ne.s32.totalorder %s124, %s125
    %p137 = scmp.eq.s32.totalorder %s26, 1
    %p138 = por %p136, %p137
    %p140 = scmp.ne.s32.totalorder %s125, %s139
    %p141 = scmp.eq.s32.totalorder %s26, 0
    %p142 = por %p140, %p141
    %s144 = sadd.s32 %s143, 1
    %p147 = scmp.eq.s32.totalorder %s20, 1
    %p148 = scmp.ne.s32.totalorder %s143, %s145
    %p149 = scmp.eq.s32.totalorder %s20, 0
    %p150 = por %p148, %p149
    %p151 = scmp.ne.s32.totalorder %s143, %s145
    %p152 = scmp.eq.s32.totalorder %s25, 1
    %p153 = por %p151, %p152
    %p154 = scmp.ne.s32.totalorder %s145, %s146
    %p155 = scmp.eq.s32.totalorder %s25, 0
    %p156 = por %p154, %p155
    %p157 = scmp.ne.s32.totalorder %s145, %s146
    %p158 = scmp.eq.s32.totalorder %s26, 1
    %p159 = por %p157, %p158
    %p161 = scmp.ne.s32.totalorder %s146, %s160
    %p162 = scmp.eq.s32.totalorder %s26, 0
    %p163 = por %p161, %p162
    %s165 = sadd.s32 %s164, 1
    %p168 = scmp.eq.s32.totalorder %s20, 1
    %p169 = scmp.ne.s32.totalorder %s164, %s166
    %p170 = scmp.eq.s32.totalorder %s20, 0
    %p171 = por %p169, %p170
    %p172 = scmp.ne.s32.totalorder %s164, %s166
    %p173 = scmp.eq.s32.totalorder %s25, 1
    %p174 = por %p172, %p173
    %p175 = scmp.ne.s32.totalorder %s166, %s167
    %p176 = scmp.eq.s32.totalorder %s25, 0
    %p177 = por %p175, %p176
    %p178 = scmp.ne.s32.totalorder %s166, %s167
    %p179 = scmp.eq.s32.totalorder %s26, 1
    %p180 = por %p178, %p179
    %p182 = scmp.ne.s32.totalorder %s167, %s181
    %p183 = scmp.eq.s32.totalorder %s26, 0
    %p184 = por %p182, %p183
    %s186 = sadd.s32 %s185, 1
    %p189 = scmp.eq.s32.totalorder %s20, 1
    %p190 = scmp.ne.s32.totalorder %s185, %s187
    %p191 = scmp.eq.s32.totalorder %s20, 0
    %p192 = por %p190, %p191
    %p193 = scmp.ne.s32.totalorder %s185, %s187
    %p194 = scmp.eq.s32.totalorder %s25, 1
    %p195 = por %p193, %p194
    %p196 = scmp.ne.s32.totalorder %s187, %s188
    %p197 = scmp.eq.s32.totalorder %s25, 0
    %p198 = por %p196, %p197
    %p199 = scmp.ne.s32.totalorder %s187, %s188
    %p200 = scmp.eq.s32.totalorder %s26, 1
    %p201 = por %p199, %p200
    %p203 = scmp.ne.s32.totalorder %s188, %s202
    %p204 = scmp.eq.s32.totalorder %s26, 0
    %p205 = por %p203, %p204
    %s207 = sadd.s32 %s206, 1
    %p210 = scmp.eq.s32.totalorder %s20, 1
    %p211 = scmp.ne.s32.totalorder %s206, %s208
    %p212 = scmp.eq.s32.totalorder %s20, 0
    %p213 = por %p211, %p212
    %p214 = scmp.ne.s32.totalorder %s206, %s208
    %p215 = scmp.eq.s32.totalorder %s25, 1
    %p216 = por %p214, %p215
    %p217 = scmp.ne.s32.totalorder %s208, %s209
    %p218 = scmp.eq.s32.totalorder %s25, 0
    %p219 = por %p217, %p218
    %p220 = scmp.ne.s32.totalorder %s208, %s209
    %p221 = scmp.eq.s32.totalorder %s26, 1
    %p222 = por %p220, %p221
    %p224 = scmp.ne.s32.totalorder %s209, %s223
    %p225 = scmp.eq.s32.totalorder %s26, 0
    %p226 = por %p224, %p225
    %s228 = sadd.s32 %s227, 1
    %p231 = scmp.eq.s32.totalorder %s20, 1
    %p232 = scmp.ne.s32.totalorder %s227, %s229
    %p233 = scmp.eq.s32.totalorder %s20, 0
    %p234 = por %p232, %p233
    %p235 = scmp.ne.s32.totalorder %s227, %s229
    %p236 = scmp.eq.s32.totalorder %s25, 1
    %p237 = por %p235, %p236
    %p238 = scmp.ne.s32.totalorder %s229, %s230
    %p239 = scmp.eq.s32.totalorder %s25, 0
    %p240 = por %p238, %p239
    %p241 = scmp.ne.s32.totalorder %s229, %s230
    %p242 = scmp.eq.s32.totalorder %s26, 1
    %p243 = por %p241, %p242
    %p245 = scmp.ne.s32.totalorder %s230, %s244
    %p246 = scmp.eq.s32.totalorder %s26, 0
    %p247 = por %p245, %p246
    %s249 = sadd.s32 %s248, 1
    %p252 = scmp.eq.s32.totalorder %s20, 1
    %p253 = scmp.ne.s32.totalorder %s248, %s250
    %p254 = scmp.eq.s32.totalorder %s20, 0
    %p255 = por %p253, %p254
    %p256 = scmp.ne.s32.totalorder %s248, %s250
    %p257 = scmp.eq.s32.totalorder %s25, 1
    %p258 = por %p256, %p257
    %p259 = scmp.ne.s32.totalorder %s250, %s251
    %p260 = scmp.eq.s32.totalorder %s25, 0
    %p261 = por %p259, %p260
    %p262 = scmp.ne.s32.totalorder %s250, %s251
    %p263 = scmp.eq.s32.totalorder %s26, 1
    %p264 = por %p262, %p263
    %p266 = scmp.ne.s32.totalorder %s251, %s265
    %p267 = scmp.eq.s32.totalorder %s26, 0
    %p268 = por %p266, %p267
    %s270 = sadd.s32 %s269, 1
    %p273 = scmp.eq.s32.totalorder %s20, 1
    %p274 = scmp.ne.s32.totalorder %s269, %s271
    %p275 = scmp.eq.s32.totalorder %s20, 0
    %p276 = por %p274, %p275
    %p277 = scmp.ne.s32.totalorder %s269, %s271
    %p278 = scmp.eq.s32.totalorder %s25, 1
    %p279 = por %p277, %p278
    %p280 = scmp.ne.s32.totalorder %s271, %s272
    %p281 = scmp.eq.s32.totalorder %s25, 0
    %p282 = por %p280, %p281
    %p283 = scmp.ne.s32.totalorder %s271, %s272
    %p284 = scmp.eq.s32.totalorder %s26, 1
    %p285 = por %p283, %p284
    %p287 = scmp.ne.s32.totalorder %s272, %s286
    %p288 = scmp.eq.s32.totalorder %s26, 0
    %p289 = por %p287, %p288
    %s290 = ssub.s32 %s20, %s27
    %p291 = scmp.eq.s32.totalorder %s290, 0
    %s293 = sadd.s32 %s292, 1
    %s294 = scalar_select %p291, %s292, %s293
    %p297 = pneg %p291
    %p298 = scmp.eq.s32.totalorder %s20, 1
    %p299 = por %p297, %p298
    %p300 = scmp.ne.s32.totalorder %s292, %s295
    %p301 = scmp.eq.s32.totalorder %s20, 0
    %p302 = por %p300, %p301
    %p303 = scmp.ne.s32.totalorder %s292, %s295
    %p304 = scmp.eq.s32.totalorder %s25, 1
    %p305 = por %p303, %p304
    %p306 = scmp.ne.s32.totalorder %s295, %s296
    %p307 = scmp.eq.s32.totalorder %s25, 0
    %p308 = por %p306, %p307
    %p309 = scmp.ne.s32.totalorder %s295, %s296
    %p310 = scmp.eq.s32.totalorder %s26, 1
    %p311 = por %p309, %p310
    %p313 = scmp.ne.s32.totalorder %s296, %s312
    %p314 = scmp.eq.s32.totalorder %s26, 0
    %p315 = por %p313, %p314
    %s316 = ssub.s32 %s20, %s27
    %p317 = scmp.eq.s32.totalorder %s316, 0
    %s319 = sadd.s32 %s318, 1
    %s320 = scalar_select %p317, %s318, %s319
    %p323 = pneg %p317
    %p324 = scmp.eq.s32.totalorder %s20, 1
    %p325 = por %p323, %p324
    %p326 = scmp.ne.s32.totalorder %s318, %s321
    %p327 = scmp.eq.s32.totalorder %s20, 0
    %p328 = por %p326, %p327
    %p329 = scmp.ne.s32.totalorder %s318, %s321
    %p330 = scmp.eq.s32.totalorder %s25, 1
    %p331 = por %p329, %p330
    %p332 = scmp.ne.s32.totalorder %s321, %s322
    %p333 = scmp.eq.s32.totalorder %s25, 0
    %p334 = por %p332, %p333
    %p335 = scmp.ne.s32.totalorder %s321, %s322
    %p336 = scmp.eq.s32.totalorder %s26, 1
    %p337 = por %p335, %p336
    %p339 = scmp.ne.s32.totalorder %s322, %s338
    %p340 = scmp.eq.s32.totalorder %s26, 0
    %p341 = por %p339, %p340
    %p342 = scmp.le.s32.totalorder 1, %s20
    %p343 = scmp.lt.s32.totalorder %s20, 3
    %p344 = pnand %p342, %p343
    %p345 = pneg %p344
    // Predicated region
    $region9: #{transformer_forward.11} parent=5 // pred_check
      _
    $region10: #{transformer_forward.11} parent=5 // pred_check_branch
      %347 = sbr.rel (%p344) target = $region12
    $region11: #{transformer_forward.11} parent=5 // pred_region
      %s348 = ssub.s32 %s20, 1
      // Predicated region
      $region13: #{transformer_forward.11} parent=11 // pred_check
        %p349 = pneg %p93
      $region14: #{transformer_forward.11} parent=11 // pred_check_branch
        %351 = sbr.rel (%p349) target = $region16
      $region15: #{transformer_forward.11} parent=11 // pred_region
        _
      $region16: #{transformer_forward.11} parent=11 // pred_fallthru
        _
      // Predicated region
      $region17: #{transformer_forward.11} parent=11 // pred_check
        %p352 = pneg %p114
      $region18: #{transformer_forward.11} parent=11 // pred_check_branch
        %354 = sbr.rel (%p352) target = $region20
      $region19: #{transformer_forward.11} parent=11 // pred_region
        _
      $region20: #{transformer_forward.11} parent=11 // pred_fallthru
        _
      // Predicated region
      $region21: #{transformer_forward.11} parent=11 // pred_check
        %p355 = pneg %p135
      $region22: #{transformer_forward.11} parent=11 // pred_check_branch
        %357 = sbr.rel (%p355) target = $region24
      $region23: #{transformer_forward.11} parent=11 // pred_region
        _
      $region24: #{transformer_forward.11} parent=11 // pred_fallthru
        _
      // Predicated region
      $region25: #{transformer_forward.11} parent=11 // pred_check
        %p358 = pneg %p156
      $region26: #{transformer_forward.11} parent=11 // pred_check_branch
        %360 = sbr.rel (%p358) target = $region28
      $region27: #{transformer_forward.11} parent=11 // pred_region
        _
      $region28: #{transformer_forward.11} parent=11 // pred_fallthru
        _
      // Predicated region
      $region29: #{transformer_forward.11} parent=11 // pred_check
        %p361 = pneg %p177
      $region30: #{transformer_forward.11} parent=11 // pred_check_branch
        %363 = sbr.rel (%p361) target = $region32
      $region31: #{transformer_forward.11} parent=11 // pred_region
        _
      $region32: #{transformer_forward.11} parent=11 // pred_fallthru
        _
      // Predicated region
      $region33: #{transformer_forward.11} parent=11 // pred_check
        %p364 = pneg %p198
      $region34: #{transformer_forward.11} parent=11 // pred_check_branch
        %366 = sbr.rel (%p364) target = $region36
      $region35: #{transformer_forward.11} parent=11 // pred_region
        _
      $region36: #{transformer_forward.11} parent=11 // pred_fallthru
        _
      // Predicated region
      $region37: #{transformer_forward.11} parent=11 // pred_check
        %p367 = pneg %p219
      $region38: #{transformer_forward.11} parent=11 // pred_check_branch
        %369 = sbr.rel (%p367) target = $region40
      $region39: #{transformer_forward.11} parent=11 // pred_region
        _
      $region40: #{transformer_forward.11} parent=11 // pred_fallthru
        _
      // Predicated region
      $region41: #{transformer_forward.11} parent=11 // pred_check
        %p370 = pneg %p240
      $region42: #{transformer_forward.11} parent=11 // pred_check_branch
        %372 = sbr.rel (%p370) target = $region44
      $region43: #{transformer_forward.11} parent=11 // pred_region
        _
      $region44: #{transformer_forward.11} parent=11 // pred_fallthru
        _
      // Predicated region
      $region45: #{transformer_forward.11} parent=11 // pred_check
        %p373 = pneg %p261
      $region46: #{transformer_forward.11} parent=11 // pred_check_branch
        %375 = sbr.rel (%p373) target = $region48
      $region47: #{transformer_forward.11} parent=11 // pred_region
        _
      $region48: #{transformer_forward.11} parent=11 // pred_fallthru
        _
      // Predicated region
      $region49: #{transformer_forward.11} parent=11 // pred_check
        %p376 = pneg %p282
      $region50: #{transformer_forward.11} parent=11 // pred_check_branch
        %378 = sbr.rel (%p376) target = $region52
      $region51: #{transformer_forward.11} parent=11 // pred_region
        _
      $region52: #{transformer_forward.11} parent=11 // pred_fallthru
        _
    $region12: #{transformer_forward.11} parent=5 // pred_fallthru
      _
    %p379 = scmp.lt.s32.totalorder %s20, 2
    // Predicated region
    $region53: #{transformer_forward.11} parent=5 // pred_check
      %p380 = pneg %p379
    $region54: #{transformer_forward.11} parent=5 // pred_check_branch
      %382 = sbr.rel (%p380) target = $region56
    $region55: #{transformer_forward.11} parent=5 // pred_region
      // Predicated region
      $region57: #{transformer_forward.11} parent=55 // pred_check
        %p383 = pneg %p40
      $region58: #{transformer_forward.11} parent=55 // pred_check_branch
        %385 = sbr.rel (%p383) target = $region60
      $region59: #{transformer_forward.11} parent=55 // pred_region
        %p386 = scmp.lt.s32.totalorder %s20, 1
        %s387 = scalar_select %p386, %s20, 1
        %s388 = smul.addr %s387, 8
        %s389 = scalar_lea.vmem %s0, %s388
      $region60: #{transformer_forward.11} parent=55 // pred_fallthru
        _
      // Predicated region
      $region61: #{transformer_forward.11} parent=55 // pred_check
        %p390 = pneg %p66
      $region62: #{transformer_forward.11} parent=55 // pred_check_branch
        %392 = sbr.rel (%p390) target = $region64
      $region63: #{transformer_forward.11} parent=55 // pred_region
        %p393 = scmp.lt.s32.totalorder %s20, 1
        %s394 = scalar_select %p393, %s20, 1
        %s395 = smul.addr %s394, 8
        %s396 = scalar_lea.vmem %s1, %s395
      $region64: #{transformer_forward.11} parent=55 // pred_fallthru
        _
    $region56: #{transformer_forward.11} parent=5 // pred_fallthru
      _
    %p397 = scmp.le.s32.totalorder 1, %s20
    %p398 = scmp.lt.s32.totalorder %s20, 3
    %p399 = pnand %p397, %p398
    %p400 = pneg %p399
    // Predicated region
    $region65: #{transformer_forward.11} parent=5 // pred_check
      _
    $region66: #{transformer_forward.11} parent=5 // pred_check_branch
      %402 = sbr.rel (%p399) target = $region68
    $region67: #{transformer_forward.11} parent=5 // pred_region
      %s403 = ssub.s32 %s20, 1
      %p404 = scmp.lt.s32.totalorder %s25, 1
      %s405 = scalar_select %p404, %s25, 1
      %s406 = smul.addr %s405, 8
      %s407 = scalar_lea.vmem %s0, %s406
      %p408 = pneg %p46
      %p409 = pneg %p43
      %p410 = scmp.lt.s32.totalorder %s25, 1
      %s411 = scalar_select %p410, %s25, 1
      %s412 = smul.addr %s411, 8
      %s413 = scalar_lea.vmem %s1, %s412
      %p414 = pneg %p72
      %p415 = pneg %p69
      %p416 = pneg %p93
      %p417 = pneg %p90
      %p418 = pneg %p114
      %p419 = pneg %p111
      %p420 = pneg %p135
      %p421 = pneg %p132
      %p422 = pneg %p156
      %p423 = pneg %p153
      %p424 = pneg %p177
      %p425 = pneg %p174
      %p426 = pneg %p198
      %p427 = pneg %p195
      %p428 = pneg %p219
      %p429 = pneg %p216
      %p430 = pneg %p240
      %p431 = pneg %p237
      %p432 = pneg %p261
      %p433 = pneg %p258
      %p434 = pneg %p282
      %p435 = pneg %p279
      %p436 = pneg %p308
      %p437 = pneg %p305
      %p438 = scmp.lt.s32.totalorder %s25, 1
      %s439 = scalar_select %p438, %s25, 1
      %s440 = smul.addr %s439, 8
      %s441 = scalar_lea.vmem %s12, %s440
      %p442 = pneg %p334
      %p443 = pneg %p331
      %p444 = scmp.lt.s32.totalorder %s25, 1
      %s445 = scalar_select %p444, %s25, 1
      %s446 = smul.addr %s445, 8
      %s447 = scalar_lea.vmem %s13, %s446
      %p448 = scmp.lt.s32.totalorder %s25, 1
      %s449 = scalar_select %p448, %s25, 1
      %s450 = smul.addr %s449, 8
      %s451 = scalar_lea.vmem %s0, %s450
      %p452 = scmp.lt.s32.totalorder %s25, 1
      %s453 = scalar_select %p452, %s25, 1
      %s454 = smul.addr %s453, 8
      %s455 = scalar_lea.vmem %s1, %s454
      %p456 = scmp.lt.s32.totalorder %s25, 1
      %s457 = scalar_select %p456, %s25, 1
      %s458 = smul.addr %s457, 8
      %s459 = scalar_lea.vmem %s12, %s458
      %p460 = scmp.lt.s32.totalorder %s25, 1
      %s461 = scalar_select %p460, %s25, 1
      %s462 = smul.addr %s461, 8
      %s463 = scalar_lea.vmem %s13, %s462
      %v465 = vld [vmem:[%s451] sm:$0xff]
      %v466 = vld [vmem:[%s455] sm:$0xff]
      %v467 = vpack.c.bf16 %v465, %v465
      %v468 = vpack.c.bf16 %v466, %v466
      %v469 = vld [vmem:[%s2] sm:$0xf]
      %v470 = vld [vmem:[%s2 + $0x4] sm:$0xf]
      %v471 = vld [vmem:[%s2 + $0x8] sm:$0xf]
      %v472 = vld [vmem:[%s2 + $0xc] sm:$0xf]
      %v473 = vld [vmem:[%s2 + $0x10] sm:$0xf]
      %v474 = vld [vmem:[%s2 + $0x14] sm:$0xf]
      %v475 = vld [vmem:[%s2 + $0x18] sm:$0xf]
      %v476 = vld [vmem:[%s2 + $0x1c] sm:$0xf]
      %v477 = vld [vmem:[%s3] sm:$0x1]
      %v479 = vlaneseq
      %v480 = vshrl.u32 %v479, 7
      %v481 = vsub.s32 0, %v480
      %v482 = vrot.slane %v477, %v481
      %v492 = vunpack.c.l.b16 %v469
      %v493 = vunpack.c.l.b16 %v470
      %v494 = vunpack.c.l.b16 %v471
      %v495 = vunpack.c.l.b16 %v472
      %v496 = vunpack.c.l.b16 %v473
      %v497 = vunpack.c.l.b16 %v474
      %v498 = vunpack.c.l.b16 %v475
      %v499 = vunpack.c.l.b16 %v476
      %v500 = vpack.c.b16 %v493, %v492
      %v501 = vpack.c.b16 %v495, %v494
      %v502 = vpack.c.b16 %v497, %v496
      %v503 = vpack.c.b16 %v499, %v498
      %vm508 = vcmask 523264
      %v510 = vsel %vm508, %v467, 0
      %512 = vmatprep.subr.bf16.mxu0 0
      %513 = vmatpush1.bf16.msra.mxu0 %v500
      %514 = vmatprep.subr.bf16.mxu0 0
      %515 = vmatpush1.bf16.msra.mxu0 %v501
      %516 = vmatprep.subr.bf16.mxu0 0
      %517 = vmatpush1.bf16.msra.mxu0 %v502
      %518 = vmatprep.subr.bf16.mxu0 0
      %519 = vmatpush1.bf16.msra.mxu0 %v503
      %520 = vmatprep.subr.bf16.mxu0 0
      %521 = vmatpush1.bf16.msra.mxu0 0
      %522 = vmatprep.subr.bf16.mxu0 0
      %523 = vmatpush1.bf16.msra.mxu0 0
      %524 = vmatprep.subr.bf16.mxu0 0
      %525 = vmatpush1.bf16.msra.mxu0 0
      %526 = vmatprep.subr.bf16.mxu0 0
      %527 = vmatpush1.bf16.msra.mxu0 0
      %528 = vmatprep.subr.bf16.mxu0 0
      %529 = vmatpush1.bf16.msra.mxu0 0
      %530 = vmatprep.subr.bf16.mxu0 0
      %531 = vmatpush1.bf16.msra.mxu0 0
      %532 = vmatprep.subr.bf16.mxu0 0
      %533 = vmatpush1.bf16.msra.mxu0 0
      %534 = vmatprep.subr.bf16.mxu0 0
      %535 = vmatpush1.bf16.msra.mxu0 0
      %536 = vmatprep.subr.bf16.mxu0 0
      %537 = vmatpush1.bf16.msra.mxu0 0
      %538 = vmatprep.subr.bf16.mxu0 0
      %539 = vmatpush1.bf16.msra.mxu0 0
      %540 = vmatprep.subr.bf16.mxu0 0
      %541 = vmatpush1.bf16.msra.mxu0 0
      %542 = vmatprep.subr.bf16.mxu0 0
      %543 = vmatpush1.bf16.msra.mxu0 0
      %544 = vmatprep.mubr.bf16.mxu0 0
      %545 = vmatmul.mubr.bf16.gmra.mrb[0].mxu0 %v510
      %v546 = vpop.f32.mrb[0].mxu0
      %v547 = vadd.f32 %v482, %v546
      %v548 = vpop.f32.mrb[0].mxu0
      %v549 = vpop.f32.mrb[0].mxu0
      %v550 = vpop.f32.mrb[0].mxu0
      %551 = vdwg.mxu0
      %v552 = vmul.f32 %v547, 0.25
      %v553 = vld [vmem:[%s4] sm:$0xf]
      %v554 = vld [vmem:[%s4 + $0x4] sm:$0xf]
      %v555 = vld [vmem:[%s4 + $0x8] sm:$0xf]
      %v556 = vld [vmem:[%s4 + $0xc] sm:$0xf]
      %v557 = vld [vmem:[%s4 + $0x10] sm:$0xf]
      %v558 = vld [vmem:[%s4 + $0x14] sm:$0xf]
      %v559 = vld [vmem:[%s4 + $0x18] sm:$0xf]
      %v560 = vld [vmem:[%s4 + $0x1c] sm:$0xf]
      %v561 = vld [vmem:[%s5] sm:$0x1]
      %v563 = vlaneseq
      %v564 = vshrl.u32 %v563, 7
      %v565 = vsub.s32 0, %v564
      %v566 = vrot.slane %v561, %v565
      %v576 = vunpack.c.l.b16 %v553
      %v577 = vunpack.c.l.b16 %v554
      %v578 = vunpack.c.l.b16 %v555
      %v579 = vunpack.c.l.b16 %v556
      %v580 = vunpack.c.l.b16 %v557
      %v581 = vunpack.c.l.b16 %v558
      %v582 = vunpack.c.l.b16 %v559
      %v583 = vunpack.c.l.b16 %v560
      %v584 = vpack.c.b16 %v577, %v576
      %v585 = vpack.c.b16 %v579, %v578
      %v586 = vpack.c.b16 %v581, %v580
      %v587 = vpack.c.b16 %v583, %v582
      %v593 = vsel %vm508, %v468, 0
      %595 = vmatprep.subr.bf16.mxu0 0
      %596 = vmatpush1.bf16.msra.mxu0 %v584
      %597 = vmatprep.subr.bf16.mxu0 0
      %598 = vmatpush1.bf16.msra.mxu0 %v585
      %599 = vmatprep.subr.bf16.mxu0 0
      %600 = vmatpush1.bf16.msra.mxu0 %v586
      %601 = vmatprep.subr.bf16.mxu0 0
      %602 = vmatpush1.bf16.msra.mxu0 %v587
      %603 = vmatprep.subr.bf16.mxu0 0
      %604 = vmatpush1.bf16.msra.mxu0 0
      %605 = vmatprep.subr.bf16.mxu0 0
      %606 = vmatpush1.bf16.msra.mxu0 0
      %607 = vmatprep.subr.bf16.mxu0 0
      %608 = vmatpush1.bf16.msra.mxu0 0
      %609 = vmatprep.subr.bf16.mxu0 0
      %610 = vmatpush1.bf16.msra.mxu0 0
      %611 = vmatprep.subr.bf16.mxu0 0
      %612 = vmatpush1.bf16.msra.mxu0 0
      %613 = vmatprep.subr.bf16.mxu0 0
      %614 = vmatpush1.bf16.msra.mxu0 0
      %615 = vmatprep.subr.bf16.mxu0 0
      %616 = vmatpush1.bf16.msra.mxu0 0
      %617 = vmatprep.subr.bf16.mxu0 0
      %618 = vmatpush1.bf16.msra.mxu0 0
      %619 = vmatprep.subr.bf16.mxu0 0
      %620 = vmatpush1.bf16.msra.mxu0 0
      %621 = vmatprep.subr.bf16.mxu0 0
      %622 = vmatpush1.bf16.msra.mxu0 0
      %623 = vmatprep.subr.bf16.mxu0 0
      %624 = vmatpush1.bf16.msra.mxu0 0
      %625 = vmatprep.subr.bf16.mxu0 0
      %626 = vmatpush1.bf16.msra.mxu0 0
      %627 = vmatprep.mubr.bf16.mxu0 0
      %628 = vmatmul.mubr.bf16.gmra.mrb[0].mxu0 %v593
      %v629 = vpop.f32.mrb[0].mxu0
      %v630 = vadd.f32 %v566, %v629
      %v631 = vpop.f32.mrb[0].mxu0
      %v632 = vpop.f32.mrb[0].mxu0
      %v633 = vpop.f32.mrb[0].mxu0
      %634 = vdwg.mxu0
      %v635 = vld [vmem:[%s6] sm:$0xf]
      %v636 = vld [vmem:[%s6 + $0x4] sm:$0xf]
      %v637 = vld [vmem:[%s6 + $0x8] sm:$0xf]
      %v638 = vld [vmem:[%s6 + $0xc] sm:$0xf]
      %v639 = vld [vmem:[%s6 + $0x10] sm:$0xf]
      %v640 = vld [vmem:[%s6 + $0x14] sm:$0xf]
      %v641 = vld [vmem:[%s6 + $0x18] sm:$0xf]
      %v642 = vld [vmem:[%s6 + $0x1c] sm:$0xf]
      %v643 = vld [vmem:[%s7] sm:$0x1]
      %v645 = vlaneseq
      %v646 = vshrl.u32 %v645, 7
      %v647 = vsub.s32 0, %v646
      %v648 = vrot.slane %v643, %v647
      %v658 = vunpack.c.l.b16 %v635
      %v659 = vunpack.c.l.b16 %v636
      %v660 = vunpack.c.l.b16 %v637
      %v661 = vunpack.c.l.b16 %v638
      %v662 = vunpack.c.l.b16 %v639
      %v663 = vunpack.c.l.b16 %v640
      %v664 = vunpack.c.l.b16 %v641
      %v665 = vunpack.c.l.b16 %v642
      %v666 = vpack.c.b16 %v659, %v658
      %v667 = vpack.c.b16 %v661, %v660
      %v668 = vpack.c.b16 %v663, %v662
      %v669 = vpack.c.b16 %v665, %v664
      %674 = vmatprep.subr.bf16.mxu0 0
      %675 = vmatpush1.bf16.msra.mxu0 %v666
      %676 = vmatprep.subr.bf16.mxu0 0
      %677 = vmatpush1.bf16.msra.mxu0 %v667
      %678 = vmatprep.subr.bf16.mxu0 0
      %679 = vmatpush1.bf16.msra.mxu0 %v668
      %680 = vmatprep.subr.bf16.mxu0 0
      %681 = vmatpush1.bf16.msra.mxu0 %v669
      %682 = vmatprep.subr.bf16.mxu0 0
      %683 = vmatpush1.bf16.msra.mxu0 0
      %684 = vmatprep.subr.bf16.mxu0 0
      %685 = vmatpush1.bf16.msra.mxu0 0
      %686 = vmatprep.subr.bf16.mxu0 0
      %687 = vmatpush1.bf16.msra.mxu0 0
      %688 = vmatprep.subr.bf16.mxu0 0
      %689 = vmatpush1.bf16.msra.mxu0 0
      %690 = vmatprep.subr.bf16.mxu0 0
      %691 = vmatpush1.bf16.msra.mxu0 0
      %692 = vmatprep.subr.bf16.mxu0 0
      %693 = vmatpush1.bf16.msra.mxu0 0
      %694 = vmatprep.subr.bf16.mxu0 0
      %695 = vmatpush1.bf16.msra.mxu0 0
      %696 = vmatprep.subr.bf16.mxu0 0
      %697 = vmatpush1.bf16.msra.mxu0 0
      %698 = vmatprep.subr.bf16.mxu0 0
      %699 = vmatpush1.bf16.msra.mxu0 0
      %700 = vmatprep.subr.bf16.mxu0 0
      %701 = vmatpush1.bf16.msra.mxu0 0
      %702 = vmatprep.subr.bf16.mxu0 0
      %703 = vmatpush1.bf16.msra.mxu0 0
      %704 = vmatprep.subr.bf16.mxu0 0
      %705 = vmatpush1.bf16.msra.mxu0 0
      %706 = vmatprep.mubr.bf16.mxu0 0
      %707 = vmatmul.mubr.bf16.gmra.mrb[0].mxu0 %v593
      %v708 = vpop.f32.mrb[0].mxu0
      %v709 = vadd.f32 %v648, %v708
      %v710 = vpop.f32.mrb[0].mxu0
      %v711 = vpop.f32.mrb[0].mxu0
      %v712 = vpop.f32.mrb[0].mxu0
      %713 = vdwg.mxu0
      %v714 = vpack.c.bf16 %v552, %v552
      %v715 = vpack.c.bf16 %v630, %v630
      %v716 = vpack.c.bf16 %v709, %v709
      %vm717 = vcmask 130048
      %v719 = vsel %vm717, %v714, 0
      %v722 = vsel %vm717, %v715, 0
      %724 = vmatprep.subr.bf16.mxu0 0
      %725 = vmatpush1.bf16.xpose.msra.mxu0 %v722
      %726 = vmatprep.subr.bf16.mxu0 0
      %727 = vmatpush1.bf16.xpose.msra.mxu0 0
      %728 = vmatprep.subr.bf16.mxu0 0
      %729 = vmatpush1.bf16.xpose.msra.mxu0 0
      %730 = vmatprep.subr.bf16.mxu0 0
      %731 = vmatpush1.bf16.xpose.msra.mxu0 0
      %732 = vmatprep.subr.bf16.mxu0 0
      %733 = vmatpush1.bf16.xpose.msra.mxu0 0
      %734 = vmatprep.subr.bf16.mxu0 0
      %735 = vmatpush1.bf16.xpose.msra.mxu0 0
      %736 = vmatprep.subr.bf16.mxu0 0
      %737 = vmatpush1.bf16.xpose.msra.mxu0 0
      %738 = vmatprep.subr.bf16.mxu0 0
      %739 = vmatpush1.bf16.xpose.msra.mxu0 0
      %740 = vmatprep.subr.bf16.mxu0 0
      %741 = vmatpush1.bf16.xpose.msra.mxu0 0
      %742 = vmatprep.subr.bf16.mxu0 0
      %743 = vmatpush1.bf16.xpose.msra.mxu0 0
      %744 = vmatprep.subr.bf16.mxu0 0
      %745 = vmatpush1.bf16.xpose.msra.mxu0 0
      %746 = vmatprep.subr.bf16.mxu0 0
      %747 = vmatpush1.bf16.xpose.msra.mxu0 0
      %748 = vmatprep.subr.bf16.mxu0 0
      %749 = vmatpush1.bf16.xpose.msra.mxu0 0
      %750 = vmatprep.subr.bf16.mxu0 0
      %751 = vmatpush1.bf16.xpose.msra.mxu0 0
      %752 = vmatprep.subr.bf16.mxu0 0
      %753 = vmatpush1.bf16.xpose.msra.mxu0 0
      %754 = vmatprep.subr.bf16.mxu0 0
      %755 = vmatpush1.bf16.xpose.msra.mxu0 0
      %756 = vmatprep.mubr.bf16.mxu0 0
      %757 = vmatmul.mubr.bf16.gmra.mrb[0].mxu0 %v719
      %v758 = vpop.f32.mrb[0].mxu0
      %v759 = vadd.f32 0.0, %v758
      %v760 = vpop.f32.mrb[0].mxu0
      %v761 = vpop.f32.mrb[0].mxu0
      %v762 = vpop.f32.mrb[0].mxu0
      %763 = vdwg.mxu0
      %vm764 = vcmask 64512
      %v765 = vsel %vm764, %v759, -inf
      %766 = vmax.xlane.f32.xlu0 %v765
      %v767 = vpop.xlane.xlu0 %766
      %v768 = vsub.f32 %v759, %v767
      %v769 = vmul.f32 %v768, 1.442695
      %v770 = vpow.pop %v769
      %v771 = vsel %vm764, %v770, 0.0
      %772 = vadd.xlane.f32.xlu0 %v771
      %v773 = vpop.xlane.xlu0 %772
      %v774 = vrcp.pop %v773
      %v775 = vmul.f32 %v770, %v774
      %v776 = vpack.c.bf16 %v775, %v775
      %v778 = vsel %vm764, %v776, 0
      %vm780 = vcmask 1043456
      %v782 = vsel %vm780, %v716, 0
      %784 = vmatprep.subr.bf16.mxu0 0
      %785 = vmatpush1.bf16.msra.mxu0 %v782
      %786 = vmatprep.subr.bf16.mxu0 0
      %787 = vmatpush1.bf16.msra.mxu0 0
      %788 = vmatprep.subr.bf16.mxu0 0
      %789 = vmatpush1.bf16.msra.mxu0 0
      %790 = vmatprep.subr.bf16.mxu0 0
      %791 = vmatpush1.bf16.msra.mxu0 0
      %792 = vmatprep.subr.bf16.mxu0 0
      %793 = vmatpush1.bf16.msra.mxu0 0
      %794 = vmatprep.subr.bf16.mxu0 0
      %795 = vmatpush1.bf16.msra.mxu0 0
      %796 = vmatprep.subr.bf16.mxu0 0
      %797 = vmatpush1.bf16.msra.mxu0 0
      %798 = vmatprep.subr.bf16.mxu0 0
      %799 = vmatpush1.bf16.msra.mxu0 0
      %800 = vmatprep.subr.bf16.mxu0 0
      %801 = vmatpush1.bf16.msra.mxu0 0
      %802 = vmatprep.subr.bf16.mxu0 0
      %803 = vmatpush1.bf16.msra.mxu0 0
      %804 = vmatprep.subr.bf16.mxu0 0
      %805 = vmatpush1.bf16.msra.mxu0 0
      %806 = vmatprep.subr.bf16.mxu0 0
      %807 = vmatpush1.bf16.msra.mxu0 0
      %808 = vmatprep.subr.bf16.mxu0 0
      %809 = vmatpush1.bf16.msra.mxu0 0
      %810 = vmatprep.subr.bf16.mxu0 0
      %811 = vmatpush1.bf16.msra.mxu0 0
      %812 = vmatprep.subr.bf16.mxu0 0
      %813 = vmatpush1.bf16.msra.mxu0 0
      %814 = vmatprep.subr.bf16.mxu0 0
      %815 = vmatpush1.bf16.msra.mxu0 0
      %816 = vmatprep.mubr.bf16.mxu0 0
      %817 = vmatmul.mubr.bf16.gmra.mrb[0].mxu0 %v778
      %v818 = vpop.f32.mrb[0].mxu0
      %v819 = vadd.f32 0.0, %v818
      %v820 = vpop.f32.mrb[0].mxu0
      %v821 = vpop.f32.mrb[0].mxu0
      %v822 = vpop.f32.mrb[0].mxu0
      %823 = vdwg.mxu0
      %825 = vrot.lane.b32.xlu0 %v714, 112
      %v826 = vpop.permute.xlu0 %825
      %828 = vrot.lane.b32.xlu0 %v715, 112
      %v829 = vpop.permute.xlu0 %828
      %v831 = vsel %vm717, %v826, 0
      %v834 = vsel %vm717, %v829, 0
      %836 = vmatprep.subr.bf16.mxu0 0
      %837 = vmatpush1.bf16.xpose.msra.mxu0 %v834
      %838 = vmatprep.subr.bf16.mxu0 0
      %839 = vmatpush1.bf16.xpose.msra.mxu0 0
      %840 = vmatprep.subr.bf16.mxu0 0
      %841 = vmatpush1.bf16.xpose.msra.mxu0 0
      %842 = vmatprep.subr.bf16.mxu0 0
      %843 = vmatpush1.bf16.xpose.msra.mxu0 0
      %844 = vmatprep.subr.bf16.mxu0 0
      %845 = vmatpush1.bf16.xpose.msra.mxu0 0
      %846 = vmatprep.subr.bf16.mxu0 0
      %847 = vmatpush1.bf16.xpose.msra.mxu0 0
      %848 = vmatprep.subr.bf16.mxu0 0
      %849 = vmatpush1.bf16.xpose.msra.mxu0 0
      %850 = vmatprep.subr.bf16.mxu0 0
      %851 = vmatpush1.bf16.xpose.msra.mxu0 0
      %852 = vmatprep.subr.bf16.mxu0 0
      %853 = vmatpush1.bf16.xpose.msra.mxu0 0
      %854 = vmatprep.subr.bf16.mxu0 0
      %855 = vmatpush1.bf16.xpose.msra.mxu0 0
      %856 = vmatprep.subr.bf16.mxu0 0
      %857 = vmatpush1.bf16.xpose.msra.mxu0 0
      %858 = vmatprep.subr.bf16.mxu0 0
      %859 = vmatpush1.bf16.xpose.msra.mxu0 0
      %860 = vmatprep.subr.bf16.mxu0 0
      %861 = vmatpush1.bf16.xpose.msra.mxu0 0
      %862 = vmatprep.subr.bf16.mxu0 0
      %863 = vmatpush1.bf16.xpose.msra.mxu0 0
      %864 = vmatprep.subr.bf16.mxu0 0
      %865 = vmatpush1.bf16.xpose.msra.mxu0 0
      %866 = vmatprep.subr.bf16.mxu0 0
      %867 = vmatpush1.bf16.xpose.msra.mxu0 0
      %868 = vmatprep.mubr.bf16.mxu0 0
      %869 = vmatmul.mubr.bf16.gmra.mrb[0].mxu0 %v831
      %v870 = vpop.f32.mrb[0].mxu0
      %v871 = vadd.f32 0.0, %v870
      %v872 = vpop.f32.mrb[0].mxu0
      %v873 = vpop.f32.mrb[0].mxu0
      %v874 = vpop.f32.mrb[0].mxu0
      %875 = vdwg.mxu0
      %v876 = vsel %vm764, %v871, -inf
      %877 = vmax.xlane.f32.xlu0 %v876
      %v878 = vpop.xlane.xlu0 %877
      %v879 = vsub.f32 %v871, %v878
      %v880 = vmul.f32 %v879, 1.442695
      %v881 = vpow.pop %v880
      %v882 = vsel %vm764, %v881, 0.0
      %883 = vadd.xlane.f32.xlu0 %v882
      %v884 = vpop.xlane.xlu0 %883
      %v885 = vrcp.pop %v884
      %v886 = vmul.f32 %v881, %v885
      %v887 = vpack.c.bf16 %v886, %v886
      %889 = vrot.lane.b32.xlu0 %v716, 112
      %v890 = vpop.permute.xlu0 %889
      %v892 = vsel %vm764, %v887, 0
      %v895 = vsel %vm780, %v890, 0
      %897 = vmatprep.subr.bf16.mxu0 0
      %898 = vmatpush1.bf16.msra.mxu0 %v895
      %899 = vmatprep.subr.bf16.mxu0 0
      %900 = vmatpush1.bf16.msra.mxu0 0
      %901 = vmatprep.subr.bf16.mxu0 0
      %902 = vmatpush1.bf16.msra.mxu0 0
      %903 = vmatprep.subr.bf16.mxu0 0
      %904 = vmatpush1.bf16.msra.mxu0 0
      %905 = vmatprep.subr.bf16.mxu0 0
      %906 = vmatpush1.bf16.msra.mxu0 0
      %907 = vmatprep.subr.bf16.mxu0 0
      %908 = vmatpush1.bf16.msra.mxu0 0
      %909 = vmatprep.subr.bf16.mxu0 0
      %910 = vmatpush1.bf16.msra.mxu0 0
      %911 = vmatprep.subr.bf16.mxu0 0
      %912 = vmatpush1.bf16.msra.mxu0 0
      %913 = vmatprep.subr.bf16.mxu0 0
      %914 = vmatpush1.bf16.msra.mxu0 0
      %915 = vmatprep.subr.bf16.mxu0 0
      %916 = vmatpush1.bf16.msra.mxu0 0
      %917 = vmatprep.subr.bf16.mxu0 0
      %918 = vmatpush1.bf16.msra.mxu0 0
      %919 = vmatprep.subr.bf16.mxu0 0
      %920 = vmatpush1.bf16.msra.mxu0 0
      %921 = vmatprep.subr.bf16.mxu0 0
      %922 = vmatpush1.bf16.msra.mxu0 0
      %923 = vmatprep.subr.bf16.mxu0 0
      %924 = vmatpush1.bf16.msra.mxu0 0
      %925 = vmatprep.subr.bf16.mxu0 0
      %926 = vmatpush1.bf16.msra.mxu0 0
      %927 = vmatprep.subr.bf16.mxu0 0
      %928 = vmatpush1.bf16.msra.mxu0 0
      %929 = vmatprep.mubr.bf16.mxu0 0
      %930 = vmatmul.mubr.bf16.gmra.mrb[0].mxu0 %v892
      %v931 = vpop.f32.mrb[0].mxu0
      %v932 = vadd.f32 0.0, %v931
      %v933 = vpop.f32.mrb[0].mxu0
      %v934 = vpop.f32.mrb[0].mxu0
      %v935 = vpop.f32.mrb[0].mxu0
      %936 = vdwg.mxu0
      %937 = vrot.lane.b32.xlu0 %v714, 96
      %v938 = vpop.permute.xlu0 %937
      %939 = vrot.lane.b32.xlu0 %v715, 96
      %v940 = vpop.permute.xlu0 %939
      %v942 = vsel %vm717, %v938, 0
      %v945 = vsel %vm717, %v940, 0
      %947 = vmatprep.subr.bf16.mxu0 0
      %948 = vmatpush1.bf16.xpose.msra.mxu0 %v945
      %949 = vmatprep.subr.bf16.mxu0 0
      %950 = vmatpush1.bf16.xpose.msra.mxu0 0
      %951 = vmatprep.subr.bf16.mxu0 0
      %952 = vmatpush1.bf16.xpose.msra.mxu0 0
      %953 = vmatprep.subr.bf16.mxu0 0
      %954 = vmatpush1.bf16.xpose.msra.mxu0 0
      %955 = vmatprep.subr.bf16.mxu0 0
      %956 = vmatpush1.bf16.xpose.msra.mxu0 0
      %957 = vmatprep.subr.bf16.mxu0 0
      %958 = vmatpush1.bf16.xpose.msra.mxu0 0
      %959 = vmatprep.subr.bf16.mxu0 0
      %960 = vmatpush1.bf16.xpose.msra.mxu0 0
      %961 = vmatprep.subr.bf16.mxu0 0
      %962 = vmatpush1.bf16.xpose.msra.mxu0 0
      %963 = vmatprep.subr.bf16.mxu0 0
      %964 = vmatpush1.bf16.xpose.msra.mxu0 0
      %965 = vmatprep.subr.bf16.mxu0 0
      %966 = vmatpush1.bf16.xpose.msra.mxu0 0
      %967 = vmatprep.subr.bf16.mxu0 0
      %968 = vmatpush1.bf16.xpose.msra.mxu0 0
      %969 = vmatprep.subr.bf16.mxu0 0
      %970 = vmatpush1.bf16.xpose.msra.mxu0 0
      %971 = vmatprep.subr.bf16.mxu0 0
      %972 = vmatpush1.bf16.xpose.msra.mxu0 0
      %973 = vmatprep.subr.bf16.mxu0 0
      %974 = vmatpush1.bf16.xpose.msra.mxu0 0
      %975 = vmatprep.subr.bf16.mxu0 0
      %976 = vmatpush1.bf16.xpose.msra.mxu0 0
      %977 = vmatprep.subr.bf16.mxu0 0
      %978 = vmatpush1.bf16.xpose.msra.mxu0 0
      %979 = vmatprep.mubr.bf16.mxu0 0
      %980 = vmatmul.mubr.bf16.gmra.mrb[0].mxu0 %v942
      %v981 = vpop.f32.mrb[0].mxu0
      %v982 = vadd.f32 0.0, %v981
      %v983 = vpop.f32.mrb[0].mxu0
      %v984 = vpop.f32.mrb[0].mxu0
      %v985 = vpop.f32.mrb[0].mxu0
      %986 = vdwg.mxu0
      %v987 = vsel %vm764, %v982, -inf
      %988 = vmax.xlane.f32.xlu0 %v987
      %v989 = vpop.xlane.xlu0 %988
      %v990 = vsub.f32 %v982, %v989
      %v991 = vmul.f32 %v990, 1.442695
      %v992 = vpow.pop %v991
      %v993 = vsel %vm764, %v992, 0.0
      %994 = vadd.xlane.f32.xlu0 %v993
      %v995 = vpop.xlane.xlu0 %994
      %v996 = vrcp.pop %v995
      %v997 = vmul.f32 %v992, %v996
      %v998 = vpack.c.bf16 %v997, %v997
      %999 = vrot.lane.b32.xlu0 %v716, 96
      %v1000 = vpop.permute.xlu0 %999
      %v1002 = vsel %vm764, %v998, 0
      %v1005 = vsel %vm780, %v1000, 0
      %1007 = vmatprep.subr.bf16.mxu0 0
      %1008 = vmatpush1.bf16.msra.mxu0 %v1005
      %1009 = vmatprep.subr.bf16.mxu0 0
      %1010 = vmatpush1.bf16.msra.mxu0 0
      %1011 = vmatprep.subr.bf16.mxu0 0
      %1012 = vmatpush1.bf16.msra.mxu0 0
      %1013 = vmatprep.subr.bf16.mxu0 0
      %1014 = vmatpush1.bf16.msra.mxu0 0
      %1015 = vmatprep.subr.bf16.mxu0 0
      %1016 = vmatpush1.bf16.msra.mxu0 0
      %1017 = vmatprep.subr.bf16.mxu0 0
      %1018 = vmatpush1.bf16.msra.mxu0 0
      %1019 = vmatprep.subr.bf16.mxu0 0
      %1020 = vmatpush1.bf16.msra.mxu0 0
      %1021 = vmatprep.subr.bf16.mxu0 0
      %1022 = vmatpush1.bf16.msra.mxu0 0
      %1023 = vmatprep.subr.bf16.mxu0 0
      %1024 = vmatpush1.bf16.msra.mxu0 0
      %1025 = vmatprep.subr.bf16.mxu0 0
      %1026 = vmatpush1.bf16.msra.mxu0 0
      %1027 = vmatprep.subr.bf16.mxu0 0
      %1028 = vmatpush1.bf16.msra.mxu0 0
      %1029 = vmatprep.subr.bf16.mxu0 0
      %1030 = vmatpush1.bf16.msra.mxu0 0
      %1031 = vmatprep.subr.bf16.mxu0 0
      %1032 = vmatpush1.bf16.msra.mxu0 0
      %1033 = vmatprep.subr.bf16.mxu0 0
      %1034 = vmatpush1.bf16.msra.mxu0 0
      %1035 = vmatprep.subr.bf16.mxu0 0
      %1036 = vmatpush1.bf16.msra.mxu0 0
      %1037 = vmatprep.subr.bf16.mxu0 0
      %1038 = vmatpush1.bf16.msra.mxu0 0
      %1039 = vmatprep.mubr.bf16.mxu0 0
      %1040 = vmatmul.mubr.bf16.gmra.mrb[0].mxu0 %v1002
      %v1041 = vpop.f32.mrb[0].mxu0
      %v1042 = vadd.f32 0.0, %v1041
      %v1043 = vpop.f32.mrb[0].mxu0
      %v1044 = vpop.f32.mrb[0].mxu0
      %v1045 = vpop.f32.mrb[0].mxu0
      %1046 = vdwg.mxu0
      %1047 = vrot.lane.b32.xlu0 %v714, 80
      %v1048 = vpop.permute.xlu0 %1047
      %1049 = vrot.lane.b32.xlu0 %v715, 80
      %v1050 = vpop.permute.xlu0 %1049
      %v1052 = vsel %vm717, %v1048, 0
      %v1055 = vsel %vm717, %v1050, 0
      %1057 = vmatprep.subr.bf16.mxu0 0
      %1058 = vmatpush1.bf16.xpose.msra.mxu0 %v1055
      %1059 = vmatprep.subr.bf16.mxu0 0
      %1060 = vmatpush1.bf16.xpose.msra.mxu0 0
      %1061 = vmatprep.subr.bf16.mxu0 0
      %1062 = vmatpush1.bf16.xpose.msra.mxu0 0
      %1063 = vmatprep.subr.bf16.mxu0 0
      %1064 = vmatpush1.bf16.xpose.msra.mxu0 0
      %1065 = vmatprep.subr.bf16.mxu0 0
      %1066 = vmatpush1.bf16.xpose.msra.mxu0 0
      %1067 = vmatprep.subr.bf16.mxu0 0
      %1068 = vmatpush1.bf16.xpose.msra.mxu0 0
      %1069 = vmatprep.subr.bf16.mxu0 0
      %1070 = vmatpush1.bf16.xpose.msra.mxu0 0
      %1071 = vmatprep.subr.bf16.mxu0 0
      %1072 = vmatpush1.bf16.xpose.msra.mxu0 0
      %1073 = vmatprep.subr.bf16.mxu0 0
      %1074 = vmatpush1.bf16.xpose.msra.mxu0 0
      %1075 = vmatprep.subr.bf16.mxu0 0
      %1076 = vmatpush1.bf16.xpose.msra.mxu0 0
      %1077 = vmatprep.subr.bf16.mxu0 0
      %1078 = vmatpush1.bf16.xpose.msra.mxu0 0
      %1079 = vmatprep.subr.bf16.mxu0 0
      %1080 = vmatpush1.bf16.xpose.msra.mxu0 0
      %1081 = vmatprep.subr.bf16.mxu0 0
      %1082 = vmatpush1.bf16.xpose.msra.mxu0 0
      %1083 = vmatprep.subr.bf16.mxu0 0
      %1084 = vmatpush1.bf16.xpose.msra.mxu0 0
      %1085 = vmatprep.subr.bf16.mxu0 0
      %1086 = vmatpush1.bf16.xpose.msra.mxu0 0
      %1087 = vmatprep.subr.bf16.mxu0 0
      %1088 = vmatpush1.bf16.xpose.msra.mxu0 0
      %1089 = vmatprep.mubr.bf16.mxu0 0
      %1090 = vmatmul.mubr.bf16.gmra.mrb[0].mxu0 %v1052
      %v1091 = vpop.f32.mrb[0].mxu0
      %v1092 = vadd.f32 0.0, %v1091
      %v1093 = vpop.f32.mrb[0].mxu0
      %v1094 = vpop.f32.mrb[0].mxu0
      %v1095 = vpop.f32.mrb[0].mxu0
      %1096 = vdwg.mxu0
      %v1097 = vsel %vm764, %v1092, -inf
      %1098 = vmax.xlane.f32.xlu0 %v1097
      %v1099 = vpop.xlane.xlu0 %1098
      %v1100 = vsub.f32 %v1092, %v1099
      %v1101 = vmul.f32 %v1100, 1.442695
      %v1102 = vpow.pop %v1101
      %v1103 = vsel %vm764, %v1102, 0.0
      %1104 = vadd.xlane.f32.xlu0 %v1103
      %v1105 = vpop.xlane.xlu0 %1104
      %v1106 = vrcp.pop %v1105
      %v1107 = vmul.f32 %v1102, %v1106
      %v1108 = vpack.c.bf16 %v1107, %v1107
      %1109 = vrot.lane.b32.xlu0 %v716, 80
      %v1110 = vpop.permute.xlu0 %1109
      %v1112 = vsel %vm764, %v1108, 0
      %v1115 = vsel %vm780, %v1110, 0
      %1117 = vmatprep.subr.bf16.mxu0 0
      %1118 = vmatpush1.bf16.msra.mxu0 %v1115
      %1119 = vmatprep.subr.bf16.mxu0 0
      %1120 = vmatpush1.bf16.msra.mxu0 0
      %1121 = vmatprep.subr.bf16.mxu0 0
      %1122 = vmatpush1.bf16.msra.mxu0 0
      %1123 = vmatprep.subr.bf16.mxu0 0
      %1124 = vmatpush1.bf16.msra.mxu0 0
      %1125 = vmatprep.subr.bf16.mxu0 0
      %1126 = vmatpush1.bf16.msra.mxu0 0
      %1127 = vmatprep.subr.bf16.mxu0 0
      %1128 = vmatpush1.bf16.msra.mxu0 0
      %1129 = vmatprep.subr.bf16.mxu0 0
      %1130 = vmatpush1.bf16.msra.mxu0 0
      %1131 = vmatprep.subr.bf16.mxu0 0
      %1132 = vmatpush1.bf16.msra.mxu0 0
      %1133 = vmatprep.subr.bf16.mxu0 0
      %1134 = vmatpush1.bf16.msra.mxu0 0
      %1135 = vmatprep.subr.bf16.mxu0 0
      %1136 = vmatpush1.bf16.msra.mxu0 0
      %1137 = vmatprep.subr.bf16.mxu0 0
      %1138 = vmatpush1.bf16.msra.mxu0 0
      %1139 = vmatprep.subr.bf16.mxu0 0
      %1140 = vmatpush1.bf16.msra.mxu0 0
      %1141 = vmatprep.subr.bf16.mxu0 0
      %1142 = vmatpush1.bf16.msra.mxu0 0
      %1143 = vmatprep.subr.bf16.mxu0 0
      %1144 = vmatpush1.bf16.msra.mxu0 0
      %1145 = vmatprep.subr.bf16.mxu0 0
      %1146 = vmatpush1.bf16.msra.mxu0 0
      %1147 = vmatprep.subr.bf16.mxu0 0
      %1148 = vmatpush1.bf16.msra.mxu0 0
      %1149 = vmatprep.mubr.bf16.mxu0 0
      %1150 = vmatmul.mubr.bf16.gmra.mrb[0].mxu0 %v1112
      %v1151 = vpop.f32.mrb[0].mxu0
      %v1152 = vadd.f32 0.0, %v1151
      %v1153 = vpop.f32.mrb[0].mxu0
      %v1154 = vpop.f32.mrb[0].mxu0
      %v1155 = vpop.f32.mrb[0].mxu0
      %1156 = vdwg.mxu0
      %1158 = vrot.lane.b32.xlu0 %v932, 16
      %v1159 = vpop.permute.xlu0 %1158
      %1162 = vrot.lane.b32.xlu0 %v1042, 32
      %v1163 = vpop.permute.xlu0 %1162
      %1166 = vrot.lane.b32.xlu0 %v1152, 48
      %v1167 = vpop.permute.xlu0 %1166
      %v1169 = vsel %vm717, %v819, %v1159
      %vm1170 = vcmask 261120
      %v1171 = vsel %vm1170, %v1169, %v1163
      %vm1172 = vcmask 392192
      %v1173 = vsel %vm1172, %v1171, %v1167
      %v1174 = vpack.c.bf16 %v1173, %v1173
      %v1175 = vld [vmem:[%s8] sm:$0xf]
      %v1176 = vld [vmem:[%s8 + $0x4] sm:$0xf]
      %v1177 = vld [vmem:[%s8 + $0x8] sm:$0xf]
      %v1178 = vld [vmem:[%s8 + $0xc] sm:$0xf]
      %v1179 = vld [vmem:[%s8 + $0x10] sm:$0xf]
      %v1180 = vld [vmem:[%s8 + $0x14] sm:$0xf]
      %v1181 = vld [vmem:[%s8 + $0x18] sm:$0xf]
      %v1182 = vld [vmem:[%s8 + $0x1c] sm:$0xf]
      %v1183 = vld [vmem:[%s9] sm:$0x1]
      %v1185 = vlaneseq
      %v1186 = vshrl.u32 %v1185, 7
      %v1187 = vsub.s32 0, %v1186
      %v1188 = vrot.slane %v1183, %v1187
      %v1198 = vunpack.c.l.b16 %v1175
      %v1199 = vunpack.c.l.b16 %v1176
      %v1200 = vunpack.c.l.b16 %v1177
      %v1201 = vunpack.c.l.b16 %v1178
      %v1202 = vunpack.c.l.b16 %v1179
      %v1203 = vunpack.c.l.b16 %v1180
      %v1204 = vunpack.c.l.b16 %v1181
      %v1205 = vunpack.c.l.b16 %v1182
      %v1206 = vpack.c.b16 %v1199, %v1198
      %v1207 = vpack.c.b16 %v1201, %v1200
      %v1208 = vpack.c.b16 %v1203, %v1202
      %v1209 = vpack.c.b16 %v1205, %v1204
      %v1215 = vsel %vm508, %v1174, 0
      %1217 = vmatprep.subr.bf16.mxu0 0
      %1218 = vmatpush1.bf16.msra.mxu0 %v1206
      %1219 = vmatprep.subr.bf16.mxu0 0
      %1220 = vmatpush1.bf16.msra.mxu0 %v1207
      %1221 = vmatprep.subr.bf16.mxu0 0
      %1222 = vmatpush1.bf16.msra.mxu0 %v1208
      %1223 = vmatprep.subr.bf16.mxu0 0
      %1224 = vmatpush1.bf16.msra.mxu0 %v1209
      %1225 = vmatprep.subr.bf16.mxu0 0
      %1226 = vmatpush1.bf16.msra.mxu0 0
      %1227 = vmatprep.subr.bf16.mxu0 0
      %1228 = vmatpush1.bf16.msra.mxu0 0
      %1229 = vmatprep.subr.bf16.mxu0 0
      %1230 = vmatpush1.bf16.msra.mxu0 0
      %1231 = vmatprep.subr.bf16.mxu0 0
      %1232 = vmatpush1.bf16.msra.mxu0 0
      %1233 = vmatprep.subr.bf16.mxu0 0
      %1234 = vmatpush1.bf16.msra.mxu0 0
      %1235 = vmatprep.subr.bf16.mxu0 0
      %1236 = vmatpush1.bf16.msra.mxu0 0
      %1237 = vmatprep.subr.bf16.mxu0 0
      %1238 = vmatpush1.bf16.msra.mxu0 0
      %1239 = vmatprep.subr.bf16.mxu0 0
      %1240 = vmatpush1.bf16.msra.mxu0 0
      %1241 = vmatprep.subr.bf16.mxu0 0
      %1242 = vmatpush1.bf16.msra.mxu0 0
      %1243 = vmatprep.subr.bf16.mxu0 0
      %1244 = vmatpush1.bf16.msra.mxu0 0
      %1245 = vmatprep.subr.bf16.mxu0 0
      %1246 = vmatpush1.bf16.msra.mxu0 0
      %1247 = vmatprep.subr.bf16.mxu0 0
      %1248 = vmatpush1.bf16.msra.mxu0 0
      %1249 = vmatprep.mubr.bf16.mxu0 0
      %1250 = vmatmul.mubr.bf16.gmra.mrb[0].mxu0 %v1215
      %v1251 = vpop.f32.mrb[0].mxu0
      %v1252 = vadd.f32 %v1188, %v1251
      %v1253 = vpop.f32.mrb[0].mxu0
      %v1254 = vpop.f32.mrb[0].mxu0
      %v1255 = vpop.f32.mrb[0].mxu0
      %1256 = vdwg.mxu0
      %1258 = vrot.lane.b32.xlu0 %v886, 8
      %v1259 = vpop.permute.xlu0 %1258
      %1262 = vrot.lane.b32.xlu0 %v997, 16
      %v1263 = vpop.permute.xlu0 %1262
      %1266 = vrot.lane.b32.xlu0 %v1107, 24
      %v1267 = vpop.permute.xlu0 %1266
      %v1269 = vsel %vm764, %v775, %v1259
      %v1270 = vsel %vm717, %v1269, %v1263
      %vm1271 = vcmask 195584
      %v1272 = vsel %vm1271, %v1270, %v1267
      %1273 = vst.msk [vmem:[%s463] sm:$0xff] %vm1170, %v1272
      %v1274 = vadd.f32 %v465, %v1252
      %v1275 = vsel %vm508, %v1274, 0.0
      %1276 = vadd.xlane.f32.xlu0 %v1275
      %v1277 = vpop.xlane.xlu0 %1276
      %v1278 = vrcp.pop 64.0
      %v1279 = vmul.f32 %v1277, %v1278
      %v1280 = vsub.f32 %v1274, %v1279
      %v1281 = vmul.f32 %v1280, %v1280
      %v1282 = vsel %vm508, %v1281, 0.0
      %1283 = vadd.xlane.f32.xlu0 %v1282
      %v1284 = vpop.xlane.xlu0 %1283
      %v1285 = vmul.f32 %v1284, %v1278
      %v1286 = vadd.f32 %v1285, 1e-05
      %v1287 = vrsqrt.pop %v1286
      %v1288 = vmul.f32 %v1280, %v1287
      %v1289 = vld [vmem:[%s10] sm:$0x1]
      %v1291 = vlaneseq
      %v1292 = vshrl.u32 %v1291, 7
      %v1293 = vsub.s32 0, %v1292
      %v1294 = vrot.slane %v1289, %v1293
      %v1296 = vmul.f32 %v1288, %v1294
      %v1297 = vld [vmem:[%s11] sm:$0x1]
      %v1299 = vlaneseq
      %v1300 = vshrl.u32 %v1299, 7
      %v1301 = vsub.s32 0, %v1300
      %v1302 = vrot.slane %v1297, %v1301
      %v1304 = vadd.f32 %v1296, %v1302
      %1305 = vst.msk [vmem:[%s459] sm:$0xff] %vm508, %v1304
      %p1306 = scmp.lt.s32.totalorder %s25, 1
      %s1307 = scalar_select %p1306, %s25, 1
      %s1308 = smul.addr %s1307, 8
      %s1309 = scalar_lea.vmem %s12, %s1308
      %p1310 = scmp.lt.s32.totalorder %s25, 1
      %s1311 = scalar_select %p1310, %s25, 1
      %s1312 = smul.addr %s1311, 8
      %s1313 = scalar_lea.vmem %s13, %s1312
      // Predicated region
      $region69: #{transformer_forward.11} parent=67 // pred_check
        %p1314 = pneg %p305
      $region70: #{transformer_forward.11} parent=67 // pred_check_branch
        %1316 = sbr.rel (%p1314) target = $region72
      $region71: #{transformer_forward.11} parent=67 // pred_region
        _
      $region72: #{transformer_forward.11} parent=67 // pred_fallthru
        _
      // Predicated region
      $region73: #{transformer_forward.11} parent=67 // pred_check
        %p1317 = pneg %p331
      $region74: #{transformer_forward.11} parent=67 // pred_check_branch
        %1319 = sbr.rel (%p1317) target = $region76
      $region75: #{transformer_forward.11} parent=67 // pred_region
        _
      $region76: #{transformer_forward.11} parent=67 // pred_fallthru
        _
    $region68: #{transformer_forward.11} parent=5 // pred_fallthru
      _
    %p1320 = scmp.le.s32.totalorder 2, %s20
    // Predicated region
    $region77: #{transformer_forward.11} parent=5 // pred_check
      %p1321 = pneg %p1320
    $region78: #{transformer_forward.11} parent=5 // pred_check_branch
      %1323 = sbr.rel (%p1321) target = $region80
    $region79: #{transformer_forward.11} parent=5 // pred_region
      %s1324 = ssub.s32 %s20, 2
      // Predicated region
      $region81: #{transformer_forward.11} parent=79 // pred_check
        %p1325 = pneg %p311
      $region82: #{transformer_forward.11} parent=79 // pred_check_branch
        %1327 = sbr.rel (%p1325) target = $region84
      $region83: #{transformer_forward.11} parent=79 // pred_region
        %p1328 = scmp.lt.s32.totalorder %s26, 1
        %s1329 = scalar_select %p1328, %s26, 1
        %s1330 = smul.addr %s1329, 8
        %s1331 = scalar_lea.vmem %s12, %s1330
      $region84: #{transformer_forward.11} parent=79 // pred_fallthru
        _
      // Predicated region
      $region85: #{transformer_forward.11} parent=79 // pred_check
        %p1332 = pneg %p337
      $region86: #{transformer_forward.11} parent=79 // pred_check_branch
        %1334 = sbr.rel (%p1332) target = $region88
      $region87: #{transformer_forward.11} parent=79 // pred_region
        %p1335 = scmp.lt.s32.totalorder %s26, 1
        %s1336 = scalar_select %p1335, %s26, 1
        %s1337 = smul.addr %s1336, 8
        %s1338 = scalar_lea.vmem %s13, %s1337
      $region88: #{transformer_forward.11} parent=79 // pred_fallthru
        _
    $region80: #{transformer_forward.11} parent=5 // pred_fallthru
      _
  $region6: #{transformer_forward.11} parent=0 // loop_footer
    %s24 = sadd.s32 1, %s20
  $region7: #{transformer_forward.11} parent=0 // loop_footer_branch
    %19 = sbr.rel target = $region3
  $region8: #{transformer_forward.11} parent=0 // loop_exit
    _

// kernel: transformer_forward.15
$region0: #{transformer_forward.15}
  #allocation0 [shape = 'u32[]', space=smem, size = 0x4, offset = 0x4, fixed_abs, tag = 'smem constant byte address 0x4 - core index']
  #allocation1 [shape = 'u32[144,128]{1,0:T(1,128)}', space=vmem, size = 0x12000, scoped, tag = 'internal scratch']
  %s0 = inlined_call_operand.vmem [shape: f32[2,8,64], index: 0, kind: input, shape index: {}, may-alias: {0,1}]
  %s1 = inlined_call_operand.vmem [shape: f32[2,8,64], index: 1, kind: input, shape index: {}, may-alias: {0,1}]
  %s2 = inlined_call_operand.vmem [shape: bf16[64,64], index: 2, kind: input, shape index: {}]
  %s3 = inlined_call_operand.vmem [shape: f32[1,64], index: 3, kind: input, shape index: {}]
  %s4 = inlined_call_operand.vmem [shape: bf16[64,64], index: 4, kind: input, shape index: {}]
  %s5 = inlined_call_operand.vmem [shape: f32[1,64], index: 5, kind: input, shape index: {}]
  %s6 = inlined_call_operand.vmem [shape: bf16[64,64], index: 6, kind: input, shape index: {}]
  %s7 = inlined_call_operand.vmem [shape: f32[1,64], index: 7, kind: input, shape index: {}]
  %s8 = inlined_call_operand.vmem [shape: bf16[64,64], index: 8, kind: input, shape index: {}]
  %s9 = inlined_call_operand.vmem [shape: f32[1,64], index: 9, kind: input, shape index: {}]
  %s10 = inlined_call_operand.vmem [shape: f32[1,64], index: 10, kind: input, shape index: {}]
  %s11 = inlined_call_operand.vmem [shape: f32[1,64], index: 11, kind: input, shape index: {}]
  %s12 = inlined_call_operand.vmem [shape: f32[2,8,64], index: 12, kind: output, shape index: {0}]
  %s13 = inlined_call_operand.vmem [shape: f32[2,8,32], index: 13, kind: output, shape index: {1}]
  %14 = xla_tuple %s12, %s13
  %s15 = sld [smem:[#allocation0]]
  $region89: #{transformer_forward.15} parent=0
    _
  %s17 = ssub.s32 1, %s15
  %s18 = scalar_select 0, %s17, %s15
  loop: start=0, step=1, limit=4
  $region2: #{transformer_forward.15} parent=0 // loop_pre_header
    _
  $region3: #{transformer_forward.15} parent=0 // loop_header
    %s20 = sphi 0, %s24
    %p21 = scmp.ge.s32.totalorder %s20, 4
    %s30 = sphi 0, %s32
    %s33 = sphi 0, %s30
    %s34 = sphi 0, %s33
    %s50 = sphi 0, %s34
    %s56 = sphi 0, %s58
    %s59 = sphi 0, %s56
    %s60 = sphi 0, %s59
    %s76 = sphi 0, %s60
    %s80 = sphi 0, %s80
    %s82 = sphi 0, %s80
    %s83 = sphi 0, %s82
    %s97 = sphi 0, %s83
    %s101 = sphi 0, %s101
    %s103 = sphi 0, %s101
    %s104 = sphi 0, %s103
    %s118 = sphi 0, %s104
    %s122 = sphi 0, %s122
    %s124 = sphi 0, %s122
    %s125 = sphi 0, %s124
    %s139 = sphi 0, %s125
    %s143 = sphi 0, %s143
    %s145 = sphi 0, %s143
    %s146 = sphi 0, %s145
    %s160 = sphi 0, %s146
    %s164 = sphi 0, %s164
    %s166 = sphi 0, %s164
    %s167 = sphi 0, %s166
    %s181 = sphi 0, %s167
    %s185 = sphi 0, %s185
    %s187 = sphi 0, %s185
    %s188 = sphi 0, %s187
    %s202 = sphi 0, %s188
    %s206 = sphi 0, %s206
    %s208 = sphi 0, %s206
    %s209 = sphi 0, %s208
    %s223 = sphi 0, %s209
    %s227 = sphi 0, %s227
    %s229 = sphi 0, %s227
    %s230 = sphi 0, %s229
    %s244 = sphi 0, %s230
    %s248 = sphi 0, %s248
    %s250 = sphi 0, %s248
    %s251 = sphi 0, %s250
    %s265 = sphi 0, %s251
    %s269 = sphi 0, %s269
    %s271 = sphi 0, %s269
    %s272 = sphi 0, %s271
    %s286 = sphi 0, %s272
    %s292 = sphi 0, %s294
    %s295 = sphi 0, %s292
    %s296 = sphi 0, %s295
    %s312 = sphi 0, %s296
    %s318 = sphi 0, %s320
    %s321 = sphi 0, %s318
    %s322 = sphi 0, %s321
    %s338 = sphi 0, %s322
  $region4: #{transformer_forward.15} parent=0 // loop_header_branch
    %23 = sbr.rel (%p21) target = $region8
  $region5: #{transformer_forward.15} parent=0 // loop_body
    %s25 = ssub.s32 %s20, 1
    %s26 = ssub.s32 %s20, 2
    %s27 = sadd.s32 %s20, 1
    %s28 = ssub.s32 %s20, %s27
    %p29 = scmp.eq.s32.totalorder %s28, 0
    %s31 = sadd.s32 %s30, 1
    %s32 = scalar_select %p29, %s30, %s31
    %p35 = pneg %p29
    %p36 = scmp.eq.s32.totalorder %s20, 1
    %p37 = por %p35, %p36
    %p38 = scmp.ne.s32.totalorder %s30, %s33
    %p39 = scmp.eq.s32.totalorder %s20, 0
    %p40 = por %p38, %p39
    %p41 = scmp.ne.s32.totalorder %s30, %s33
    %p42 = scmp.eq.s32.totalorder %s25, 1
    %p43 = por %p41, %p42
    %p44 = scmp.ne.s32.totalorder %s33, %s34
    %p45 = scmp.eq.s32.totalorder %s25, 0
    %p46 = por %p44, %p45
    %p47 = scmp.ne.s32.totalorder %s33, %s34
    %p48 = scmp.eq.s32.totalorder %s26, 1
    %p49 = por %p47, %p48
    %p51 = scmp.ne.s32.totalorder %s34, %s50
    %p52 = scmp.eq.s32.totalorder %s26, 0
    %p53 = por %p51, %p52
    %s54 = ssub.s32 %s20, %s27
    %p55 = scmp.eq.s32.totalorder %s54, 0
    %s57 = sadd.s32 %s56, 1
    %s58 = scalar_select %p55, %s56, %s57
    %p61 = pneg %p55
    %p62 = scmp.eq.s32.totalorder %s20, 1
    %p63 = por %p61, %p62
    %p64 = scmp.ne.s32.totalorder %s56, %s59
    %p65 = scmp.eq.s32.totalorder %s20, 0
    %p66 = por %p64, %p65
    %p67 = scmp.ne.s32.totalorder %s56, %s59
    %p68 = scmp.eq.s32.totalorder %s25, 1
    %p69 = por %p67, %p68
    %p70 = scmp.ne.s32.totalorder %s59, %s60
    %p71 = scmp.eq.s32.totalorder %s25, 0
    %p72 = por %p70, %p71
    %p73 = scmp.ne.s32.totalorder %s59, %s60
    %p74 = scmp.eq.s32.totalorder %s26, 1
    %p75 = por %p73, %p74
    %p77 = scmp.ne.s32.totalorder %s60, %s76
    %p78 = scmp.eq.s32.totalorder %s26, 0
    %p79 = por %p77, %p78
    %s81 = sadd.s32 %s80, 1
    %p84 = scmp.eq.s32.totalorder %s20, 1
    %p85 = scmp.ne.s32.totalorder %s80, %s82
    %p86 = scmp.eq.s32.totalorder %s20, 0
    %p87 = por %p85, %p86
    %p88 = scmp.ne.s32.totalorder %s80, %s82
    %p89 = scmp.eq.s32.totalorder %s25, 1
    %p90 = por %p88, %p89
    %p91 = scmp.ne.s32.totalorder %s82, %s83
    %p92 = scmp.eq.s32.totalorder %s25, 0
    %p93 = por %p91, %p92
    %p94 = scmp.ne.s32.totalorder %s82, %s83
    %p95 = scmp.eq.s32.totalorder %s26, 1
    %p96 = por %p94, %p95
    %p98 = scmp.ne.s32.totalorder %s83, %s97
    %p99 = scmp.eq.s32.totalorder %s26, 0
    %p100 = por %p98, %p99
    %s102 = sadd.s32 %s101, 1
    %p105 = scmp.eq.s32.totalorder %s20, 1
    %p106 = scmp.ne.s32.totalorder %s101, %s103
    %p107 = scmp.eq.s32.totalorder %s20, 0
    %p108 = por %p106, %p107
    %p109 = scmp.ne.s32.totalorder %s101, %s103
    %p110 = scmp.eq.s32.totalorder %s25, 1
    %p111 = por %p109, %p110
    %p112 = scmp.ne.s32.totalorder %s103, %s104
    %p113 = scmp.eq.s32.totalorder %s25, 0
    %p114 = por %p112, %p113
    %p115 = scmp.ne.s32.totalorder %s103, %s104
    %p116 = scmp.eq.s32.totalorder %s26, 1
    %p117 = por %p115, %p116
    %p119 = scmp.ne.s32.totalorder %s104, %s118
    %p120 = scmp.eq.s32.totalorder %s26, 0
    %p121 = por %p119, %p120
    %s123 = sadd.s32 %s122, 1
    %p126 = scmp.eq.s32.totalorder %s20, 1
    %p127 = scmp.ne.s32.totalorder %s122, %s124
    %p128 = scmp.eq.s32.totalorder %s20, 0
    %p129 = por %p127, %p128
    %p130 = scmp.ne.s32.totalorder %s122, %s124
    %p131 = scmp.eq.s32.totalorder %s25, 1
    %p132 = por %p130, %p131
    %p133 = scmp.ne.s32.totalorder %s124, %s125
    %p134 = scmp.eq.s32.totalorder %s25, 0
    %p135 = por %p133, %p134
    %p136 = scmp.ne.s32.totalorder %s124, %s125
    %p137 = scmp.eq.s32.totalorder %s26, 1
    %p138 = por %p136, %p137
    %p140 = scmp.ne.s32.totalorder %s125, %s139
    %p141 = scmp.eq.s32.totalorder %s26, 0
    %p142 = por %p140, %p141
    %s144 = sadd.s32 %s143, 1
    %p147 = scmp.eq.s32.totalorder %s20, 1
    %p148 = scmp.ne.s32.totalorder %s143, %s145
    %p149 = scmp.eq.s32.totalorder %s20, 0
    %p150 = por %p148, %p149
    %p151 = scmp.ne.s32.totalorder %s143, %s145
    %p152 = scmp.eq.s32.totalorder %s25, 1
    %p153 = por %p151, %p152
    %p154 = scmp.ne.s32.totalorder %s145, %s146
    %p155 = scmp.eq.s32.totalorder %s25, 0
    %p156 = por %p154, %p155
    %p157 = scmp.ne.s32.totalorder %s145, %s146
    %p158 = scmp.eq.s32.totalorder %s26, 1
    %p159 = por %p157, %p158
    %p161 = scmp.ne.s32.totalorder %s146, %s160
    %p162 = scmp.eq.s32.totalorder %s26, 0
    %p163 = por %p161, %p162
    %s165 = sadd.s32 %s164, 1
    %p168 = scmp.eq.s32.totalorder %s20, 1
    %p169 = scmp.ne.s32.totalorder %s164, %s166
    %p170 = scmp.eq.s32.totalorder %s20, 0
    %p171 = por %p169, %p170
    %p172 = scmp.ne.s32.totalorder %s164, %s166
    %p173 = scmp.eq.s32.totalorder %s25, 1
    %p174 = por %p172, %p173
    %p175 = scmp.ne.s32.totalorder %s166, %s167
    %p176 = scmp.eq.s32.totalorder %s25, 0
    %p177 = por %p175, %p176
    %p178 = scmp.ne.s32.totalorder %s166, %s167
    %p179 = scmp.eq.s32.totalorder %s26, 1
    %p180 = por %p178, %p179
    %p182 = scmp.ne.s32.totalorder %s167, %s181
    %p183 = scmp.eq.s32.totalorder %s26, 0
    %p184 = por %p182, %p183
    %s186 = sadd.s32 %s185, 1
    %p189 = scmp.eq.s32.totalorder %s20, 1
    %p190 = scmp.ne.s32.totalorder %s185, %s187
    %p191 = scmp.eq.s32.totalorder %s20, 0
    %p192 = por %p190, %p191
    %p193 = scmp.ne.s32.totalorder %s185, %s187
    %p194 = scmp.eq.s32.totalorder %s25, 1
    %p195 = por %p193, %p194
    %p196 = scmp.ne.s32.totalorder %s187, %s188
    %p197 = scmp.eq.s32.totalorder %s25, 0
    %p198 = por %p196, %p197
    %p199 = scmp.ne.s32.totalorder %s187, %s188
    %p200 = scmp.eq.s32.totalorder %s26, 1
    %p201 = por %p199, %p200
    %p203 = scmp.ne.s32.totalorder %s188, %s202
    %p204 = scmp.eq.s32.totalorder %s26, 0
    %p205 = por %p203, %p204
    %s207 = sadd.s32 %s206, 1
    %p210 = scmp.eq.s32.totalorder %s20, 1
    %p211 = scmp.ne.s32.totalorder %s206, %s208
    %p212 = scmp.eq.s32.totalorder %s20, 0
    %p213 = por %p211, %p212
    %p214 = scmp.ne.s32.totalorder %s206, %s208
    %p215 = scmp.eq.s32.totalorder %s25, 1
    %p216 = por %p214, %p215
    %p217 = scmp.ne.s32.totalorder %s208, %s209
    %p218 = scmp.eq.s32.totalorder %s25, 0
    %p219 = por %p217, %p218
    %p220 = scmp.ne.s32.totalorder %s208, %s209
    %p221 = scmp.eq.s32.totalorder %s26, 1
    %p222 = por %p220, %p221
    %p224 = scmp.ne.s32.totalorder %s209, %s223
    %p225 = scmp.eq.s32.totalorder %s26, 0
    %p226 = por %p224, %p225
    %s228 = sadd.s32 %s227, 1
    %p231 = scmp.eq.s32.totalorder %s20, 1
    %p232 = scmp.ne.s32.totalorder %s227, %s229
    %p233 = scmp.eq.s32.totalorder %s20, 0
    %p234 = por %p232, %p233
    %p235 = scmp.ne.s32.totalorder %s227, %s229
    %p236 = scmp.eq.s32.totalorder %s25, 1
    %p237 = por %p235, %p236
    %p238 = scmp.ne.s32.totalorder %s229, %s230
    %p239 = scmp.eq.s32.totalorder %s25, 0
    %p240 = por %p238, %p239
    %p241 = scmp.ne.s32.totalorder %s229, %s230
    %p242 = scmp.eq.s32.totalorder %s26, 1
    %p243 = por %p241, %p242
    %p245 = scmp.ne.s32.totalorder %s230, %s244
    %p246 = scmp.eq.s32.totalorder %s26, 0
    %p247 = por %p245, %p246
    %s249 = sadd.s32 %s248, 1
    %p252 = scmp.eq.s32.totalorder %s20, 1
    %p253 = scmp.ne.s32.totalorder %s248, %s250
    %p254 = scmp.eq.s32.totalorder %s20, 0
    %p255 = por %p253, %p254
    %p256 = scmp.ne.s32.totalorder %s248, %s250
    %p257 = scmp.eq.s32.totalorder %s25, 1
    %p258 = por %p256, %p257
    %p259 = scmp.ne.s32.totalorder %s250, %s251
    %p260 = scmp.eq.s32.totalorder %s25, 0
    %p261 = por %p259, %p260
    %p262 = scmp.ne.s32.totalorder %s250, %s251
    %p263 = scmp.eq.s32.totalorder %s26, 1
    %p264 = por %p262, %p263
    %p266 = scmp.ne.s32.totalorder %s251, %s265
    %p267 = scmp.eq.s32.totalorder %s26, 0
    %p268 = por %p266, %p267
    %s270 = sadd.s32 %s269, 1
    %p273 = scmp.eq.s32.totalorder %s20, 1
    %p274 = scmp.ne.s32.totalorder %s269, %s271
    %p275 = scmp.eq.s32.totalorder %s20, 0
    %p276 = por %p274, %p275
    %p277 = scmp.ne.s32.totalorder %s269, %s271
    %p278 = scmp.eq.s32.totalorder %s25, 1
    %p279 = por %p277, %p278
    %p280 = scmp.ne.s32.totalorder %s271, %s272
    %p281 = scmp.eq.s32.totalorder %s25, 0
    %p282 = por %p280, %p281
    %p283 = scmp.ne.s32.totalorder %s271, %s272
    %p284 = scmp.eq.s32.totalorder %s26, 1
    %p285 = por %p283, %p284
    %p287 = scmp.ne.s32.totalorder %s272, %s286
    %p288 = scmp.eq.s32.totalorder %s26, 0
    %p289 = por %p287, %p288
    %s290 = ssub.s32 %s20, %s27
    %p291 = scmp.eq.s32.totalorder %s290, 0
    %s293 = sadd.s32 %s292, 1
    %s294 = scalar_select %p291, %s292, %s293
    %p297 = pneg %p291
    %p298 = scmp.eq.s32.totalorder %s20, 1
    %p299 = por %p297, %p298
    %p300 = scmp.ne.s32.totalorder %s292, %s295
    %p301 = scmp.eq.s32.totalorder %s20, 0
    %p302 = por %p300, %p301
    %p303 = scmp.ne.s32.totalorder %s292, %s295
    %p304 = scmp.eq.s32.totalorder %s25, 1
    %p305 = por %p303, %p304
    %p306 = scmp.ne.s32.totalorder %s295, %s296
    %p307 = scmp.eq.s32.totalorder %s25, 0
    %p308 = por %p306, %p307
    %p309 = scmp.ne.s32.totalorder %s295, %s296
    %p310 = scmp.eq.s32.totalorder %s26, 1
    %p311 = por %p309, %p310
    %p313 = scmp.ne.s32.totalorder %s296, %s312
    %p314 = scmp.eq.s32.totalorder %s26, 0
    %p315 = por %p313, %p314
    %s316 = ssub.s32 %s20, %s27
    %p317 = scmp.eq.s32.totalorder %s316, 0
    %s319 = sadd.s32 %s318, 1
    %s320 = scalar_select %p317, %s318, %s319
    %p323 = pneg %p317
    %p324 = scmp.eq.s32.totalorder %s20, 1
    %p325 = por %p323, %p324
    %p326 = scmp.ne.s32.totalorder %s318, %s321
    %p327 = scmp.eq.s32.totalorder %s20, 0
    %p328 = por %p326, %p327
    %p329 = scmp.ne.s32.totalorder %s318, %s321
    %p330 = scmp.eq.s32.totalorder %s25, 1
    %p331 = por %p329, %p330
    %p332 = scmp.ne.s32.totalorder %s321, %s322
    %p333 = scmp.eq.s32.totalorder %s25, 0
    %p334 = por %p332, %p333
    %p335 = scmp.ne.s32.totalorder %s321, %s322
    %p336 = scmp.eq.s32.totalorder %s26, 1
    %p337 = por %p335, %p336
    %p339 = scmp.ne.s32.totalorder %s322, %s338
    %p340 = scmp.eq.s32.totalorder %s26, 0
    %p341 = por %p339, %p340
    %p342 = scmp.le.s32.totalorder 1, %s20
    %p343 = scmp.lt.s32.totalorder %s20, 3
    %p344 = pnand %p342, %p343
    %p345 = pneg %p344
    // Predicated region
    $region9: #{transformer_forward.15} parent=5 // pred_check
      _
    $region10: #{transformer_forward.15} parent=5 // pred_check_branch
      %347 = sbr.rel (%p344) target = $region12
    $region11: #{transformer_forward.15} parent=5 // pred_region
      %s348 = ssub.s32 %s20, 1
      // Predicated region
      $region13: #{transformer_forward.15} parent=11 // pred_check
        %p349 = pneg %p93
      $region14: #{transformer_forward.15} parent=11 // pred_check_branch
        %351 = sbr.rel (%p349) target = $region16
      $region15: #{transformer_forward.15} parent=11 // pred_region
        _
      $region16: #{transformer_forward.15} parent=11 // pred_fallthru
        _
      // Predicated region
      $region17: #{transformer_forward.15} parent=11 // pred_check
        %p352 = pneg %p114
      $region18: #{transformer_forward.15} parent=11 // pred_check_branch
        %354 = sbr.rel (%p352) target = $region20
      $region19: #{transformer_forward.15} parent=11 // pred_region
        _
      $region20: #{transformer_forward.15} parent=11 // pred_fallthru
        _
      // Predicated region
      $region21: #{transformer_forward.15} parent=11 // pred_check
        %p355 = pneg %p135
      $region22: #{transformer_forward.15} parent=11 // pred_check_branch
        %357 = sbr.rel (%p355) target = $region24
      $region23: #{transformer_forward.15} parent=11 // pred_region
        _
      $region24: #{transformer_forward.15} parent=11 // pred_fallthru
        _
      // Predicated region
      $region25: #{transformer_forward.15} parent=11 // pred_check
        %p358 = pneg %p156
      $region26: #{transformer_forward.15} parent=11 // pred_check_branch
        %360 = sbr.rel (%p358) target = $region28
      $region27: #{transformer_forward.15} parent=11 // pred_region
        _
      $region28: #{transformer_forward.15} parent=11 // pred_fallthru
        _
      // Predicated region
      $region29: #{transformer_forward.15} parent=11 // pred_check
        %p361 = pneg %p177
      $region30: #{transformer_forward.15} parent=11 // pred_check_branch
        %363 = sbr.rel (%p361) target = $region32
      $region31: #{transformer_forward.15} parent=11 // pred_region
        _
      $region32: #{transformer_forward.15} parent=11 // pred_fallthru
        _
      // Predicated region
      $region33: #{transformer_forward.15} parent=11 // pred_check
        %p364 = pneg %p198
      $region34: #{transformer_forward.15} parent=11 // pred_check_branch
        %366 = sbr.rel (%p364) target = $region36
      $region35: #{transformer_forward.15} parent=11 // pred_region
        _
      $region36: #{transformer_forward.15} parent=11 // pred_fallthru
        _
      // Predicated region
      $region37: #{transformer_forward.15} parent=11 // pred_check
        %p367 = pneg %p219
      $region38: #{transformer_forward.15} parent=11 // pred_check_branch
        %369 = sbr.rel (%p367) target = $region40
      $region39: #{transformer_forward.15} parent=11 // pred_region
        _
      $region40: #{transformer_forward.15} parent=11 // pred_fallthru
        _
      // Predicated region
      $region41: #{transformer_forward.15} parent=11 // pred_check
        %p370 = pneg %p240
      $region42: #{transformer_forward.15} parent=11 // pred_check_branch
        %372 = sbr.rel (%p370) target = $region44
      $region43: #{transformer_forward.15} parent=11 // pred_region
        _
      $region44: #{transformer_forward.15} parent=11 // pred_fallthru
        _
      // Predicated region
      $region45: #{transformer_forward.15} parent=11 // pred_check
        %p373 = pneg %p261
      $region46: #{transformer_forward.15} parent=11 // pred_check_branch
        %375 = sbr.rel (%p373) target = $region48
      $region47: #{transformer_forward.15} parent=11 // pred_region
        _
      $region48: #{transformer_forward.15} parent=11 // pred_fallthru
        _
      // Predicated region
      $region49: #{transformer_forward.15} parent=11 // pred_check
        %p376 = pneg %p282
      $region50: #{transformer_forward.15} parent=11 // pred_check_branch
        %378 = sbr.rel (%p376) target = $region52
      $region51: #{transformer_forward.15} parent=11 // pred_region
        _
      $region52: #{transformer_forward.15} parent=11 // pred_fallthru
        _
    $region12: #{transformer_forward.15} parent=5 // pred_fallthru
      _
    %p379 = scmp.lt.s32.totalorder %s20, 2
    // Predicated region
    $region53: #{transformer_forward.15} parent=5 // pred_check
      %p380 = pneg %p379
    $region54: #{transformer_forward.15} parent=5 // pred_check_branch
      %382 = sbr.rel (%p380) target = $region56
    $region55: #{transformer_forward.15} parent=5 // pred_region
      // Predicated region
      $region57: #{transformer_forward.15} parent=55 // pred_check
        %p383 = pneg %p40
      $region58: #{transformer_forward.15} parent=55 // pred_check_branch
        %385 = sbr.rel (%p383) target = $region60
      $region59: #{transformer_forward.15} parent=55 // pred_region
        %p386 = scmp.lt.s32.totalorder %s20, 1
        %s387 = scalar_select %p386, %s20, 1
        %s388 = smul.addr %s387, 8
        %s389 = scalar_lea.vmem %s0, %s388
      $region60: #{transformer_forward.15} parent=55 // pred_fallthru
        _
      // Predicated region
      $region61: #{transformer_forward.15} parent=55 // pred_check
        %p390 = pneg %p66
      $region62: #{transformer_forward.15} parent=55 // pred_check_branch
        %392 = sbr.rel (%p390) target = $region64
      $region63: #{transformer_forward.15} parent=55 // pred_region
        %p393 = scmp.lt.s32.totalorder %s20, 1
        %s394 = scalar_select %p393, %s20, 1
        %s395 = smul.addr %s394, 8
        %s396 = scalar_lea.vmem %s1, %s395
      $region64: #{transformer_forward.15} parent=55 // pred_fallthru
        _
    $region56: #{transformer_forward.15} parent=5 // pred_fallthru
      _
    %p397 = scmp.le.s32.totalorder 1, %s20
    %p398 = scmp.lt.s32.totalorder %s20, 3
    %p399 = pnand %p397, %p398
    %p400 = pneg %p399
    // Predicated region
    $region65: #{transformer_forward.15} parent=5 // pred_check
      _
    $region66: #{transformer_forward.15} parent=5 // pred_check_branch
      %402 = sbr.rel (%p399) target = $region68
    $region67: #{transformer_forward.15} parent=5 // pred_region
      %s403 = ssub.s32 %s20, 1
      %p404 = scmp.lt.s32.totalorder %s25, 1
      %s405 = scalar_select %p404, %s25, 1
      %s406 = smul.addr %s405, 8
      %s407 = scalar_lea.vmem %s0, %s406
      %p408 = pneg %p46
      %p409 = pneg %p43
      %p410 = scmp.lt.s32.totalorder %s25, 1
      %s411 = scalar_select %p410, %s25, 1
      %s412 = smul.addr %s411, 8
      %s413 = scalar_lea.vmem %s1, %s412
      %p414 = pneg %p72
      %p415 = pneg %p69
      %p416 = pneg %p93
      %p417 = pneg %p90
      %p418 = pneg %p114
      %p419 = pneg %p111
      %p420 = pneg %p135
      %p421 = pneg %p132
      %p422 = pneg %p156
      %p423 = pneg %p153
      %p424 = pneg %p177
      %p425 = pneg %p174
      %p426 = pneg %p198
      %p427 = pneg %p195
      %p428 = pneg %p219
      %p429 = pneg %p216
      %p430 = pneg %p240
      %p431 = pneg %p237
      %p432 = pneg %p261
      %p433 = pneg %p258
      %p434 = pneg %p282
      %p435 = pneg %p279
      %p436 = pneg %p308
      %p437 = pneg %p305
      %p438 = scmp.lt.s32.totalorder %s25, 1
      %s439 = scalar_select %p438, %s25, 1
      %s440 = smul.addr %s439, 8
      %s441 = scalar_lea.vmem %s12, %s440
      %p442 = pneg %p334
      %p443 = pneg %p331
      %p444 = scmp.lt.s32.totalorder %s25, 1
      %s445 = scalar_select %p444, %s25, 1
      %s446 = smul.addr %s445, 8
      %s447 = scalar_lea.vmem %s13, %s446
      %p448 = scmp.lt.s32.totalorder %s25, 1
      %s449 = scalar_select %p448, %s25, 1
      %s450 = smul.addr %s449, 8
      %s451 = scalar_lea.vmem %s0, %s450
      %p452 = scmp.lt.s32.totalorder %s25, 1
      %s453 = scalar_select %p452, %s25, 1
      %s454 = smul.addr %s453, 8
      %s455 = scalar_lea.vmem %s1, %s454
      %p456 = scmp.lt.s32.totalorder %s25, 1
      %s457 = scalar_select %p456, %s25, 1
      %s458 = smul.addr %s457, 8
      %s459 = scalar_lea.vmem %s12, %s458
      %p460 = scmp.lt.s32.totalorder %s25, 1
      %s461 = scalar_select %p460, %s25, 1
      %s462 = smul.addr %s461, 8
      %s463 = scalar_lea.vmem %s13, %s462
      %v465 = vld [vmem:[%s451] sm:$0xff]
      %v466 = vld [vmem:[%s455] sm:$0xff]
      %v467 = vpack.c.bf16 %v465, %v465
      %v468 = vpack.c.bf16 %v466, %v466
      %v469 = vld [vmem:[%s2] sm:$0xf]
      %v470 = vld [vmem:[%s2 + $0x4] sm:$0xf]
      %v471 = vld [vmem:[%s2 + $0x8] sm:$0xf]
      %v472 = vld [vmem:[%s2 + $0xc] sm:$0xf]
      %v473 = vld [vmem:[%s2 + $0x10] sm:$0xf]
      %v474 = vld [vmem:[%s2 + $0x14] sm:$0xf]
      %v475 = vld [vmem:[%s2 + $0x18] sm:$0xf]
      %v476 = vld [vmem:[%s2 + $0x1c] sm:$0xf]
      %v477 = vld [vmem:[%s3] sm:$0x1]
      %v479 = vlaneseq
      %v480 = vshrl.u32 %v479, 7
      %v481 = vsub.s32 0, %v480
      %v482 = vrot.slane %v477, %v481
      %v492 = vunpack.c.l.b16 %v469
      %v493 = vunpack.c.l.b16 %v470
      %v494 = vunpack.c.l.b16 %v471
      %v495 = vunpack.c.l.b16 %v472
      %v496 = vunpack.c.l.b16 %v473
      %v497 = vunpack.c.l.b16 %v474
      %v498 = vunpack.c.l.b16 %v475
      %v499 = vunpack.c.l.b16 %v476
      %v500 = vpack.c.b16 %v493, %v492
      %v501 = vpack.c.b16 %v495, %v494
      %v502 = vpack.c.b16 %v497, %v496
      %v503 = vpack.c.b16 %v499, %v498
      %vm508 = vcmask 523264
      %v510 = vsel %vm508, %v467, 0
      %512 = vmatprep.subr.bf16.mxu0 0
      %513 = vmatpush1.bf16.msra.mxu0 %v500
      %514 = vmatprep.subr.bf16.mxu0 0
      %515 = vmatpush1.bf16.msra.mxu0 %v501
      %516 = vmatprep.subr.bf16.mxu0 0
      %517 = vmatpush1.bf16.msra.mxu0 %v502
      %518 = vmatprep.subr.bf16.mxu0 0
      %519 = vmatpush1.bf16.msra.mxu0 %v503
      %520 = vmatprep.subr.bf16.mxu0 0
      %521 = vmatpush1.bf16.msra.mxu0 0
      %522 = vmatprep.subr.bf16.mxu0 0
      %523 = vmatpush1.bf16.msra.mxu0 0
      %524 = vmatprep.subr.bf16.mxu0 0
      %525 = vmatpush1.bf16.msra.mxu0 0
      %526 = vmatprep.subr.bf16.mxu0 0
      %527 = vmatpush1.bf16.msra.mxu0 0
      %528 = vmatprep.subr.bf16.mxu0 0
      %529 = vmatpush1.bf16.msra.mxu0 0
      %530 = vmatprep.subr.bf16.mxu0 0
      %531 = vmatpush1.bf16.msra.mxu0 0
      %532 = vmatprep.subr.bf16.mxu0 0
      %533 = vmatpush1.bf16.msra.mxu0 0
      %534 = vmatprep.subr.bf16.mxu0 0
      %535 = vmatpush1.bf16.msra.mxu0 0
      %536 = vmatprep.subr.bf16.mxu0 0
      %537 = vmatpush1.bf16.msra.mxu0 0
      %538 = vmatprep.subr.bf16.mxu0 0
      %539 = vmatpush1.bf16.msra.mxu0 0
      %540 = vmatprep.subr.bf16.mxu0 0
      %541 = vmatpush1.bf16.msra.mxu0 0
      %542 = vmatprep.subr.bf16.mxu0 0
      %543 = vmatpush1.bf16.msra.mxu0 0
      %544 = vmatprep.mubr.bf16.mxu0 0
      %545 = vmatmul.mubr.bf16.gmra.mrb[0].mxu0 %v510
      %v546 = vpop.f32.mrb[0].mxu0
      %v547 = vadd.f32 %v482, %v546
      %v548 = vpop.f32.mrb[0].mxu0
      %v549 = vpop.f32.mrb[0].mxu0
      %v550 = vpop.f32.mrb[0].mxu0
      %551 = vdwg.mxu0
      %v552 = vmul.f32 %v547, 0.25
      %v553 = vld [vmem:[%s4] sm:$0xf]
      %v554 = vld [vmem:[%s4 + $0x4] sm:$0xf]
      %v555 = vld [vmem:[%s4 + $0x8] sm:$0xf]
      %v556 = vld [vmem:[%s4 + $0xc] sm:$0xf]
      %v557 = vld [vmem:[%s4 + $0x10] sm:$0xf]
      %v558 = vld [vmem:[%s4 + $0x14] sm:$0xf]
      %v559 = vld [vmem:[%s4 + $0x18] sm:$0xf]
      %v560 = vld [vmem:[%s4 + $0x1c] sm:$0xf]
      %v561 = vld [vmem:[%s5] sm:$0x1]
      %v563 = vlaneseq
      %v564 = vshrl.u32 %v563, 7
      %v565 = vsub.s32 0, %v564
      %v566 = vrot.slane %v561, %v565
      %v576 = vunpack.c.l.b16 %v553
      %v577 = vunpack.c.l.b16 %v554
      %v578 = vunpack.c.l.b16 %v555
      %v579 = vunpack.c.l.b16 %v556
      %v580 = vunpack.c.l.b16 %v557
      %v581 = vunpack.c.l.b16 %v558
      %v582 = vunpack.c.l.b16 %v559
      %v583 = vunpack.c.l.b16 %v560
      %v584 = vpack.c.b16 %v577, %v576
      %v585 = vpack.c.b16 %v579, %v578
      %v586 = vpack.c.b16 %v581, %v580
      %v587 = vpack.c.b16 %v583, %v582
      %v593 = vsel %vm508, %v468, 0
      %595 = vmatprep.subr.bf16.mxu0 0
      %596 = vmatpush1.bf16.msra.mxu0 %v584
      %597 = vmatprep.subr.bf16.mxu0 0
      %598 = vmatpush1.bf16.msra.mxu0 %v585
      %599 = vmatprep.subr.bf16.mxu0 0
      %600 = vmatpush1.bf16.msra.mxu0 %v586
      %601 = vmatprep.subr.bf16.mxu0 0
      %602 = vmatpush1.bf16.msra.mxu0 %v587
      %603 = vmatprep.subr.bf16.mxu0 0
      %604 = vmatpush1.bf16.msra.mxu0 0
      %605 = vmatprep.subr.bf16.mxu0 0
      %606 = vmatpush1.bf16.msra.mxu0 0
      %607 = vmatprep.subr.bf16.mxu0 0
      %608 = vmatpush1.bf16.msra.mxu0 0
      %609 = vmatprep.subr.bf16.mxu0 0
      %610 = vmatpush1.bf16.msra.mxu0 0
      %611 = vmatprep.subr.bf16.mxu0 0
      %612 = vmatpush1.bf16.msra.mxu0 0
      %613 = vmatprep.subr.bf16.mxu0 0
      %614 = vmatpush1.bf16.msra.mxu0 0
      %615 = vmatprep.subr.bf16.mxu0 0
      %616 = vmatpush1.bf16.msra.mxu0 0
      %617 = vmatprep.subr.bf16.mxu0 0
      %618 = vmatpush1.bf16.msra.mxu0 0
      %619 = vmatprep.subr.bf16.mxu0 0
      %620 = vmatpush1.bf16.msra.mxu0 0
      %621 = vmatprep.subr.bf16.mxu0 0
      %622 = vmatpush1.bf16.msra.mxu0 0
      %623 = vmatprep.subr.bf16.mxu0 0
      %624 = vmatpush1.bf16.msra.mxu0 0
      %625 = vmatprep.subr.bf16.mxu0 0
      %626 = vmatpush1.bf16.msra.mxu0 0
      %627 = vmatprep.mubr.bf16.mxu0 0
      %628 = vmatmul.mubr.bf16.gmra.mrb[0].mxu0 %v593
      %v629 = vpop.f32.mrb[0].mxu0
      %v630 = vadd.f32 %v566, %v629
      %v631 = vpop.f32.mrb[0].mxu0
      %v632 = vpop.f32.mrb[0].mxu0
      %v633 = vpop.f32.mrb[0].mxu0
      %634 = vdwg.mxu0
      %v635 = vld [vmem:[%s6] sm:$0xf]
      %v636 = vld [vmem:[%s6 + $0x4] sm:$0xf]
      %v637 = vld [vmem:[%s6 + $0x8] sm:$0xf]
      %v638 = vld [vmem:[%s6 + $0xc] sm:$0xf]
      %v639 = vld [vmem:[%s6 + $0x10] sm:$0xf]
      %v640 = vld [vmem:[%s6 + $0x14] sm:$0xf]
      %v641 = vld [vmem:[%s6 + $0x18] sm:$0xf]
      %v642 = vld [vmem:[%s6 + $0x1c] sm:$0xf]
      %v643 = vld [vmem:[%s7] sm:$0x1]
      %v645 = vlaneseq
      %v646 = vshrl.u32 %v645, 7
      %v647 = vsub.s32 0, %v646
      %v648 = vrot.slane %v643, %v647
      %v658 = vunpack.c.l.b16 %v635
      %v659 = vunpack.c.l.b16 %v636
      %v660 = vunpack.c.l.b16 %v637
      %v661 = vunpack.c.l.b16 %v638
      %v662 = vunpack.c.l.b16 %v639
      %v663 = vunpack.c.l.b16 %v640
      %v664 = vunpack.c.l.b16 %v641
      %v665 = vunpack.c.l.b16 %v642
      %v666 = vpack.c.b16 %v659, %v658
      %v667 = vpack.c.b16 %v661, %v660
      %v668 = vpack.c.b16 %v663, %v662
      %v669 = vpack.c.b16 %v665, %v664
      %674 = vmatprep.subr.bf16.mxu0 0
      %675 = vmatpush1.bf16.msra.mxu0 %v666
      %676 = vmatprep.subr.bf16.mxu0 0
      %677 = vmatpush1.bf16.msra.mxu0 %v667
      %678 = vmatprep.subr.bf16.mxu0 0
      %679 = vmatpush1.bf16.msra.mxu0 %v668
      %680 = vmatprep.subr.bf16.mxu0 0
      %681 = vmatpush1.bf16.msra.mxu0 %v669
      %682 = vmatprep.subr.bf16.mxu0 0
      %683 = vmatpush1.bf16.msra.mxu0 0
      %684 = vmatprep.subr.bf16.mxu0 0
      %685 = vmatpush1.bf16.msra.mxu0 0
      %686 = vmatprep.subr.bf16.mxu0 0
      %687 = vmatpush1.bf16.msra.mxu0 0
      %688 = vmatprep.subr.bf16.mxu0 0
      %689 = vmatpush1.bf16.msra.mxu0 0
      %690 = vmatprep.subr.bf16.mxu0 0
      %691 = vmatpush1.bf16.msra.mxu0 0
      %692 = vmatprep.subr.bf16.mxu0 0
      %693 = vmatpush1.bf16.msra.mxu0 0
      %694 = vmatprep.subr.bf16.mxu0 0
      %695 = vmatpush1.bf16.msra.mxu0 0
      %696 = vmatprep.subr.bf16.mxu0 0
      %697 = vmatpush1.bf16.msra.mxu0 0
      %698 = vmatprep.subr.bf16.mxu0 0
      %699 = vmatpush1.bf16.msra.mxu0 0
      %700 = vmatprep.subr.bf16.mxu0 0
      %701 = vmatpush1.bf16.msra.mxu0 0
      %702 = vmatprep.subr.bf16.mxu0 0
      %703 = vmatpush1.bf16.msra.mxu0 0
      %704 = vmatprep.subr.bf16.mxu0 0
      %705 = vmatpush1.bf16.msra.mxu0 0
      %706 = vmatprep.mubr.bf16.mxu0 0
      %707 = vmatmul.mubr.bf16.gmra.mrb[0].mxu0 %v593
      %v708 = vpop.f32.mrb[0].mxu0
      %v709 = vadd.f32 %v648, %v708
      %v710 = vpop.f32.mrb[0].mxu0
      %v711 = vpop.f32.mrb[0].mxu0
      %v712 = vpop.f32.mrb[0].mxu0
      %713 = vdwg.mxu0
      %v714 = vpack.c.bf16 %v552, %v552
      %v715 = vpack.c.bf16 %v630, %v630
      %v716 = vpack.c.bf16 %v709, %v709
      %v717 = vlaneseq
      %v718 = vshrl.u32 %v717, 7
      %v719 = vlaneseq
      %v720 = vand.u32 %v719, 127
      %vm721 = vcmp.le.s32.totalorder %v720, %v718
      %vm722 = vcmask 130048
      %v724 = vsel %vm722, %v714, 0
      %v727 = vsel %vm722, %v715, 0
      %729 = vmatprep.subr.bf16.mxu0 0
      %730 = vmatpush1.bf16.xpose.msra.mxu0 %v727
      %731 = vmatprep.subr.bf16.mxu0 0
      %732 = vmatpush1.bf16.xpose.msra.mxu0 0
      %733 = vmatprep.subr.bf16.mxu0 0
      %734 = vmatpush1.bf16.xpose.msra.mxu0 0
      %735 = vmatprep.subr.bf16.mxu0 0
      %736 = vmatpush1.bf16.xpose.msra.mxu0 0
      %737 = vmatprep.subr.bf16.mxu0 0
      %738 = vmatpush1.bf16.xpose.msra.mxu0 0
      %739 = vmatprep.subr.bf16.mxu0 0
      %740 = vmatpush1.bf16.xpose.msra.mxu0 0
      %741 = vmatprep.subr.bf16.mxu0 0
      %742 = vmatpush1.bf16.xpose.msra.mxu0 0
      %743 = vmatprep.subr.bf16.mxu0 0
      %744 = vmatpush1.bf16.xpose.msra.mxu0 0
      %745 = vmatprep.subr.bf16.mxu0 0
      %746 = vmatpush1.bf16.xpose.msra.mxu0 0
      %747 = vmatprep.subr.bf16.mxu0 0
      %748 = vmatpush1.bf16.xpose.msra.mxu0 0
      %749 = vmatprep.subr.bf16.mxu0 0
      %750 = vmatpush1.bf16.xpose.msra.mxu0 0
      %751 = vmatprep.subr.bf16.mxu0 0
      %752 = vmatpush1.bf16.xpose.msra.mxu0 0
      %753 = vmatprep.subr.bf16.mxu0 0
      %754 = vmatpush1.bf16.xpose.msra.mxu0 0
      %755 = vmatprep.subr.bf16.mxu0 0
      %756 = vmatpush1.bf16.xpose.msra.mxu0 0
      %757 = vmatprep.subr.bf16.mxu0 0
      %758 = vmatpush1.bf16.xpose.msra.mxu0 0
      %759 = vmatprep.subr.bf16.mxu0 0
      %760 = vmatpush1.bf16.xpose.msra.mxu0 0
      %761 = vmatprep.mubr.bf16.mxu0 0
      %762 = vmatmul.mubr.bf16.gmra.mrb[0].mxu0 %v724
      %v763 = vpop.f32.mrb[0].mxu0
      %v764 = vadd.f32 0.0, %v763
      %v765 = vpop.f32.mrb[0].mxu0
      %v766 = vpop.f32.mrb[0].mxu0
      %v767 = vpop.f32.mrb[0].mxu0
      %768 = vdwg.mxu0
      %v769 = vsel %vm721, %v764, -1e+09
      %vm770 = vcmask 64512
      %v771 = vsel %vm770, %v769, -inf
      %772 = vmax.xlane.f32.xlu0 %v771
      %v773 = vpop.xlane.xlu0 %772
      %v774 = vsub.f32 %v769, %v773
      %v775 = vmul.f32 %v774, 1.442695
      %v776 = vpow.pop %v775
      %v777 = vsel %vm770, %v776, 0.0
      %778 = vadd.xlane.f32.xlu0 %v777
      %v779 = vpop.xlane.xlu0 %778
      %v780 = vrcp.pop %v779
      %v781 = vmul.f32 %v776, %v780
      %v782 = vpack.c.bf16 %v781, %v781
      %v784 = vsel %vm770, %v782, 0
      %vm786 = vcmask 1043456
      %v788 = vsel %vm786, %v716, 0
      %790 = vmatprep.subr.bf16.mxu0 0
      %791 = vmatpush1.bf16.msra.mxu0 %v788
      %792 = vmatprep.subr.bf16.mxu0 0
      %793 = vmatpush1.bf16.msra.mxu0 0
      %794 = vmatprep.subr.bf16.mxu0 0
      %795 = vmatpush1.bf16.msra.mxu0 0
      %796 = vmatprep.subr.bf16.mxu0 0
      %797 = vmatpush1.bf16.msra.mxu0 0
      %798 = vmatprep.subr.bf16.mxu0 0
      %799 = vmatpush1.bf16.msra.mxu0 0
      %800 = vmatprep.subr.bf16.mxu0 0
      %801 = vmatpush1.bf16.msra.mxu0 0
      %802 = vmatprep.subr.bf16.mxu0 0
      %803 = vmatpush1.bf16.msra.mxu0 0
      %804 = vmatprep.subr.bf16.mxu0 0
      %805 = vmatpush1.bf16.msra.mxu0 0
      %806 = vmatprep.subr.bf16.mxu0 0
      %807 = vmatpush1.bf16.msra.mxu0 0
      %808 = vmatprep.subr.bf16.mxu0 0
      %809 = vmatpush1.bf16.msra.mxu0 0
      %810 = vmatprep.subr.bf16.mxu0 0
      %811 = vmatpush1.bf16.msra.mxu0 0
      %812 = vmatprep.subr.bf16.mxu0 0
      %813 = vmatpush1.bf16.msra.mxu0 0
      %814 = vmatprep.subr.bf16.mxu0 0
      %815 = vmatpush1.bf16.msra.mxu0 0
      %816 = vmatprep.subr.bf16.mxu0 0
      %817 = vmatpush1.bf16.msra.mxu0 0
      %818 = vmatprep.subr.bf16.mxu0 0
      %819 = vmatpush1.bf16.msra.mxu0 0
      %820 = vmatprep.subr.bf16.mxu0 0
      %821 = vmatpush1.bf16.msra.mxu0 0
      %822 = vmatprep.mubr.bf16.mxu0 0
      %823 = vmatmul.mubr.bf16.gmra.mrb[0].mxu0 %v784
      %v824 = vpop.f32.mrb[0].mxu0
      %v825 = vadd.f32 0.0, %v824
      %v826 = vpop.f32.mrb[0].mxu0
      %v827 = vpop.f32.mrb[0].mxu0
      %v828 = vpop.f32.mrb[0].mxu0
      %829 = vdwg.mxu0
      %831 = vrot.lane.b32.xlu0 %v714, 112
      %v832 = vpop.permute.xlu0 %831
      %834 = vrot.lane.b32.xlu0 %v715, 112
      %v835 = vpop.permute.xlu0 %834
      %v837 = vsel %vm722, %v832, 0
      %v840 = vsel %vm722, %v835, 0
      %842 = vmatprep.subr.bf16.mxu0 0
      %843 = vmatpush1.bf16.xpose.msra.mxu0 %v840
      %844 = vmatprep.subr.bf16.mxu0 0
      %845 = vmatpush1.bf16.xpose.msra.mxu0 0
      %846 = vmatprep.subr.bf16.mxu0 0
      %847 = vmatpush1.bf16.xpose.msra.mxu0 0
      %848 = vmatprep.subr.bf16.mxu0 0
      %849 = vmatpush1.bf16.xpose.msra.mxu0 0
      %850 = vmatprep.subr.bf16.mxu0 0
      %851 = vmatpush1.bf16.xpose.msra.mxu0 0
      %852 = vmatprep.subr.bf16.mxu0 0
      %853 = vmatpush1.bf16.xpose.msra.mxu0 0
      %854 = vmatprep.subr.bf16.mxu0 0
      %855 = vmatpush1.bf16.xpose.msra.mxu0 0
      %856 = vmatprep.subr.bf16.mxu0 0
      %857 = vmatpush1.bf16.xpose.msra.mxu0 0
      %858 = vmatprep.subr.bf16.mxu0 0
      %859 = vmatpush1.bf16.xpose.msra.mxu0 0
      %860 = vmatprep.subr.bf16.mxu0 0
      %861 = vmatpush1.bf16.xpose.msra.mxu0 0
      %862 = vmatprep.subr.bf16.mxu0 0
      %863 = vmatpush1.bf16.xpose.msra.mxu0 0
      %864 = vmatprep.subr.bf16.mxu0 0
      %865 = vmatpush1.bf16.xpose.msra.mxu0 0
      %866 = vmatprep.subr.bf16.mxu0 0
      %867 = vmatpush1.bf16.xpose.msra.mxu0 0
      %868 = vmatprep.subr.bf16.mxu0 0
      %869 = vmatpush1.bf16.xpose.msra.mxu0 0
      %870 = vmatprep.subr.bf16.mxu0 0
      %871 = vmatpush1.bf16.xpose.msra.mxu0 0
      %872 = vmatprep.subr.bf16.mxu0 0
      %873 = vmatpush1.bf16.xpose.msra.mxu0 0
      %874 = vmatprep.mubr.bf16.mxu0 0
      %875 = vmatmul.mubr.bf16.gmra.mrb[0].mxu0 %v837
      %v876 = vpop.f32.mrb[0].mxu0
      %v877 = vadd.f32 0.0, %v876
      %v878 = vpop.f32.mrb[0].mxu0
      %v879 = vpop.f32.mrb[0].mxu0
      %v880 = vpop.f32.mrb[0].mxu0
      %881 = vdwg.mxu0
      %v882 = vsel %vm721, %v877, -1e+09
      %v883 = vsel %vm770, %v882, -inf
      %884 = vmax.xlane.f32.xlu0 %v883
      %v885 = vpop.xlane.xlu0 %884
      %v886 = vsub.f32 %v882, %v885
      %v887 = vmul.f32 %v886, 1.442695
      %v888 = vpow.pop %v887
      %v889 = vsel %vm770, %v888, 0.0
      %890 = vadd.xlane.f32.xlu0 %v889
      %v891 = vpop.xlane.xlu0 %890
      %v892 = vrcp.pop %v891
      %v893 = vmul.f32 %v888, %v892
      %v894 = vpack.c.bf16 %v893, %v893
      %896 = vrot.lane.b32.xlu0 %v716, 112
      %v897 = vpop.permute.xlu0 %896
      %v899 = vsel %vm770, %v894, 0
      %v902 = vsel %vm786, %v897, 0
      %904 = vmatprep.subr.bf16.mxu0 0
      %905 = vmatpush1.bf16.msra.mxu0 %v902
      %906 = vmatprep.subr.bf16.mxu0 0
      %907 = vmatpush1.bf16.msra.mxu0 0
      %908 = vmatprep.subr.bf16.mxu0 0
      %909 = vmatpush1.bf16.msra.mxu0 0
      %910 = vmatprep.subr.bf16.mxu0 0
      %911 = vmatpush1.bf16.msra.mxu0 0
      %912 = vmatprep.subr.bf16.mxu0 0
      %913 = vmatpush1.bf16.msra.mxu0 0
      %914 = vmatprep.subr.bf16.mxu0 0
      %915 = vmatpush1.bf16.msra.mxu0 0
      %916 = vmatprep.subr.bf16.mxu0 0
      %917 = vmatpush1.bf16.msra.mxu0 0
      %918 = vmatprep.subr.bf16.mxu0 0
      %919 = vmatpush1.bf16.msra.mxu0 0
      %920 = vmatprep.subr.bf16.mxu0 0
      %921 = vmatpush1.bf16.msra.mxu0 0
      %922 = vmatprep.subr.bf16.mxu0 0
      %923 = vmatpush1.bf16.msra.mxu0 0
      %924 = vmatprep.subr.bf16.mxu0 0
      %925 = vmatpush1.bf16.msra.mxu0 0
      %926 = vmatprep.subr.bf16.mxu0 0
      %927 = vmatpush1.bf16.msra.mxu0 0
      %928 = vmatprep.subr.bf16.mxu0 0
      %929 = vmatpush1.bf16.msra.mxu0 0
      %930 = vmatprep.subr.bf16.mxu0 0
      %931 = vmatpush1.bf16.msra.mxu0 0
      %932 = vmatprep.subr.bf16.mxu0 0
      %933 = vmatpush1.bf16.msra.mxu0 0
      %934 = vmatprep.subr.bf16.mxu0 0
      %935 = vmatpush1.bf16.msra.mxu0 0
      %936 = vmatprep.mubr.bf16.mxu0 0
      %937 = vmatmul.mubr.bf16.gmra.mrb[0].mxu0 %v899
      %v938 = vpop.f32.mrb[0].mxu0
      %v939 = vadd.f32 0.0, %v938
      %v940 = vpop.f32.mrb[0].mxu0
      %v941 = vpop.f32.mrb[0].mxu0
      %v942 = vpop.f32.mrb[0].mxu0
      %943 = vdwg.mxu0
      %944 = vrot.lane.b32.xlu0 %v714, 96
      %v945 = vpop.permute.xlu0 %944
      %946 = vrot.lane.b32.xlu0 %v715, 96
      %v947 = vpop.permute.xlu0 %946
      %v949 = vsel %vm722, %v945, 0
      %v952 = vsel %vm722, %v947, 0
      %954 = vmatprep.subr.bf16.mxu0 0
      %955 = vmatpush1.bf16.xpose.msra.mxu0 %v952
      %956 = vmatprep.subr.bf16.mxu0 0
      %957 = vmatpush1.bf16.xpose.msra.mxu0 0
      %958 = vmatprep.subr.bf16.mxu0 0
      %959 = vmatpush1.bf16.xpose.msra.mxu0 0
      %960 = vmatprep.subr.bf16.mxu0 0
      %961 = vmatpush1.bf16.xpose.msra.mxu0 0
      %962 = vmatprep.subr.bf16.mxu0 0
      %963 = vmatpush1.bf16.xpose.msra.mxu0 0
      %964 = vmatprep.subr.bf16.mxu0 0
      %965 = vmatpush1.bf16.xpose.msra.mxu0 0
      %966 = vmatprep.subr.bf16.mxu0 0
      %967 = vmatpush1.bf16.xpose.msra.mxu0 0
      %968 = vmatprep.subr.bf16.mxu0 0
      %969 = vmatpush1.bf16.xpose.msra.mxu0 0
      %970 = vmatprep.subr.bf16.mxu0 0
      %971 = vmatpush1.bf16.xpose.msra.mxu0 0
      %972 = vmatprep.subr.bf16.mxu0 0
      %973 = vmatpush1.bf16.xpose.msra.mxu0 0
      %974 = vmatprep.subr.bf16.mxu0 0
      %975 = vmatpush1.bf16.xpose.msra.mxu0 0
      %976 = vmatprep.subr.bf16.mxu0 0
      %977 = vmatpush1.bf16.xpose.msra.mxu0 0
      %978 = vmatprep.subr.bf16.mxu0 0
      %979 = vmatpush1.bf16.xpose.msra.mxu0 0
      %980 = vmatprep.subr.bf16.mxu0 0
      %981 = vmatpush1.bf16.xpose.msra.mxu0 0
      %982 = vmatprep.subr.bf16.mxu0 0
      %983 = vmatpush1.bf16.xpose.msra.mxu0 0
      %984 = vmatprep.subr.bf16.mxu0 0
      %985 = vmatpush1.bf16.xpose.msra.mxu0 0
      %986 = vmatprep.mubr.bf16.mxu0 0
      %987 = vmatmul.mubr.bf16.gmra.mrb[0].mxu0 %v949
      %v988 = vpop.f32.mrb[0].mxu0
      %v989 = vadd.f32 0.0, %v988
      %v990 = vpop.f32.mrb[0].mxu0
      %v991 = vpop.f32.mrb[0].mxu0
      %v992 = vpop.f32.mrb[0].mxu0
      %993 = vdwg.mxu0
      %v994 = vsel %vm721, %v989, -1e+09
      %v995 = vsel %vm770, %v994, -inf
      %996 = vmax.xlane.f32.xlu0 %v995
      %v997 = vpop.xlane.xlu0 %996
      %v998 = vsub.f32 %v994, %v997
      %v999 = vmul.f32 %v998, 1.442695
      %v1000 = vpow.pop %v999
      %v1001 = vsel %vm770, %v1000, 0.0
      %1002 = vadd.xlane.f32.xlu0 %v1001
      %v1003 = vpop.xlane.xlu0 %1002
      %v1004 = vrcp.pop %v1003
      %v1005 = vmul.f32 %v1000, %v1004
      %v1006 = vpack.c.bf16 %v1005, %v1005
      %1007 = vrot.lane.b32.xlu0 %v716, 96
      %v1008 = vpop.permute.xlu0 %1007
      %v1010 = vsel %vm770, %v1006, 0
      %v1013 = vsel %vm786, %v1008, 0
      %1015 = vmatprep.subr.bf16.mxu0 0
      %1016 = vmatpush1.bf16.msra.mxu0 %v1013
      %1017 = vmatprep.subr.bf16.mxu0 0
      %1018 = vmatpush1.bf16.msra.mxu0 0
      %1019 = vmatprep.subr.bf16.mxu0 0
      %1020 = vmatpush1.bf16.msra.mxu0 0
      %1021 = vmatprep.subr.bf16.mxu0 0
      %1022 = vmatpush1.bf16.msra.mxu0 0
      %1023 = vmatprep.subr.bf16.mxu0 0
      %1024 = vmatpush1.bf16.msra.mxu0 0
      %1025 = vmatprep.subr.bf16.mxu0 0
      %1026 = vmatpush1.bf16.msra.mxu0 0
      %1027 = vmatprep.subr.bf16.mxu0 0
      %1028 = vmatpush1.bf16.msra.mxu0 0
      %1029 = vmatprep.subr.bf16.mxu0 0
      %1030 = vmatpush1.bf16.msra.mxu0 0
      %1031 = vmatprep.subr.bf16.mxu0 0
      %1032 = vmatpush1.bf16.msra.mxu0 0
      %1033 = vmatprep.subr.bf16.mxu0 0
      %1034 = vmatpush1.bf16.msra.mxu0 0
      %1035 = vmatprep.subr.bf16.mxu0 0
      %1036 = vmatpush1.bf16.msra.mxu0 0
      %1037 = vmatprep.subr.bf16.mxu0 0
      %1038 = vmatpush1.bf16.msra.mxu0 0
      %1039 = vmatprep.subr.bf16.mxu0 0
      %1040 = vmatpush1.bf16.msra.mxu0 0
      %1041 = vmatprep.subr.bf16.mxu0 0
      %1042 = vmatpush1.bf16.msra.mxu0 0
      %1043 = vmatprep.subr.bf16.mxu0 0
      %1044 = vmatpush1.bf16.msra.mxu0 0
      %1045 = vmatprep.subr.bf16.mxu0 0
      %1046 = vmatpush1.bf16.msra.mxu0 0
      %1047 = vmatprep.mubr.bf16.mxu0 0
      %1048 = vmatmul.mubr.bf16.gmra.mrb[0].mxu0 %v1010
      %v1049 = vpop.f32.mrb[0].mxu0
      %v1050 = vadd.f32 0.0, %v1049
      %v1051 = vpop.f32.mrb[0].mxu0
      %v1052 = vpop.f32.mrb[0].mxu0
      %v1053 = vpop.f32.mrb[0].mxu0
      %1054 = vdwg.mxu0
      %1055 = vrot.lane.b32.xlu0 %v714, 80
      %v1056 = vpop.permute.xlu0 %1055
      %1057 = vrot.lane.b32.xlu0 %v715, 80
      %v1058 = vpop.permute.xlu0 %1057
      %v1060 = vsel %vm722, %v1056, 0
      %v1063 = vsel %vm722, %v1058, 0
      %1065 = vmatprep.subr.bf16.mxu0 0
      %1066 = vmatpush1.bf16.xpose.msra.mxu0 %v1063
      %1067 = vmatprep.subr.bf16.mxu0 0
      %1068 = vmatpush1.bf16.xpose.msra.mxu0 0
      %1069 = vmatprep.subr.bf16.mxu0 0
      %1070 = vmatpush1.bf16.xpose.msra.mxu0 0
      %1071 = vmatprep.subr.bf16.mxu0 0
      %1072 = vmatpush1.bf16.xpose.msra.mxu0 0
      %1073 = vmatprep.subr.bf16.mxu0 0
      %1074 = vmatpush1.bf16.xpose.msra.mxu0 0
      %1075 = vmatprep.subr.bf16.mxu0 0
      %1076 = vmatpush1.bf16.xpose.msra.mxu0 0
      %1077 = vmatprep.subr.bf16.mxu0 0
      %1078 = vmatpush1.bf16.xpose.msra.mxu0 0
      %1079 = vmatprep.subr.bf16.mxu0 0
      %1080 = vmatpush1.bf16.xpose.msra.mxu0 0
      %1081 = vmatprep.subr.bf16.mxu0 0
      %1082 = vmatpush1.bf16.xpose.msra.mxu0 0
      %1083 = vmatprep.subr.bf16.mxu0 0
      %1084 = vmatpush1.bf16.xpose.msra.mxu0 0
      %1085 = vmatprep.subr.bf16.mxu0 0
      %1086 = vmatpush1.bf16.xpose.msra.mxu0 0
      %1087 = vmatprep.subr.bf16.mxu0 0
      %1088 = vmatpush1.bf16.xpose.msra.mxu0 0
      %1089 = vmatprep.subr.bf16.mxu0 0
      %1090 = vmatpush1.bf16.xpose.msra.mxu0 0
      %1091 = vmatprep.subr.bf16.mxu0 0
      %1092 = vmatpush1.bf16.xpose.msra.mxu0 0
      %1093 = vmatprep.subr.bf16.mxu0 0
      %1094 = vmatpush1.bf16.xpose.msra.mxu0 0
      %1095 = vmatprep.subr.bf16.mxu0 0
      %1096 = vmatpush1.bf16.xpose.msra.mxu0 0
      %1097 = vmatprep.mubr.bf16.mxu0 0
      %1098 = vmatmul.mubr.bf16.gmra.mrb[0].mxu0 %v1060
      %v1099 = vpop.f32.mrb[0].mxu0
      %v1100 = vadd.f32 0.0, %v1099
      %v1101 = vpop.f32.mrb[0].mxu0
      %v1102 = vpop.f32.mrb[0].mxu0
      %v1103 = vpop.f32.mrb[0].mxu0
      %1104 = vdwg.mxu0
      %v1105 = vsel %vm721, %v1100, -1e+09
      %v1106 = vsel %vm770, %v1105, -inf
      %1107 = vmax.xlane.f32.xlu0 %v1106
      %v1108 = vpop.xlane.xlu0 %1107
      %v1109 = vsub.f32 %v1105, %v1108
      %v1110 = vmul.f32 %v1109, 1.442695
      %v1111 = vpow.pop %v1110
      %v1112 = vsel %vm770, %v1111, 0.0
      %1113 = vadd.xlane.f32.xlu0 %v1112
      %v1114 = vpop.xlane.xlu0 %1113
      %v1115 = vrcp.pop %v1114
      %v1116 = vmul.f32 %v1111, %v1115
      %v1117 = vpack.c.bf16 %v1116, %v1116
      %1118 = vrot.lane.b32.xlu0 %v716, 80
      %v1119 = vpop.permute.xlu0 %1118
      %v1121 = vsel %vm770, %v1117, 0
      %v1124 = vsel %vm786, %v1119, 0
      %1126 = vmatprep.subr.bf16.mxu0 0
      %1127 = vmatpush1.bf16.msra.mxu0 %v1124
      %1128 = vmatprep.subr.bf16.mxu0 0
      %1129 = vmatpush1.bf16.msra.mxu0 0
      %1130 = vmatprep.subr.bf16.mxu0 0
      %1131 = vmatpush1.bf16.msra.mxu0 0
      %1132 = vmatprep.subr.bf16.mxu0 0
      %1133 = vmatpush1.bf16.msra.mxu0 0
      %1134 = vmatprep.subr.bf16.mxu0 0
      %1135 = vmatpush1.bf16.msra.mxu0 0
      %1136 = vmatprep.subr.bf16.mxu0 0
      %1137 = vmatpush1.bf16.msra.mxu0 0
      %1138 = vmatprep.subr.bf16.mxu0 0
      %1139 = vmatpush1.bf16.msra.mxu0 0
      %1140 = vmatprep.subr.bf16.mxu0 0
      %1141 = vmatpush1.bf16.msra.mxu0 0
      %1142 = vmatprep.subr.bf16.mxu0 0
      %1143 = vmatpush1.bf16.msra.mxu0 0
      %1144 = vmatprep.subr.bf16.mxu0 0
      %1145 = vmatpush1.bf16.msra.mxu0 0
      %1146 = vmatprep.subr.bf16.mxu0 0
      %1147 = vmatpush1.bf16.msra.mxu0 0
      %1148 = vmatprep.subr.bf16.mxu0 0
      %1149 = vmatpush1.bf16.msra.mxu0 0
      %1150 = vmatprep.subr.bf16.mxu0 0
      %1151 = vmatpush1.bf16.msra.mxu0 0
      %1152 = vmatprep.subr.bf16.mxu0 0
      %1153 = vmatpush1.bf16.msra.mxu0 0
      %1154 = vmatprep.subr.bf16.mxu0 0
      %1155 = vmatpush1.bf16.msra.mxu0 0
      %1156 = vmatprep.subr.bf16.mxu0 0
      %1157 = vmatpush1.bf16.msra.mxu0 0
      %1158 = vmatprep.mubr.bf16.mxu0 0
      %1159 = vmatmul.mubr.bf16.gmra.mrb[0].mxu0 %v1121
      %v1160 = vpop.f32.mrb[0].mxu0
      %v1161 = vadd.f32 0.0, %v1160
      %v1162 = vpop.f32.mrb[0].mxu0
      %v1163 = vpop.f32.mrb[0].mxu0
      %v1164 = vpop.f32.mrb[0].mxu0
      %1165 = vdwg.mxu0
      %1167 = vrot.lane.b32.xlu0 %v939, 16
      %v1168 = vpop.permute.xlu0 %1167
      %1171 = vrot.lane.b32.xlu0 %v1050, 32
      %v1172 = vpop.permute.xlu0 %1171
      %1175 = vrot.lane.b32.xlu0 %v1161, 48
      %v1176 = vpop.permute.xlu0 %1175
      %v1178 = vsel %vm722, %v825, %v1168
      %vm1179 = vcmask 261120
      %v1180 = vsel %vm1179, %v1178, %v1172
      %vm1181 = vcmask 392192
      %v1182 = vsel %vm1181, %v1180, %v1176
      %v1183 = vpack.c.bf16 %v1182, %v1182
      %v1184 = vld [vmem:[%s8] sm:$0xf]
      %v1185 = vld [vmem:[%s8 + $0x4] sm:$0xf]
      %v1186 = vld [vmem:[%s8 + $0x8] sm:$0xf]
      %v1187 = vld [vmem:[%s8 + $0xc] sm:$0xf]
      %v1188 = vld [vmem:[%s8 + $0x10] sm:$0xf]
      %v1189 = vld [vmem:[%s8 + $0x14] sm:$0xf]
      %v1190 = vld [vmem:[%s8 + $0x18] sm:$0xf]
      %v1191 = vld [vmem:[%s8 + $0x1c] sm:$0xf]
      %v1192 = vld [vmem:[%s9] sm:$0x1]
      %v1194 = vlaneseq
      %v1195 = vshrl.u32 %v1194, 7
      %v1196 = vsub.s32 0, %v1195
      %v1197 = vrot.slane %v1192, %v1196
      %v1207 = vunpack.c.l.b16 %v1184
      %v1208 = vunpack.c.l.b16 %v1185
      %v1209 = vunpack.c.l.b16 %v1186
      %v1210 = vunpack.c.l.b16 %v1187
      %v1211 = vunpack.c.l.b16 %v1188
      %v1212 = vunpack.c.l.b16 %v1189
      %v1213 = vunpack.c.l.b16 %v1190
      %v1214 = vunpack.c.l.b16 %v1191
      %v1215 = vpack.c.b16 %v1208, %v1207
      %v1216 = vpack.c.b16 %v1210, %v1209
      %v1217 = vpack.c.b16 %v1212, %v1211
      %v1218 = vpack.c.b16 %v1214, %v1213
      %v1224 = vsel %vm508, %v1183, 0
      %1226 = vmatprep.subr.bf16.mxu0 0
      %1227 = vmatpush1.bf16.msra.mxu0 %v1215
      %1228 = vmatprep.subr.bf16.mxu0 0
      %1229 = vmatpush1.bf16.msra.mxu0 %v1216
      %1230 = vmatprep.subr.bf16.mxu0 0
      %1231 = vmatpush1.bf16.msra.mxu0 %v1217
      %1232 = vmatprep.subr.bf16.mxu0 0
      %1233 = vmatpush1.bf16.msra.mxu0 %v1218
      %1234 = vmatprep.subr.bf16.mxu0 0
      %1235 = vmatpush1.bf16.msra.mxu0 0
      %1236 = vmatprep.subr.bf16.mxu0 0
      %1237 = vmatpush1.bf16.msra.mxu0 0
      %1238 = vmatprep.subr.bf16.mxu0 0
      %1239 = vmatpush1.bf16.msra.mxu0 0
      %1240 = vmatprep.subr.bf16.mxu0 0
      %1241 = vmatpush1.bf16.msra.mxu0 0
      %1242 = vmatprep.subr.bf16.mxu0 0
      %1243 = vmatpush1.bf16.msra.mxu0 0
      %1244 = vmatprep.subr.bf16.mxu0 0
      %1245 = vmatpush1.bf16.msra.mxu0 0
      %1246 = vmatprep.subr.bf16.mxu0 0
      %1247 = vmatpush1.bf16.msra.mxu0 0
      %1248 = vmatprep.subr.bf16.mxu0 0
      %1249 = vmatpush1.bf16.msra.mxu0 0
      %1250 = vmatprep.subr.bf16.mxu0 0
      %1251 = vmatpush1.bf16.msra.mxu0 0
      %1252 = vmatprep.subr.bf16.mxu0 0
      %1253 = vmatpush1.bf16.msra.mxu0 0
      %1254 = vmatprep.subr.bf16.mxu0 0
      %1255 = vmatpush1.bf16.msra.mxu0 0
      %1256 = vmatprep.subr.bf16.mxu0 0
      %1257 = vmatpush1.bf16.msra.mxu0 0
      %1258 = vmatprep.mubr.bf16.mxu0 0
      %1259 = vmatmul.mubr.bf16.gmra.mrb[0].mxu0 %v1224
      %v1260 = vpop.f32.mrb[0].mxu0
      %v1261 = vadd.f32 %v1197, %v1260
      %v1262 = vpop.f32.mrb[0].mxu0
      %v1263 = vpop.f32.mrb[0].mxu0
      %v1264 = vpop.f32.mrb[0].mxu0
      %1265 = vdwg.mxu0
      %1267 = vrot.lane.b32.xlu0 %v893, 8
      %v1268 = vpop.permute.xlu0 %1267
      %1271 = vrot.lane.b32.xlu0 %v1005, 16
      %v1272 = vpop.permute.xlu0 %1271
      %1275 = vrot.lane.b32.xlu0 %v1116, 24
      %v1276 = vpop.permute.xlu0 %1275
      %v1278 = vsel %vm770, %v781, %v1268
      %v1279 = vsel %vm722, %v1278, %v1272
      %vm1280 = vcmask 195584
      %v1281 = vsel %vm1280, %v1279, %v1276
      %1282 = vst.msk [vmem:[%s463] sm:$0xff] %vm1179, %v1281
      %v1283 = vadd.f32 %v465, %v1261
      %v1284 = vsel %vm508, %v1283, 0.0
      %1285 = vadd.xlane.f32.xlu0 %v1284
      %v1286 = vpop.xlane.xlu0 %1285
      %v1287 = vrcp.pop 64.0
      %v1288 = vmul.f32 %v1286, %v1287
      %v1289 = vsub.f32 %v1283, %v1288
      %v1290 = vmul.f32 %v1289, %v1289
      %v1291 = vsel %vm508, %v1290, 0.0
      %1292 = vadd.xlane.f32.xlu0 %v1291
      %v1293 = vpop.xlane.xlu0 %1292
      %v1294 = vmul.f32 %v1293, %v1287
      %v1295 = vadd.f32 %v1294, 1e-05
      %v1296 = vrsqrt.pop %v1295
      %v1297 = vmul.f32 %v1289, %v1296
      %v1298 = vld [vmem:[%s10] sm:$0x1]
      %v1300 = vlaneseq
      %v1301 = vshrl.u32 %v1300, 7
      %v1302 = vsub.s32 0, %v1301
      %v1303 = vrot.slane %v1298, %v1302
      %v1305 = vmul.f32 %v1297, %v1303
      %v1306 = vld [vmem:[%s11] sm:$0x1]
      %v1308 = vlaneseq
      %v1309 = vshrl.u32 %v1308, 7
      %v1310 = vsub.s32 0, %v1309
      %v1311 = vrot.slane %v1306, %v1310
      %v1313 = vadd.f32 %v1305, %v1311
      %1314 = vst.msk [vmem:[%s459] sm:$0xff] %vm508, %v1313
      %p1315 = scmp.lt.s32.totalorder %s25, 1
      %s1316 = scalar_select %p1315, %s25, 1
      %s1317 = smul.addr %s1316, 8
      %s1318 = scalar_lea.vmem %s12, %s1317
      %p1319 = scmp.lt.s32.totalorder %s25, 1
      %s1320 = scalar_select %p1319, %s25, 1
      %s1321 = smul.addr %s1320, 8
      %s1322 = scalar_lea.vmem %s13, %s1321
      // Predicated region
      $region69: #{transformer_forward.15} parent=67 // pred_check
        %p1323 = pneg %p305
      $region70: #{transformer_forward.15} parent=67 // pred_check_branch
        %1325 = sbr.rel (%p1323) target = $region72
      $region71: #{transformer_forward.15} parent=67 // pred_region
        _
      $region72: #{transformer_forward.15} parent=67 // pred_fallthru
        _
      // Predicated region
      $region73: #{transformer_forward.15} parent=67 // pred_check
        %p1326 = pneg %p331
      $region74: #{transformer_forward.15} parent=67 // pred_check_branch
        %1328 = sbr.rel (%p1326) target = $region76
      $region75: #{transformer_forward.15} parent=67 // pred_region
        _
      $region76: #{transformer_forward.15} parent=67 // pred_fallthru
        _
    $region68: #{transformer_forward.15} parent=5 // pred_fallthru
      _
    %p1329 = scmp.le.s32.totalorder 2, %s20
    // Predicated region
    $region77: #{transformer_forward.15} parent=5 // pred_check
      %p1330 = pneg %p1329
    $region78: #{transformer_forward.15} parent=5 // pred_check_branch
      %1332 = sbr.rel (%p1330) target = $region80
    $region79: #{transformer_forward.15} parent=5 // pred_region
      %s1333 = ssub.s32 %s20, 2
      // Predicated region
      $region81: #{transformer_forward.15} parent=79 // pred_check
        %p1334 = pneg %p311
      $region82: #{transformer_forward.15} parent=79 // pred_check_branch
        %1336 = sbr.rel (%p1334) target = $region84
      $region83: #{transformer_forward.15} parent=79 // pred_region
        %p1337 = scmp.lt.s32.totalorder %s26, 1
        %s1338 = scalar_select %p1337, %s26, 1
        %s1339 = smul.addr %s1338, 8
        %s1340 = scalar_lea.vmem %s12, %s1339
      $region84: #{transformer_forward.15} parent=79 // pred_fallthru
        _
      // Predicated region
      $region85: #{transformer_forward.15} parent=79 // pred_check
        %p1341 = pneg %p337
      $region86: #{transformer_forward.15} parent=79 // pred_check_branch
        %1343 = sbr.rel (%p1341) target = $region88
      $region87: #{transformer_forward.15} parent=79 // pred_region
        %p1344 = scmp.lt.s32.totalorder %s26, 1
        %s1345 = scalar_select %p1344, %s26, 1
        %s1346 = smul.addr %s1345, 8
        %s1347 = scalar_lea.vmem %s13, %s1346
      $region88: #{transformer_forward.15} parent=79 // pred_fallthru
        _
    $region80: #{transformer_forward.15} parent=5 // pred_fallthru
      _
  $region6: #{transformer_forward.15} parent=0 // loop_footer
    %s24 = sadd.s32 1, %s20
  $region7: #{transformer_forward.15} parent=0 // loop_footer_branch
    %19 = sbr.rel target = $region3
  $region8: #{transformer_forward.15} parent=0 // loop_exit
    _

</llo_original>
